<compile_context>
chip_gen: v6e
topology: v6e:2x2x1
jax: 0.10.0
libtpu: 0.0.40
codegen_flags: <defaults>
</compile_context>

<pallas_src>
import jax
import jax.numpy as jnp
from jax.experimental import pallas as pl
from jax.experimental.pallas import tpu as pltpu

BN_EPS = 1e-5


# ------------------------- Pallas kernels ---------------------------------

def conv_bn_relu_kernel(p_ref, w_ref, b_ref, o_ref):
    # (tile_m, K) @ (K, N) on the MXU (bf16 in, f32 accumulate), then the folded
    # conv-bias/BN shift and ReLU on the VPU.
    acc = jnp.dot(p_ref[...], w_ref[...], preferred_element_type=jnp.float32)
    o_ref[...] = jnp.maximum(acc + b_ref[...], 0.0).astype(o_ref.dtype)


def fc_fused_kernel(x_ref, w1_ref, b1_ref, w2_ref, b2_ref, w3_ref, b3_ref,
                    o_ref):
    # fc1 + ReLU + fc2 + ReLU + fc3 fused: weights stay resident in VMEM and the
    # intermediate activations never touch HBM.
    h = jnp.dot(x_ref[...], w1_ref[...], preferred_element_type=jnp.float32)
    h = jnp.maximum(h + b1_ref[...], 0.0).astype(jnp.bfloat16)
    h = jnp.dot(h, w2_ref[...], preferred_element_type=jnp.float32)
    h = jnp.maximum(h + b2_ref[...], 0.0).astype(jnp.bfloat16)
    h = jnp.dot(h, w3_ref[...], preferred_element_type=jnp.float32)
    o_ref[...] = (h + b3_ref[...]).astype(o_ref.dtype)


# ------------------------- pallas_call wrappers ----------------------------

def _row_tile(m):
    # Whole-array block while small (per-grid-step overhead dominates this
    # ~8 MFLOP model); 1024-row tiles once batch grows so conv1 patches stay far
    # below v7x's 64 MiB VMEM and the grid can use both TensorCores.
    return m if m <= 2048 else 1024


def _whole(shape):
    # One block covering the full array (block == full dims is always legal).
    return pl.BlockSpec(shape, lambda i: (0,) * len(shape))


def conv_bn_relu(patches, w_mat, bias):
    M, K = patches.shape
    N = w_mat.shape[1]
    tm = _row_tile(M)
    return pl.pallas_call(
        conv_bn_relu_kernel,
        out_shape=jax.ShapeDtypeStruct((M, N), jnp.bfloat16),
        grid=(pl.cdiv(M, tm),),
        in_specs=[pl.BlockSpec((tm, K), lambda i: (i, 0)),
                  _whole((K, N)),
                  _whole((1, N))],
        out_specs=pl.BlockSpec((tm, N), lambda i: (i, 0)),
        compiler_params=pltpu.CompilerParams(
            dimension_semantics=("parallel",)),
    )(patches, w_mat, bias)


def fc_fused(x, p):
    M, K = x.shape
    n1 = p["fc1_w"].shape[1]
    n2 = p["fc2_w"].shape[1]
    n3 = p["fc3_w"].shape[1]
    tm = _row_tile(M)
    return pl.pallas_call(
        fc_fused_kernel,
        out_shape=jax.ShapeDtypeStruct((M, n3), jnp.float32),
        grid=(pl.cdiv(M, tm),),
        in_specs=[pl.BlockSpec((tm, K), lambda i: (i, 0)),
                  _whole((K, n1)), _whole((1, n1)),
                  _whole((n1, n2)), _whole((1, n2)),
                  _whole((n2, n3)), _whole((1, n3))],
        out_specs=pl.BlockSpec((tm, n3), lambda i: (i, 0)),
        compiler_params=pltpu.CompilerParams(
            dimension_semantics=("parallel",)),
    )(x, p["fc1_w"], p["fc1_b"], p["fc2_w"], p["fc2_b"],
      p["fc3_w"], p["fc3_b"])


# ------------------------- glue (plain JAX, jitted) -------------------------

def im2col(x_nhwc, kh=3, kw=3, stride=2, pad=1):
    """Extract conv patches.  Returns ((B*OH*OW, kh*kw*C), (B, OH, OW))."""
    B, H, W, C = x_nhwc.shape
    xp = jnp.pad(x_nhwc, ((0, 0), (pad, pad), (pad, pad), (0, 0)))
    OH = (H + 2 * pad - kh) // stride + 1
    OW = (W + 2 * pad - kw) // stride + 1
    cols = []
    for i in range(kh):
        for j in range(kw):
            cols.append(xp[:, i:i + stride * OH:stride,
                           j:j + stride * OW:stride, :])   # (kh, kw, cin) order
    patches = jnp.concatenate(cols, axis=-1)
    return patches.reshape(B * OH * OW, kh * kw * C), (B, OH, OW)


def conv_block(x_nhwc, p, prefix):
    """conv(3x3, stride 2, pad 1) + folded eval-BN + ReLU."""
    w = p[prefix + "_w"]          # (9*Cin, Cout) bf16, BN scale folded in
    b = p[prefix + "_b"]          # (1, Cout) f32, conv bias + BN shift folded
    cout = w.shape[1]
    patches, (B, OH, OW) = im2col(x_nhwc)
    out = conv_bn_relu(patches, w, b)
    return out.reshape(B, OH, OW, cout)


def simpleconv3_forward(params, x_nchw):
    # NCHW (PyTorch) -> NHWC, bf16 matmul operands.
    x = jnp.transpose(x_nchw, (0, 2, 3, 1)).astype(jnp.bfloat16)
    x = conv_block(x, params, "c1")    # (B, 24, 24, 12)
    x = conv_block(x, params, "c2")    # (B, 12, 12, 24)
    x = conv_block(x, params, "c3")    # (B, 6, 6, 48)
    B = x.shape[0]
    # Natural NHWC flatten (h, w, c); fc1 weights are stored in this row order.
    x = x.reshape(B, 6 * 6 * 48)
    return fc_fused(x, params)         # (B, nclass) f32


# ------------------------- parameters ---------------------------------------

def init_raw_params(key, nclass):
    """PyTorch-equivalent raw parameters (conv w/b, BN stats, fc w/b)."""
    ks = jax.random.split(key, 32)
    it = iter(ks)

    def nrm(shape, scale=0.1):
        return scale * jax.random.normal(next(it), shape, jnp.float32)

    p = {}
    for name, cin, cout in [("c1", 3, 12), ("c2", 12, 24), ("c3", 24, 48)]:
        p[name + "_w"] = nrm((3, 3, cin, cout))        # (KH, KW, Cin, Cout)
        p[name + "_b"] = nrm((cout,))
        p[name + "_g"] = 1.0 + nrm((cout,))            # BN gamma
        p[name + "_be"] = nrm((cout,))                 # BN beta
        p[name + "_m"] = nrm((cout,))                  # running_mean
        p[name + "_v"] = 0.5 + jnp.abs(nrm((cout,)))   # running_var > 0

    # fc1_w is generated directly in NHWC-flatten row order (see header note).
    for name, fin, fout in [("fc1", 48 * 6 * 6, 512), ("fc2", 512, 128),
                            ("fc3", 128, nclass)]:
        p[name + "_w"] = nrm((fin, fout), scale=0.05)  # == PyTorch weight.T
        p[name + "_b"] = nrm((fout,), scale=0.05)
    return p


def fold_params(raw):
    """One-time preprocessing: fold conv bias + eval BN into weights, reshape,
    and cast matmul operands to bf16 (accumulation stays f32 in-kernel)."""
    p = {}
    for name in ("c1", "c2", "c3"):
        w = raw[name + "_w"]                       # (3, 3, Cin, Cout)
        cout = w.shape[-1]
        scale = raw[name + "_g"] / jnp.sqrt(raw[name + "_v"] + BN_EPS)
        shift = raw[name + "_be"] - raw[name + "_m"] * scale
        w_mat = w.reshape(-1, cout) * scale[None, :]          # (9*Cin, Cout)
        b = raw[name + "_b"] * scale + shift
        p[name + "_w"] = w_mat.astype(jnp.bfloat16)
        p[name + "_b"] = b.reshape(1, cout).astype(jnp.float32)
    for name in ("fc1", "fc2", "fc3"):
        p[name + "_w"] = raw[name + "_w"].astype(jnp.bfloat16)
        p[name + "_b"] = raw[name + "_b"].reshape(1, -1).astype(jnp.float32)
    return p


# ------------------------- main ---------------------------------------------

if __name__ == "__main__":
    key = jax.random.PRNGKey(0)
    k_param, k_x = jax.random.split(key)

    B, nclass = 2, 4
    # Input must be (B, 3, 48, 48): three stride-2 convs -> 6x6 -> fc1(48*6*6).
    x = jax.random.normal(k_x, (B, 3, 48, 48), jnp.float32)

    params = fold_params(init_raw_params(k_param, nclass))

    forward = jax.jit(simpleconv3_forward)
    out = jax.block_until_ready(forward(params, x))

    assert out.shape == (B, nclass), out.shape
    assert out.dtype == jnp.float32
    print("KERNEL_OK")
</pallas_src>

<mosaic_0001>
module attributes {stable_mosaic.version = 11 : i64} {
  func.func @conv_bn_relu_kernel(%arg0: i32, %arg1: memref<1152x27xbf16, #tpu.memory_space<vmem>>, %arg2: memref<27x12xbf16, #tpu.memory_space<vmem>>, %arg3: memref<1x12xf32, #tpu.memory_space<vmem>>, %arg4: memref<1152x12xbf16, #tpu.memory_space<vmem>>) attributes {dimension_semantics = [#tpu.dimension_semantics<parallel>], iteration_bounds = array<i64: 1>, scalar_prefetch = 0 : i64, scratch_operands = 0 : i64, tpu.core_type = #tpu.core_type<tc>, window_params = [{transform_indices = @transform_0, window_bounds = array<i64: 1152, 27>}, {pipeline_mode = #tpu.pipeline_mode<synchronous>, transform_indices = @transform_1, window_bounds = array<i64: 27, 12>}, {pipeline_mode = #tpu.pipeline_mode<synchronous>, transform_indices = @transform_2, window_bounds = array<i64: 1, 12>}, {transform_indices = @transform_3, window_bounds = array<i64: 1152, 12>}]} {
    %c0 = arith.constant 0 : index
    %c0_0 = arith.constant 0 : index
    %0 = vector.load %arg1[%c0, %c0_0] : memref<1152x27xbf16, #tpu.memory_space<vmem>>, vector<1152x27xbf16>
    %c0_1 = arith.constant 0 : index
    %c0_2 = arith.constant 0 : index
    %1 = vector.load %arg2[%c0_1, %c0_2] : memref<27x12xbf16, #tpu.memory_space<vmem>>, vector<27x12xbf16>
    %cst = arith.constant dense<0.000000e+00> : vector<1152x12xf32>
    %2 = tpu.matmul %0, %1, %cst {dimension_numbers = #tpu.dot_dimension_numbers<[1], [0], [0], [1], [0, 0, 1, 1], [], []>} : vector<1152x27xbf16>, vector<27x12xbf16>, vector<1152x12xf32> -> vector<1152x12xf32>
    %c0_3 = arith.constant 0 : index
    %c0_4 = arith.constant 0 : index
    %3 = vector.load %arg3[%c0_3, %c0_4] : memref<1x12xf32, #tpu.memory_space<vmem>>, vector<1x12xf32>
    %4 = vector.broadcast %3 : vector<1x12xf32> to vector<1152x12xf32>
    %5 = arith.addf %2, %4 : vector<1152x12xf32>
    %cst_5 = arith.constant 0.000000e+00 : f32
    %6 = vector.broadcast %cst_5 : f32 to vector<1152x12xf32>
    %7 = arith.maximumf %5, %6 : vector<1152x12xf32>
    %8 = arith.truncf %7 : vector<1152x12xf32> to vector<1152x12xbf16>
    %c0_6 = arith.constant 0 : index
    %c0_7 = arith.constant 0 : index
    %9 = vector.load %arg4[%c0_6, %c0_7] : memref<1152x12xbf16, #tpu.memory_space<vmem>>, vector<1152x12xbf16>
    tpu.vector_store %arg4[%c0_6, %c0_7], %8 {strides = array<i32>} : memref<1152x12xbf16, #tpu.memory_space<vmem>>, vector<1152x12xbf16>,
    return
  }
  func.func @transform_0(%arg0: i32) -> (i32, i32) {
    %c0_i32 = arith.constant 0 : i32
    %c0_i32_0 = arith.constant 0 : i32
    return %arg0, %c0_i32 : i32, i32
  }
  func.func @transform_1(%arg0: i32) -> (i32, i32) {
    %c0_i32 = arith.constant 0 : i32
    %c0_i32_0 = arith.constant 0 : i32
    %c0_i32_1 = arith.constant 0 : i32
    return %c0_i32, %c0_i32_0 : i32, i32
  }
  func.func @transform_2(%arg0: i32) -> (i32, i32) {
    %c0_i32 = arith.constant 0 : i32
    %c0_i32_0 = arith.constant 0 : i32
    %c0_i32_1 = arith.constant 0 : i32
    return %c0_i32, %c0_i32_0 : i32, i32
  }
  func.func @transform_3(%arg0: i32) -> (i32, i32) {
    %c0_i32 = arith.constant 0 : i32
    %c0_i32_0 = arith.constant 0 : i32
    return %arg0, %c0_i32 : i32, i32
  }
}

module attributes {stable_mosaic.version = 11 : i64} {
  func.func @conv_bn_relu_kernel(%arg0: i32, %arg1: memref<288x108xbf16, #tpu.memory_space<vmem>>, %arg2: memref<108x24xbf16, #tpu.memory_space<vmem>>, %arg3: memref<1x24xf32, #tpu.memory_space<vmem>>, %arg4: memref<288x24xbf16, #tpu.memory_space<vmem>>) attributes {dimension_semantics = [#tpu.dimension_semantics<parallel>], iteration_bounds = array<i64: 1>, scalar_prefetch = 0 : i64, scratch_operands = 0 : i64, tpu.core_type = #tpu.core_type<tc>, window_params = [{transform_indices = @transform_0, window_bounds = array<i64: 288, 108>}, {pipeline_mode = #tpu.pipeline_mode<synchronous>, transform_indices = @transform_1, window_bounds = array<i64: 108, 24>}, {pipeline_mode = #tpu.pipeline_mode<synchronous>, transform_indices = @transform_2, window_bounds = array<i64: 1, 24>}, {transform_indices = @transform_3, window_bounds = array<i64: 288, 24>}]} {
    %c0 = arith.constant 0 : index
    %c0_0 = arith.constant 0 : index
    %0 = vector.load %arg1[%c0, %c0_0] : memref<288x108xbf16, #tpu.memory_space<vmem>>, vector<288x108xbf16>
    %c0_1 = arith.constant 0 : index
    %c0_2 = arith.constant 0 : index
    %1 = vector.load %arg2[%c0_1, %c0_2] : memref<108x24xbf16, #tpu.memory_space<vmem>>, vector<108x24xbf16>
    %cst = arith.constant dense<0.000000e+00> : vector<288x24xf32>
    %2 = tpu.matmul %0, %1, %cst {dimension_numbers = #tpu.dot_dimension_numbers<[1], [0], [0], [1], [0, 0, 1, 1], [], []>} : vector<288x108xbf16>, vector<108x24xbf16>, vector<288x24xf32> -> vector<288x24xf32>
    %c0_3 = arith.constant 0 : index
    %c0_4 = arith.constant 0 : index
    %3 = vector.load %arg3[%c0_3, %c0_4] : memref<1x24xf32, #tpu.memory_space<vmem>>, vector<1x24xf32>
    %4 = vector.broadcast %3 : vector<1x24xf32> to vector<288x24xf32>
    %5 = arith.addf %2, %4 : vector<288x24xf32>
    %cst_5 = arith.constant 0.000000e+00 : f32
    %6 = vector.broadcast %cst_5 : f32 to vector<288x24xf32>
    %7 = arith.maximumf %5, %6 : vector<288x24xf32>
    %8 = arith.truncf %7 : vector<288x24xf32> to vector<288x24xbf16>
    %c0_6 = arith.constant 0 : index
    %c0_7 = arith.constant 0 : index
    %9 = vector.load %arg4[%c0_6, %c0_7] : memref<288x24xbf16, #tpu.memory_space<vmem>>, vector<288x24xbf16>
    tpu.vector_store %arg4[%c0_6, %c0_7], %8 {strides = array<i32>} : memref<288x24xbf16, #tpu.memory_space<vmem>>, vector<288x24xbf16>,
    return
  }
  func.func @transform_0(%arg0: i32) -> (i32, i32) {
    %c0_i32 = arith.constant 0 : i32
    %c0_i32_0 = arith.constant 0 : i32
    return %arg0, %c0_i32 : i32, i32
  }
  func.func @transform_1(%arg0: i32) -> (i32, i32) {
    %c0_i32 = arith.constant 0 : i32
    %c0_i32_0 = arith.constant 0 : i32
    %c0_i32_1 = arith.constant 0 : i32
    return %c0_i32, %c0_i32_0 : i32, i32
  }
  func.func @transform_2(%arg0: i32) -> (i32, i32) {
    %c0_i32 = arith.constant 0 : i32
    %c0_i32_0 = arith.constant 0 : i32
    %c0_i32_1 = arith.constant 0 : i32
    return %c0_i32, %c0_i32_0 : i32, i32
  }
  func.func @transform_3(%arg0: i32) -> (i32, i32) {
    %c0_i32 = arith.constant 0 : i32
    %c0_i32_0 = arith.constant 0 : i32
    return %arg0, %c0_i32 : i32, i32
  }
}

module attributes {stable_mosaic.version = 11 : i64} {
  func.func @conv_bn_relu_kernel(%arg0: i32, %arg1: memref<72x216xbf16, #tpu.memory_space<vmem>>, %arg2: memref<216x48xbf16, #tpu.memory_space<vmem>>, %arg3: memref<1x48xf32, #tpu.memory_space<vmem>>, %arg4: memref<72x48xbf16, #tpu.memory_space<vmem>>) attributes {dimension_semantics = [#tpu.dimension_semantics<parallel>], iteration_bounds = array<i64: 1>, scalar_prefetch = 0 : i64, scratch_operands = 0 : i64, tpu.core_type = #tpu.core_type<tc>, window_params = [{transform_indices = @transform_0, window_bounds = array<i64: 72, 216>}, {pipeline_mode = #tpu.pipeline_mode<synchronous>, transform_indices = @transform_1, window_bounds = array<i64: 216, 48>}, {pipeline_mode = #tpu.pipeline_mode<synchronous>, transform_indices = @transform_2, window_bounds = array<i64: 1, 48>}, {transform_indices = @transform_3, window_bounds = array<i64: 72, 48>}]} {
    %c0 = arith.constant 0 : index
    %c0_0 = arith.constant 0 : index
    %0 = vector.load %arg1[%c0, %c0_0] : memref<72x216xbf16, #tpu.memory_space<vmem>>, vector<72x216xbf16>
    %c0_1 = arith.constant 0 : index
    %c0_2 = arith.constant 0 : index
    %1 = vector.load %arg2[%c0_1, %c0_2] : memref<216x48xbf16, #tpu.memory_space<vmem>>, vector<216x48xbf16>
    %cst = arith.constant dense<0.000000e+00> : vector<72x48xf32>
    %2 = tpu.matmul %0, %1, %cst {dimension_numbers = #tpu.dot_dimension_numbers<[1], [0], [0], [1], [0, 0, 1, 1], [], []>} : vector<72x216xbf16>, vector<216x48xbf16>, vector<72x48xf32> -> vector<72x48xf32>
    %c0_3 = arith.constant 0 : index
    %c0_4 = arith.constant 0 : index
    %3 = vector.load %arg3[%c0_3, %c0_4] : memref<1x48xf32, #tpu.memory_space<vmem>>, vector<1x48xf32>
    %4 = vector.broadcast %3 : vector<1x48xf32> to vector<72x48xf32>
    %5 = arith.addf %2, %4 : vector<72x48xf32>
    %cst_5 = arith.constant 0.000000e+00 : f32
    %6 = vector.broadcast %cst_5 : f32 to vector<72x48xf32>
    %7 = arith.maximumf %5, %6 : vector<72x48xf32>
    %8 = arith.truncf %7 : vector<72x48xf32> to vector<72x48xbf16>
    %c0_6 = arith.constant 0 : index
    %c0_7 = arith.constant 0 : index
    %9 = vector.load %arg4[%c0_6, %c0_7] : memref<72x48xbf16, #tpu.memory_space<vmem>>, vector<72x48xbf16>
    tpu.vector_store %arg4[%c0_6, %c0_7], %8 {strides = array<i32>} : memref<72x48xbf16, #tpu.memory_space<vmem>>, vector<72x48xbf16>,
    return
  }
  func.func @transform_0(%arg0: i32) -> (i32, i32) {
    %c0_i32 = arith.constant 0 : i32
    %c0_i32_0 = arith.constant 0 : i32
    return %arg0, %c0_i32 : i32, i32
  }
  func.func @transform_1(%arg0: i32) -> (i32, i32) {
    %c0_i32 = arith.constant 0 : i32
    %c0_i32_0 = arith.constant 0 : i32
    %c0_i32_1 = arith.constant 0 : i32
    return %c0_i32, %c0_i32_0 : i32, i32
  }
  func.func @transform_2(%arg0: i32) -> (i32, i32) {
    %c0_i32 = arith.constant 0 : i32
    %c0_i32_0 = arith.constant 0 : i32
    %c0_i32_1 = arith.constant 0 : i32
    return %c0_i32, %c0_i32_0 : i32, i32
  }
  func.func @transform_3(%arg0: i32) -> (i32, i32) {
    %c0_i32 = arith.constant 0 : i32
    %c0_i32_0 = arith.constant 0 : i32
    return %arg0, %c0_i32 : i32, i32
  }
}

module attributes {stable_mosaic.version = 11 : i64} {
  func.func @fc_fused_kernel(%arg0: i32, %arg1: memref<2x1728xbf16, #tpu.memory_space<vmem>>, %arg2: memref<1728x512xbf16, #tpu.memory_space<vmem>>, %arg3: memref<1x512xf32, #tpu.memory_space<vmem>>, %arg4: memref<512x128xbf16, #tpu.memory_space<vmem>>, %arg5: memref<1x128xf32, #tpu.memory_space<vmem>>, %arg6: memref<128x4xbf16, #tpu.memory_space<vmem>>, %arg7: memref<1x4xf32, #tpu.memory_space<vmem>>, %arg8: memref<2x4xf32, #tpu.memory_space<vmem>>) attributes {dimension_semantics = [#tpu.dimension_semantics<parallel>], iteration_bounds = array<i64: 1>, scalar_prefetch = 0 : i64, scratch_operands = 0 : i64, tpu.core_type = #tpu.core_type<tc>, window_params = [{transform_indices = @transform_0, window_bounds = array<i64: 2, 1728>}, {pipeline_mode = #tpu.pipeline_mode<synchronous>, transform_indices = @transform_1, window_bounds = array<i64: 1728, 512>}, {pipeline_mode = #tpu.pipeline_mode<synchronous>, transform_indices = @transform_2, window_bounds = array<i64: 1, 512>}, {pipeline_mode = #tpu.pipeline_mode<synchronous>, transform_indices = @transform_3, window_bounds = array<i64: 512, 128>}, {pipeline_mode = #tpu.pipeline_mode<synchronous>, transform_indices = @transform_4, window_bounds = array<i64: 1, 128>}, {pipeline_mode = #tpu.pipeline_mode<synchronous>, transform_indices = @transform_5, window_bounds = array<i64: 128, 4>}, {pipeline_mode = #tpu.pipeline_mode<synchronous>, transform_indices = @transform_6, window_bounds = array<i64: 1, 4>}, {transform_indices = @transform_7, window_bounds = array<i64: 2, 4>}]} {
    %c0 = arith.constant 0 : index
    %c0_0 = arith.constant 0 : index
    %0 = vector.load %arg1[%c0, %c0_0] : memref<2x1728xbf16, #tpu.memory_space<vmem>>, vector<2x1728xbf16>
    %c0_1 = arith.constant 0 : index
    %c0_2 = arith.constant 0 : index
    %1 = vector.load %arg2[%c0_1, %c0_2] : memref<1728x512xbf16, #tpu.memory_space<vmem>>, vector<1728x512xbf16>
    %cst = arith.constant dense<0.000000e+00> : vector<2x512xf32>
    %2 = tpu.matmul %0, %1, %cst {dimension_numbers = #tpu.dot_dimension_numbers<[1], [0], [0], [1], [0, 0, 1, 1], [], []>} : vector<2x1728xbf16>, vector<1728x512xbf16>, vector<2x512xf32> -> vector<2x512xf32>
    %c0_3 = arith.constant 0 : index
    %c0_4 = arith.constant 0 : index
    %3 = vector.load %arg3[%c0_3, %c0_4] : memref<1x512xf32, #tpu.memory_space<vmem>>, vector<1x512xf32>
    %4 = vector.broadcast %3 : vector<1x512xf32> to vector<2x512xf32>
    %5 = arith.addf %2, %4 : vector<2x512xf32>
    %cst_5 = arith.constant 0.000000e+00 : f32
    %6 = vector.broadcast %cst_5 : f32 to vector<2x512xf32>
    %7 = arith.maximumf %5, %6 : vector<2x512xf32>
    %8 = arith.truncf %7 : vector<2x512xf32> to vector<2x512xbf16>
    %c0_6 = arith.constant 0 : index
    %c0_7 = arith.constant 0 : index
    %9 = vector.load %arg4[%c0_6, %c0_7] : memref<512x128xbf16, #tpu.memory_space<vmem>>, vector<512x128xbf16>
    %cst_8 = arith.constant dense<0.000000e+00> : vector<2x128xf32>
    %10 = tpu.matmul %8, %9, %cst_8 {dimension_numbers = #tpu.dot_dimension_numbers<[1], [0], [0], [1], [0, 0, 1, 1], [], []>} : vector<2x512xbf16>, vector<512x128xbf16>, vector<2x128xf32> -> vector<2x128xf32>
    %c0_9 = arith.constant 0 : index
    %c0_10 = arith.constant 0 : index
    %11 = vector.load %arg5[%c0_9, %c0_10] : memref<1x128xf32, #tpu.memory_space<vmem>>, vector<1x128xf32>
    %12 = vector.broadcast %11 : vector<1x128xf32> to vector<2x128xf32>
    %13 = arith.addf %10, %12 : vector<2x128xf32>
    %cst_11 = arith.constant 0.000000e+00 : f32
    %14 = vector.broadcast %cst_11 : f32 to vector<2x128xf32>
    %15 = arith.maximumf %13, %14 : vector<2x128xf32>
    %16 = arith.truncf %15 : vector<2x128xf32> to vector<2x128xbf16>
    %c0_12 = arith.constant 0 : index
    %c0_13 = arith.constant 0 : index
    %17 = vector.load %arg6[%c0_12, %c0_13] : memref<128x4xbf16, #tpu.memory_space<vmem>>, vector<128x4xbf16>
    %cst_14 = arith.constant dense<0.000000e+00> : vector<2x4xf32>
    %18 = tpu.matmul %16, %17, %cst_14 {dimension_numbers = #tpu.dot_dimension_numbers<[1], [0], [0], [1], [0, 0, 1, 1], [], []>} : vector<2x128xbf16>, vector<128x4xbf16>, vector<2x4xf32> -> vector<2x4xf32>
    %c0_15 = arith.constant 0 : index
    %c0_16 = arith.constant 0 : index
    %19 = vector.load %arg7[%c0_15, %c0_16] : memref<1x4xf32, #tpu.memory_space<vmem>>, vector<1x4xf32>
    %20 = vector.broadcast %19 : vector<1x4xf32> to vector<2x4xf32>
    %21 = arith.addf %18, %20 : vector<2x4xf32>
    %c0_17 = arith.constant 0 : index
    %c0_18 = arith.constant 0 : index
    %22 = vector.load %arg8[%c0_17, %c0_18] : memref<2x4xf32, #tpu.memory_space<vmem>>, vector<2x4xf32>
    tpu.vector_store %arg8[%c0_17, %c0_18], %21 {strides = array<i32>} : memref<2x4xf32, #tpu.memory_space<vmem>>, vector<2x4xf32>,
    return
  }
  func.func @transform_0(%arg0: i32) -> (i32, i32) {
    %c0_i32 = arith.constant 0 : i32
    %c0_i32_0 = arith.constant 0 : i32
    return %arg0, %c0_i32 : i32, i32
  }
  func.func @transform_1(%arg0: i32) -> (i32, i32) {
    %c0_i32 = arith.constant 0 : i32
    %c0_i32_0 = arith.constant 0 : i32
    %c0_i32_1 = arith.constant 0 : i32
    return %c0_i32, %c0_i32_0 : i32, i32
  }
  func.func @transform_2(%arg0: i32) -> (i32, i32) {
    %c0_i32 = arith.constant 0 : i32
    %c0_i32_0 = arith.constant 0 : i32
    %c0_i32_1 = arith.constant 0 : i32
    return %c0_i32, %c0_i32_0 : i32, i32
  }
  func.func @transform_3(%arg0: i32) -> (i32, i32) {
    %c0_i32 = arith.constant 0 : i32
    %c0_i32_0 = arith.constant 0 : i32
    %c0_i32_1 = arith.constant 0 : i32
    return %c0_i32, %c0_i32_0 : i32, i32
  }
  func.func @transform_4(%arg0: i32) -> (i32, i32) {
    %c0_i32 = arith.constant 0 : i32
    %c0_i32_0 = arith.constant 0 : i32
    %c0_i32_1 = arith.constant 0 : i32
    return %c0_i32, %c0_i32_0 : i32, i32
  }
  func.func @transform_5(%arg0: i32) -> (i32, i32) {
    %c0_i32 = arith.constant 0 : i32
    %c0_i32_0 = arith.constant 0 : i32
    %c0_i32_1 = arith.constant 0 : i32
    return %c0_i32, %c0_i32_0 : i32, i32
  }
  func.func @transform_6(%arg0: i32) -> (i32, i32) {
    %c0_i32 = arith.constant 0 : i32
    %c0_i32_0 = arith.constant 0 : i32
    %c0_i32_1 = arith.constant 0 : i32
    return %c0_i32, %c0_i32_0 : i32, i32
  }
  func.func @transform_7(%arg0: i32) -> (i32, i32) {
    %c0_i32 = arith.constant 0 : i32
    %c0_i32_0 = arith.constant 0 : i32
    return %arg0, %c0_i32 : i32, i32
  }
}

</mosaic_0001>

<llo_original>
// kernel: simpleconv3_forward.4
$region0: #{simpleconv3_forward.4}
  #allocation0 [shape = 'u32[]', space=smem, size = 0x4, offset = 0x4, fixed_abs, tag = 'smem constant byte address 0x4 - core index']
  #allocation1 [shape = 'u32[144,128]{1,0:T(1,128)}', space=vmem, size = 0x12000, scoped, tag = 'internal scratch']
  %s0 = inlined_call_operand.vmem [shape: bf16[1152,27], index: 0, kind: input, shape index: {}]
  %s1 = inlined_call_operand.vmem [shape: bf16[27,12], index: 1, kind: input, shape index: {}]
  %s2 = inlined_call_operand.vmem [shape: f32[1,12], index: 2, kind: input, shape index: {}]
  %s3 = inlined_call_operand.vmem [shape: bf16[1152,12], index: 3, kind: output, shape index: {}]
  %s4 = sld [smem:[#allocation0]]
  $region22: #{simpleconv3_forward.4} parent=0
    _
  %s6 = ssub.s32 1, %s4
  %s7 = scalar_select 0, %s6, %s4
  // Predicated region
  $region2: #{simpleconv3_forward.4} parent=0 // pred_check
    _
  $region3: #{simpleconv3_forward.4} parent=0 // pred_check_branch
    %9 = sbr.rel (0) target = $region5
  $region4: #{simpleconv3_forward.4} parent=0 // pred_region
    _
  $region5: #{simpleconv3_forward.4} parent=0 // pred_fallthru
    _
  // Predicated region
  $region6: #{simpleconv3_forward.4} parent=0 // pred_check
    _
  $region7: #{simpleconv3_forward.4} parent=0 // pred_check_branch
    %11 = sbr.rel (0) target = $region9
  $region8: #{simpleconv3_forward.4} parent=0 // pred_region
    _
  $region9: #{simpleconv3_forward.4} parent=0 // pred_fallthru
    _
  // Predicated region
  $region10: #{simpleconv3_forward.4} parent=0 // pred_check
    _
  $region11: #{simpleconv3_forward.4} parent=0 // pred_check_branch
    %13 = sbr.rel (0) target = $region13
  $region12: #{simpleconv3_forward.4} parent=0 // pred_region
    _
  $region13: #{simpleconv3_forward.4} parent=0 // pred_fallthru
    _
  %v15 = vld [vmem:[%s0] sm:$0xf]
  %v16 = vld [vmem:[%s0 + $0x4] sm:$0xf]
  %v17 = vld [vmem:[%s0 + $0x8] sm:$0xf]
  %v18 = vld [vmem:[%s0 + $0xc] sm:$0xf]
  %v19 = vld [vmem:[%s0 + $0x10] sm:$0xf]
  %v20 = vld [vmem:[%s0 + $0x14] sm:$0xf]
  %v21 = vld [vmem:[%s0 + $0x18] sm:$0xf]
  %v22 = vld [vmem:[%s0 + $0x1c] sm:$0xf]
  %v23 = vld [vmem:[%s0 + $0x20] sm:$0xf]
  %v24 = vld [vmem:[%s0 + $0x24] sm:$0xf]
  %v25 = vld [vmem:[%s0 + $0x28] sm:$0xf]
  %v26 = vld [vmem:[%s0 + $0x2c] sm:$0xf]
  %v27 = vld [vmem:[%s0 + $0x30] sm:$0xf]
  %v28 = vld [vmem:[%s0 + $0x34] sm:$0xf]
  %v29 = vld [vmem:[%s0 + $0x38] sm:$0xf]
  %v30 = vld [vmem:[%s0 + $0x3c] sm:$0xf]
  %v31 = vld [vmem:[%s0 + $0x40] sm:$0xf]
  %v32 = vld [vmem:[%s0 + $0x44] sm:$0xf]
  %v33 = vld [vmem:[%s0 + $0x48] sm:$0xf]
  %v34 = vld [vmem:[%s0 + $0x4c] sm:$0xf]
  %v35 = vld [vmem:[%s0 + $0x50] sm:$0xf]
  %v36 = vld [vmem:[%s0 + $0x54] sm:$0xf]
  %v37 = vld [vmem:[%s0 + $0x58] sm:$0xf]
  %v38 = vld [vmem:[%s0 + $0x5c] sm:$0xf]
  %v39 = vld [vmem:[%s0 + $0x60] sm:$0xf]
  %v40 = vld [vmem:[%s0 + $0x64] sm:$0xf]
  %v41 = vld [vmem:[%s0 + $0x68] sm:$0xf]
  %v42 = vld [vmem:[%s0 + $0x6c] sm:$0xf]
  %v43 = vld [vmem:[%s0 + $0x70] sm:$0xf]
  %v44 = vld [vmem:[%s0 + $0x74] sm:$0xf]
  %v45 = vld [vmem:[%s0 + $0x78] sm:$0xf]
  %v46 = vld [vmem:[%s0 + $0x7c] sm:$0xf]
  %v47 = vld [vmem:[%s0 + $0x80] sm:$0xf]
  %v48 = vld [vmem:[%s0 + $0x84] sm:$0xf]
  %v49 = vld [vmem:[%s0 + $0x88] sm:$0xf]
  %v50 = vld [vmem:[%s0 + $0x8c] sm:$0xf]
  %v51 = vld [vmem:[%s0 + $0x90] sm:$0xf]
  %v52 = vld [vmem:[%s0 + $0x94] sm:$0xf]
  %v53 = vld [vmem:[%s0 + $0x98] sm:$0xf]
  %v54 = vld [vmem:[%s0 + $0x9c] sm:$0xf]
  %v55 = vld [vmem:[%s0 + $0xa0] sm:$0xf]
  %v56 = vld [vmem:[%s0 + $0xa4] sm:$0xf]
  %v57 = vld [vmem:[%s0 + $0xa8] sm:$0xf]
  %v58 = vld [vmem:[%s0 + $0xac] sm:$0xf]
  %v59 = vld [vmem:[%s0 + $0xb0] sm:$0xf]
  %v60 = vld [vmem:[%s0 + $0xb4] sm:$0xf]
  %v61 = vld [vmem:[%s0 + $0xb8] sm:$0xf]
  %v62 = vld [vmem:[%s0 + $0xbc] sm:$0xf]
  %v63 = vld [vmem:[%s0 + $0xc0] sm:$0xf]
  %v64 = vld [vmem:[%s0 + $0xc4] sm:$0xf]
  %v65 = vld [vmem:[%s0 + $0xc8] sm:$0xf]
  %v66 = vld [vmem:[%s0 + $0xcc] sm:$0xf]
  %v67 = vld [vmem:[%s0 + $0xd0] sm:$0xf]
  %v68 = vld [vmem:[%s0 + $0xd4] sm:$0xf]
  %v69 = vld [vmem:[%s0 + $0xd8] sm:$0xf]
  %v70 = vld [vmem:[%s0 + $0xdc] sm:$0xf]
  %v71 = vld [vmem:[%s0 + $0xe0] sm:$0xf]
  %v72 = vld [vmem:[%s0 + $0xe4] sm:$0xf]
  %v73 = vld [vmem:[%s0 + $0xe8] sm:$0xf]
  %v74 = vld [vmem:[%s0 + $0xec] sm:$0xf]
  %v75 = vld [vmem:[%s0 + $0xf0] sm:$0xf]
  %v76 = vld [vmem:[%s0 + $0xf4] sm:$0xf]
  %v77 = vld [vmem:[%s0 + $0xf8] sm:$0xf]
  %v78 = vld [vmem:[%s0 + $0xfc] sm:$0xf]
  %v79 = vld [vmem:[%s0 + $0x100] sm:$0xf]
  %v80 = vld [vmem:[%s0 + $0x104] sm:$0xf]
  %v81 = vld [vmem:[%s0 + $0x108] sm:$0xf]
  %v82 = vld [vmem:[%s0 + $0x10c] sm:$0xf]
  %v83 = vld [vmem:[%s0 + $0x110] sm:$0xf]
  %v84 = vld [vmem:[%s0 + $0x114] sm:$0xf]
  %v85 = vld [vmem:[%s0 + $0x118] sm:$0xf]
  %v86 = vld [vmem:[%s0 + $0x11c] sm:$0xf]
  %v87 = vld [vmem:[%s0 + $0x120] sm:$0xf]
  %v88 = vld [vmem:[%s0 + $0x124] sm:$0xf]
  %v89 = vld [vmem:[%s0 + $0x128] sm:$0xf]
  %v90 = vld [vmem:[%s0 + $0x12c] sm:$0xf]
  %v91 = vld [vmem:[%s0 + $0x130] sm:$0xf]
  %v92 = vld [vmem:[%s0 + $0x134] sm:$0xf]
  %v93 = vld [vmem:[%s0 + $0x138] sm:$0xf]
  %v94 = vld [vmem:[%s0 + $0x13c] sm:$0xf]
  %v95 = vld [vmem:[%s0 + $0x140] sm:$0xf]
  %v96 = vld [vmem:[%s0 + $0x144] sm:$0xf]
  %v97 = vld [vmem:[%s0 + $0x148] sm:$0xf]
  %v98 = vld [vmem:[%s0 + $0x14c] sm:$0xf]
  %v99 = vld [vmem:[%s0 + $0x150] sm:$0xf]
  %v100 = vld [vmem:[%s0 + $0x154] sm:$0xf]
  %v101 = vld [vmem:[%s0 + $0x158] sm:$0xf]
  %v102 = vld [vmem:[%s0 + $0x15c] sm:$0xf]
  %v103 = vld [vmem:[%s0 + $0x160] sm:$0xf]
  %v104 = vld [vmem:[%s0 + $0x164] sm:$0xf]
  %v105 = vld [vmem:[%s0 + $0x168] sm:$0xf]
  %v106 = vld [vmem:[%s0 + $0x16c] sm:$0xf]
  %v107 = vld [vmem:[%s0 + $0x170] sm:$0xf]
  %v108 = vld [vmem:[%s0 + $0x174] sm:$0xf]
  %v109 = vld [vmem:[%s0 + $0x178] sm:$0xf]
  %v110 = vld [vmem:[%s0 + $0x17c] sm:$0xf]
  %v111 = vld [vmem:[%s0 + $0x180] sm:$0xf]
  %v112 = vld [vmem:[%s0 + $0x184] sm:$0xf]
  %v113 = vld [vmem:[%s0 + $0x188] sm:$0xf]
  %v114 = vld [vmem:[%s0 + $0x18c] sm:$0xf]
  %v115 = vld [vmem:[%s0 + $0x190] sm:$0xf]
  %v116 = vld [vmem:[%s0 + $0x194] sm:$0xf]
  %v117 = vld [vmem:[%s0 + $0x198] sm:$0xf]
  %v118 = vld [vmem:[%s0 + $0x19c] sm:$0xf]
  %v119 = vld [vmem:[%s0 + $0x1a0] sm:$0xf]
  %v120 = vld [vmem:[%s0 + $0x1a4] sm:$0xf]
  %v121 = vld [vmem:[%s0 + $0x1a8] sm:$0xf]
  %v122 = vld [vmem:[%s0 + $0x1ac] sm:$0xf]
  %v123 = vld [vmem:[%s0 + $0x1b0] sm:$0xf]
  %v124 = vld [vmem:[%s0 + $0x1b4] sm:$0xf]
  %v125 = vld [vmem:[%s0 + $0x1b8] sm:$0xf]
  %v126 = vld [vmem:[%s0 + $0x1bc] sm:$0xf]
  %v127 = vld [vmem:[%s0 + $0x1c0] sm:$0xf]
  %v128 = vld [vmem:[%s0 + $0x1c4] sm:$0xf]
  %v129 = vld [vmem:[%s0 + $0x1c8] sm:$0xf]
  %v130 = vld [vmem:[%s0 + $0x1cc] sm:$0xf]
  %v131 = vld [vmem:[%s0 + $0x1d0] sm:$0xf]
  %v132 = vld [vmem:[%s0 + $0x1d4] sm:$0xf]
  %v133 = vld [vmem:[%s0 + $0x1d8] sm:$0xf]
  %v134 = vld [vmem:[%s0 + $0x1dc] sm:$0xf]
  %v135 = vld [vmem:[%s0 + $0x1e0] sm:$0xf]
  %v136 = vld [vmem:[%s0 + $0x1e4] sm:$0xf]
  %v137 = vld [vmem:[%s0 + $0x1e8] sm:$0xf]
  %v138 = vld [vmem:[%s0 + $0x1ec] sm:$0xf]
  %v139 = vld [vmem:[%s0 + $0x1f0] sm:$0xf]
  %v140 = vld [vmem:[%s0 + $0x1f4] sm:$0xf]
  %v141 = vld [vmem:[%s0 + $0x1f8] sm:$0xf]
  %v142 = vld [vmem:[%s0 + $0x1fc] sm:$0xf]
  %v143 = vld [vmem:[%s0 + $0x200] sm:$0xf]
  %v144 = vld [vmem:[%s0 + $0x204] sm:$0xf]
  %v145 = vld [vmem:[%s0 + $0x208] sm:$0xf]
  %v146 = vld [vmem:[%s0 + $0x20c] sm:$0xf]
  %v147 = vld [vmem:[%s0 + $0x210] sm:$0xf]
  %v148 = vld [vmem:[%s0 + $0x214] sm:$0xf]
  %v149 = vld [vmem:[%s0 + $0x218] sm:$0xf]
  %v150 = vld [vmem:[%s0 + $0x21c] sm:$0xf]
  %v151 = vld [vmem:[%s0 + $0x220] sm:$0xf]
  %v152 = vld [vmem:[%s0 + $0x224] sm:$0xf]
  %v153 = vld [vmem:[%s0 + $0x228] sm:$0xf]
  %v154 = vld [vmem:[%s0 + $0x22c] sm:$0xf]
  %v155 = vld [vmem:[%s0 + $0x230] sm:$0xf]
  %v156 = vld [vmem:[%s0 + $0x234] sm:$0xf]
  %v157 = vld [vmem:[%s0 + $0x238] sm:$0xf]
  %v158 = vld [vmem:[%s0 + $0x23c] sm:$0xf]
  %v159 = vld [vmem:[%s1] sm:$0xf]
  %v160 = vld [vmem:[%s1 + $0x4] sm:$0xf]
  %v161 = vld [vmem:[%s1 + $0x8] sm:$0xf]
  %v162 = vld [vmem:[%s1 + $0xc] sm:$0x3]
  %v163 = vld [vmem:[%s2] sm:$0x1]
  %v165 = vlaneseq
  %v166 = vshrl.u32 %v165, 7
  %v167 = vsub.s32 0, %v166
  %v168 = vrot.slane %v163, %v167
  %v314 = vunpack.c.l.b16 %v15
  %v315 = vunpack.c.l.b16 %v16
  %v316 = vunpack.c.l.b16 %v17
  %v317 = vunpack.c.l.b16 %v18
  %v318 = vunpack.c.l.b16 %v19
  %v319 = vunpack.c.l.b16 %v20
  %v320 = vunpack.c.l.b16 %v21
  %v321 = vunpack.c.l.b16 %v22
  %v322 = vunpack.c.l.b16 %v23
  %v323 = vunpack.c.l.b16 %v24
  %v324 = vunpack.c.l.b16 %v25
  %v325 = vunpack.c.l.b16 %v26
  %v326 = vunpack.c.l.b16 %v27
  %v327 = vunpack.c.l.b16 %v28
  %v328 = vunpack.c.l.b16 %v29
  %v329 = vunpack.c.l.b16 %v30
  %v330 = vunpack.c.l.b16 %v31
  %v331 = vunpack.c.l.b16 %v32
  %v332 = vunpack.c.l.b16 %v33
  %v333 = vunpack.c.l.b16 %v34
  %v334 = vunpack.c.l.b16 %v35
  %v335 = vunpack.c.l.b16 %v36
  %v336 = vunpack.c.l.b16 %v37
  %v337 = vunpack.c.l.b16 %v38
  %v338 = vunpack.c.l.b16 %v39
  %v339 = vunpack.c.l.b16 %v40
  %v340 = vunpack.c.l.b16 %v41
  %v341 = vunpack.c.l.b16 %v42
  %v342 = vunpack.c.l.b16 %v43
  %v343 = vunpack.c.l.b16 %v44
  %v344 = vunpack.c.l.b16 %v45
  %v345 = vunpack.c.l.b16 %v46
  %v346 = vunpack.c.l.b16 %v47
  %v347 = vunpack.c.l.b16 %v48
  %v348 = vunpack.c.l.b16 %v49
  %v349 = vunpack.c.l.b16 %v50
  %v350 = vunpack.c.l.b16 %v51
  %v351 = vunpack.c.l.b16 %v52
  %v352 = vunpack.c.l.b16 %v53
  %v353 = vunpack.c.l.b16 %v54
  %v354 = vunpack.c.l.b16 %v55
  %v355 = vunpack.c.l.b16 %v56
  %v356 = vunpack.c.l.b16 %v57
  %v357 = vunpack.c.l.b16 %v58
  %v358 = vunpack.c.l.b16 %v59
  %v359 = vunpack.c.l.b16 %v60
  %v360 = vunpack.c.l.b16 %v61
  %v361 = vunpack.c.l.b16 %v62
  %v362 = vunpack.c.l.b16 %v63
  %v363 = vunpack.c.l.b16 %v64
  %v364 = vunpack.c.l.b16 %v65
  %v365 = vunpack.c.l.b16 %v66
  %v366 = vunpack.c.l.b16 %v67
  %v367 = vunpack.c.l.b16 %v68
  %v368 = vunpack.c.l.b16 %v69
  %v369 = vunpack.c.l.b16 %v70
  %v370 = vunpack.c.l.b16 %v71
  %v371 = vunpack.c.l.b16 %v72
  %v372 = vunpack.c.l.b16 %v73
  %v373 = vunpack.c.l.b16 %v74
  %v374 = vunpack.c.l.b16 %v75
  %v375 = vunpack.c.l.b16 %v76
  %v376 = vunpack.c.l.b16 %v77
  %v377 = vunpack.c.l.b16 %v78
  %v378 = vunpack.c.l.b16 %v79
  %v379 = vunpack.c.l.b16 %v80
  %v380 = vunpack.c.l.b16 %v81
  %v381 = vunpack.c.l.b16 %v82
  %v382 = vunpack.c.l.b16 %v83
  %v383 = vunpack.c.l.b16 %v84
  %v384 = vunpack.c.l.b16 %v85
  %v385 = vunpack.c.l.b16 %v86
  %v386 = vunpack.c.l.b16 %v87
  %v387 = vunpack.c.l.b16 %v88
  %v388 = vunpack.c.l.b16 %v89
  %v389 = vunpack.c.l.b16 %v90
  %v390 = vunpack.c.l.b16 %v91
  %v391 = vunpack.c.l.b16 %v92
  %v392 = vunpack.c.l.b16 %v93
  %v393 = vunpack.c.l.b16 %v94
  %v394 = vunpack.c.l.b16 %v95
  %v395 = vunpack.c.l.b16 %v96
  %v396 = vunpack.c.l.b16 %v97
  %v397 = vunpack.c.l.b16 %v98
  %v398 = vunpack.c.l.b16 %v99
  %v399 = vunpack.c.l.b16 %v100
  %v400 = vunpack.c.l.b16 %v101
  %v401 = vunpack.c.l.b16 %v102
  %v402 = vunpack.c.l.b16 %v103
  %v403 = vunpack.c.l.b16 %v104
  %v404 = vunpack.c.l.b16 %v105
  %v405 = vunpack.c.l.b16 %v106
  %v406 = vunpack.c.l.b16 %v107
  %v407 = vunpack.c.l.b16 %v108
  %v408 = vunpack.c.l.b16 %v109
  %v409 = vunpack.c.l.b16 %v110
  %v410 = vunpack.c.l.b16 %v111
  %v411 = vunpack.c.l.b16 %v112
  %v412 = vunpack.c.l.b16 %v113
  %v413 = vunpack.c.l.b16 %v114
  %v414 = vunpack.c.l.b16 %v115
  %v415 = vunpack.c.l.b16 %v116
  %v416 = vunpack.c.l.b16 %v117
  %v417 = vunpack.c.l.b16 %v118
  %v418 = vunpack.c.l.b16 %v119
  %v419 = vunpack.c.l.b16 %v120
  %v420 = vunpack.c.l.b16 %v121
  %v421 = vunpack.c.l.b16 %v122
  %v422 = vunpack.c.l.b16 %v123
  %v423 = vunpack.c.l.b16 %v124
  %v424 = vunpack.c.l.b16 %v125
  %v425 = vunpack.c.l.b16 %v126
  %v426 = vunpack.c.l.b16 %v127
  %v427 = vunpack.c.l.b16 %v128
  %v428 = vunpack.c.l.b16 %v129
  %v429 = vunpack.c.l.b16 %v130
  %v430 = vunpack.c.l.b16 %v131
  %v431 = vunpack.c.l.b16 %v132
  %v432 = vunpack.c.l.b16 %v133
  %v433 = vunpack.c.l.b16 %v134
  %v434 = vunpack.c.l.b16 %v135
  %v435 = vunpack.c.l.b16 %v136
  %v436 = vunpack.c.l.b16 %v137
  %v437 = vunpack.c.l.b16 %v138
  %v438 = vunpack.c.l.b16 %v139
  %v439 = vunpack.c.l.b16 %v140
  %v440 = vunpack.c.l.b16 %v141
  %v441 = vunpack.c.l.b16 %v142
  %v442 = vunpack.c.l.b16 %v143
  %v443 = vunpack.c.l.b16 %v144
  %v444 = vunpack.c.l.b16 %v145
  %v445 = vunpack.c.l.b16 %v146
  %v446 = vunpack.c.l.b16 %v147
  %v447 = vunpack.c.l.b16 %v148
  %v448 = vunpack.c.l.b16 %v149
  %v449 = vunpack.c.l.b16 %v150
  %v450 = vunpack.c.l.b16 %v151
  %v451 = vunpack.c.l.b16 %v152
  %v452 = vunpack.c.l.b16 %v153
  %v453 = vunpack.c.l.b16 %v154
  %v454 = vunpack.c.l.b16 %v155
  %v455 = vunpack.c.l.b16 %v156
  %v456 = vunpack.c.l.b16 %v157
  %v457 = vunpack.c.l.b16 %v158
  %v458 = vpack.c.b16 %v315, %v314
  %v459 = vpack.c.b16 %v317, %v316
  %v460 = vpack.c.b16 %v319, %v318
  %v461 = vpack.c.b16 %v321, %v320
  %v462 = vpack.c.b16 %v323, %v322
  %v463 = vpack.c.b16 %v325, %v324
  %v464 = vpack.c.b16 %v327, %v326
  %v465 = vpack.c.b16 %v329, %v328
  %v466 = vpack.c.b16 %v331, %v330
  %v467 = vpack.c.b16 %v333, %v332
  %v468 = vpack.c.b16 %v335, %v334
  %v469 = vpack.c.b16 %v337, %v336
  %v470 = vpack.c.b16 %v339, %v338
  %v471 = vpack.c.b16 %v341, %v340
  %v472 = vpack.c.b16 %v343, %v342
  %v473 = vpack.c.b16 %v345, %v344
  %v474 = vpack.c.b16 %v347, %v346
  %v475 = vpack.c.b16 %v349, %v348
  %v476 = vpack.c.b16 %v351, %v350
  %v477 = vpack.c.b16 %v353, %v352
  %v478 = vpack.c.b16 %v355, %v354
  %v479 = vpack.c.b16 %v357, %v356
  %v480 = vpack.c.b16 %v359, %v358
  %v481 = vpack.c.b16 %v361, %v360
  %v482 = vpack.c.b16 %v363, %v362
  %v483 = vpack.c.b16 %v365, %v364
  %v484 = vpack.c.b16 %v367, %v366
  %v485 = vpack.c.b16 %v369, %v368
  %v486 = vpack.c.b16 %v371, %v370
  %v487 = vpack.c.b16 %v373, %v372
  %v488 = vpack.c.b16 %v375, %v374
  %v489 = vpack.c.b16 %v377, %v376
  %v490 = vpack.c.b16 %v379, %v378
  %v491 = vpack.c.b16 %v381, %v380
  %v492 = vpack.c.b16 %v383, %v382
  %v493 = vpack.c.b16 %v385, %v384
  %v494 = vpack.c.b16 %v387, %v386
  %v495 = vpack.c.b16 %v389, %v388
  %v496 = vpack.c.b16 %v391, %v390
  %v497 = vpack.c.b16 %v393, %v392
  %v498 = vpack.c.b16 %v395, %v394
  %v499 = vpack.c.b16 %v397, %v396
  %v500 = vpack.c.b16 %v399, %v398
  %v501 = vpack.c.b16 %v401, %v400
  %v502 = vpack.c.b16 %v403, %v402
  %v503 = vpack.c.b16 %v405, %v404
  %v504 = vpack.c.b16 %v407, %v406
  %v505 = vpack.c.b16 %v409, %v408
  %v506 = vpack.c.b16 %v411, %v410
  %v507 = vpack.c.b16 %v413, %v412
  %v508 = vpack.c.b16 %v415, %v414
  %v509 = vpack.c.b16 %v417, %v416
  %v510 = vpack.c.b16 %v419, %v418
  %v511 = vpack.c.b16 %v421, %v420
  %v512 = vpack.c.b16 %v423, %v422
  %v513 = vpack.c.b16 %v425, %v424
  %v514 = vpack.c.b16 %v427, %v426
  %v515 = vpack.c.b16 %v429, %v428
  %v516 = vpack.c.b16 %v431, %v430
  %v517 = vpack.c.b16 %v433, %v432
  %v518 = vpack.c.b16 %v435, %v434
  %v519 = vpack.c.b16 %v437, %v436
  %v520 = vpack.c.b16 %v439, %v438
  %v521 = vpack.c.b16 %v441, %v440
  %v522 = vpack.c.b16 %v443, %v442
  %v523 = vpack.c.b16 %v445, %v444
  %v524 = vpack.c.b16 %v447, %v446
  %v525 = vpack.c.b16 %v449, %v448
  %v526 = vpack.c.b16 %v451, %v450
  %v527 = vpack.c.b16 %v453, %v452
  %v528 = vpack.c.b16 %v455, %v454
  %v529 = vpack.c.b16 %v457, %v456
  %v534 = vunpack.c.l.b16 %v159
  %v535 = vunpack.c.l.b16 %v160
  %v536 = vunpack.c.l.b16 %v161
  %v537 = vunpack.c.l.b16 %v162
  %v538 = vpack.c.b16 %v535, %v534
  %v539 = vpack.c.b16 %v537, %v536
  %vm541 = vcmask 220160
  %v543 = vsel %vm541, %v458, 0
  %v546 = vsel %vm541, %v459, 0
  %v549 = vsel %vm541, %v460, 0
  %v552 = vsel %vm541, %v461, 0
  %v555 = vsel %vm541, %v462, 0
  %v558 = vsel %vm541, %v463, 0
  %v561 = vsel %vm541, %v464, 0
  %v564 = vsel %vm541, %v465, 0
  %v567 = vsel %vm541, %v466, 0
  %v570 = vsel %vm541, %v467, 0
  %v573 = vsel %vm541, %v468, 0
  %v576 = vsel %vm541, %v469, 0
  %v579 = vsel %vm541, %v470, 0
  %v582 = vsel %vm541, %v471, 0
  %v585 = vsel %vm541, %v472, 0
  %v588 = vsel %vm541, %v473, 0
  %v591 = vsel %vm541, %v474, 0
  %v594 = vsel %vm541, %v475, 0
  %v597 = vsel %vm541, %v476, 0
  %v600 = vsel %vm541, %v477, 0
  %v603 = vsel %vm541, %v478, 0
  %v606 = vsel %vm541, %v479, 0
  %v609 = vsel %vm541, %v480, 0
  %v612 = vsel %vm541, %v481, 0
  %v615 = vsel %vm541, %v482, 0
  %v618 = vsel %vm541, %v483, 0
  %v621 = vsel %vm541, %v484, 0
  %v624 = vsel %vm541, %v485, 0
  %v627 = vsel %vm541, %v486, 0
  %v630 = vsel %vm541, %v487, 0
  %v633 = vsel %vm541, %v488, 0
  %v636 = vsel %vm541, %v489, 0
  %v639 = vsel %vm541, %v490, 0
  %v642 = vsel %vm541, %v491, 0
  %v645 = vsel %vm541, %v492, 0
  %v648 = vsel %vm541, %v493, 0
  %v651 = vsel %vm541, %v494, 0
  %v654 = vsel %vm541, %v495, 0
  %v657 = vsel %vm541, %v496, 0
  %v660 = vsel %vm541, %v497, 0
  %v663 = vsel %vm541, %v498, 0
  %v666 = vsel %vm541, %v499, 0
  %v669 = vsel %vm541, %v500, 0
  %v672 = vsel %vm541, %v501, 0
  %v675 = vsel %vm541, %v502, 0
  %v678 = vsel %vm541, %v503, 0
  %v681 = vsel %vm541, %v504, 0
  %v684 = vsel %vm541, %v505, 0
  %v687 = vsel %vm541, %v506, 0
  %v690 = vsel %vm541, %v507, 0
  %v693 = vsel %vm541, %v508, 0
  %v696 = vsel %vm541, %v509, 0
  %v699 = vsel %vm541, %v510, 0
  %v702 = vsel %vm541, %v511, 0
  %v705 = vsel %vm541, %v512, 0
  %v708 = vsel %vm541, %v513, 0
  %v711 = vsel %vm541, %v514, 0
  %v714 = vsel %vm541, %v515, 0
  %v717 = vsel %vm541, %v516, 0
  %v720 = vsel %vm541, %v517, 0
  %v723 = vsel %vm541, %v518, 0
  %v726 = vsel %vm541, %v519, 0
  %v729 = vsel %vm541, %v520, 0
  %v732 = vsel %vm541, %v521, 0
  %v735 = vsel %vm541, %v522, 0
  %v738 = vsel %vm541, %v523, 0
  %v741 = vsel %vm541, %v524, 0
  %v744 = vsel %vm541, %v525, 0
  %v747 = vsel %vm541, %v526, 0
  %v750 = vsel %vm541, %v527, 0
  %v753 = vsel %vm541, %v528, 0
  %v756 = vsel %vm541, %v529, 0
  %vm758 = vcmask 1044480
  %vm759 = vcmask 1045504
  %v760 = vsel %vm758, 4294967295, 65535
  %v761 = vsel %vm759, %v760, 0
  %v763 = vand.u32 %v539, %v761
  %765 = vmatprep.subr.bf16.mxu0 0
  %766 = vmatpush1.bf16.msra.mxu0 0
  %767 = vmatprep.subr.bf16.mxu0 0
  %768 = vmatpush1.bf16.msra.mxu0 0
  %769 = vmatprep.subr.bf16.mxu0 0
  %770 = vmatpush1.bf16.msra.mxu0 0
  %771 = vmatprep.subr.bf16.mxu0 0
  %772 = vmatpush1.bf16.msra.mxu0 0
  %773 = vmatprep.subr.bf16.mxu0 0
  %774 = vmatpush1.bf16.msra.mxu0 0
  %775 = vmatprep.subr.bf16.mxu0 0
  %776 = vmatpush1.bf16.msra.mxu0 0
  %777 = vmatprep.subr.bf16.mxu0 0
  %778 = vmatpush1.bf16.msra.mxu0 %v763
  %779 = vmatprep.subr.bf16.mxu0 0
  %780 = vmatpush1.bf16.msra.mxu0 %v538
  %781 = vmatprep.subr.bf16.mxu0 0
  %782 = vmatpush2.bf16.msra.mxu0 0
  %783 = vmatprep.subr.bf16.mxu0 0
  %784 = vmatpush2.bf16.msra.mxu0 0
  %785 = vmatprep.subr.bf16.mxu0 0
  %786 = vmatpush2.bf16.msra.mxu0 0
  %787 = vmatprep.subr.bf16.mxu0 0
  %788 = vmatpush2.bf16.msra.mxu0 0
  %789 = vmatprep.subr.bf16.mxu0 0
  %790 = vmatpush2.bf16.msra.mxu0 0
  %791 = vmatprep.subr.bf16.mxu0 0
  %792 = vmatpush2.bf16.msra.mxu0 0
  %793 = vmatprep.subr.bf16.mxu0 0
  %794 = vmatpush2.bf16.msra.mxu0 0
  %795 = vmatprep.subr.bf16.mxu0 0
  %796 = vmatpush2.bf16.msra.mxu0 0
  %797 = vmatprep.mubr.bf16.mxu0 0
  %798 = vmatmul.mubr.bf16.gmra.mxu0 %v543
  %v799 = vpop.f32.mrf.mxu0
  %v800 = vadd.f32 %v168, %v799
  %v801 = vpop.f32.mrf.mxu0
  %v802 = vpop.f32.mrf.mxu0
  %v803 = vadd.f32 %v168, %v802
  %v804 = vpop.f32.mrf.mxu0
  %805 = vmatprep.mubr.bf16.mxu0 0
  %806 = vmatmul.mubr.bf16.gmra.mxu0 %v546
  %v807 = vpop.f32.mrf.mxu0
  %v808 = vadd.f32 %v168, %v807
  %v809 = vpop.f32.mrf.mxu0
  %v810 = vpop.f32.mrf.mxu0
  %v811 = vadd.f32 %v168, %v810
  %v812 = vpop.f32.mrf.mxu0
  %813 = vmatprep.mubr.bf16.mxu0 0
  %814 = vmatmul.mubr.bf16.gmra.mxu0 %v549
  %v815 = vpop.f32.mrf.mxu0
  %v816 = vadd.f32 %v168, %v815
  %v817 = vpop.f32.mrf.mxu0
  %v818 = vpop.f32.mrf.mxu0
  %v819 = vadd.f32 %v168, %v818
  %v820 = vpop.f32.mrf.mxu0
  %821 = vmatprep.mubr.bf16.mxu0 0
  %822 = vmatmul.mubr.bf16.gmra.mxu0 %v552
  %v823 = vpop.f32.mrf.mxu0
  %v824 = vadd.f32 %v168, %v823
  %v825 = vpop.f32.mrf.mxu0
  %v826 = vpop.f32.mrf.mxu0
  %v827 = vadd.f32 %v168, %v826
  %v828 = vpop.f32.mrf.mxu0
  %829 = vmatprep.mubr.bf16.mxu0 0
  %830 = vmatmul.mubr.bf16.gmra.mxu0 %v555
  %v831 = vpop.f32.mrf.mxu0
  %v832 = vadd.f32 %v168, %v831
  %v833 = vpop.f32.mrf.mxu0
  %v834 = vpop.f32.mrf.mxu0
  %v835 = vadd.f32 %v168, %v834
  %v836 = vpop.f32.mrf.mxu0
  %837 = vmatprep.mubr.bf16.mxu0 0
  %838 = vmatmul.mubr.bf16.gmra.mxu0 %v558
  %v839 = vpop.f32.mrf.mxu0
  %v840 = vadd.f32 %v168, %v839
  %v841 = vpop.f32.mrf.mxu0
  %v842 = vpop.f32.mrf.mxu0
  %v843 = vadd.f32 %v168, %v842
  %v844 = vpop.f32.mrf.mxu0
  %845 = vmatprep.mubr.bf16.mxu0 0
  %846 = vmatmul.mubr.bf16.gmra.mxu0 %v561
  %v847 = vpop.f32.mrf.mxu0
  %v848 = vadd.f32 %v168, %v847
  %v849 = vpop.f32.mrf.mxu0
  %v850 = vpop.f32.mrf.mxu0
  %v851 = vadd.f32 %v168, %v850
  %v852 = vpop.f32.mrf.mxu0
  %853 = vmatprep.mubr.bf16.mxu0 0
  %854 = vmatmul.mubr.bf16.gmra.mxu0 %v564
  %v855 = vpop.f32.mrf.mxu0
  %v856 = vadd.f32 %v168, %v855
  %v857 = vpop.f32.mrf.mxu0
  %v858 = vpop.f32.mrf.mxu0
  %v859 = vadd.f32 %v168, %v858
  %v860 = vpop.f32.mrf.mxu0
  %861 = vmatprep.mubr.bf16.mxu0 0
  %862 = vmatmul.mubr.bf16.gmra.mxu0 %v567
  %v863 = vpop.f32.mrf.mxu0
  %v864 = vadd.f32 %v168, %v863
  %v865 = vpop.f32.mrf.mxu0
  %v866 = vpop.f32.mrf.mxu0
  %v867 = vadd.f32 %v168, %v866
  %v868 = vpop.f32.mrf.mxu0
  %869 = vmatprep.mubr.bf16.mxu0 0
  %870 = vmatmul.mubr.bf16.gmra.mxu0 %v570
  %v871 = vpop.f32.mrf.mxu0
  %v872 = vadd.f32 %v168, %v871
  %v873 = vpop.f32.mrf.mxu0
  %v874 = vpop.f32.mrf.mxu0
  %v875 = vadd.f32 %v168, %v874
  %v876 = vpop.f32.mrf.mxu0
  %877 = vmatprep.mubr.bf16.mxu0 0
  %878 = vmatmul.mubr.bf16.gmra.mxu0 %v573
  %v879 = vpop.f32.mrf.mxu0
  %v880 = vadd.f32 %v168, %v879
  %v881 = vpop.f32.mrf.mxu0
  %v882 = vpop.f32.mrf.mxu0
  %v883 = vadd.f32 %v168, %v882
  %v884 = vpop.f32.mrf.mxu0
  %885 = vmatprep.mubr.bf16.mxu0 0
  %886 = vmatmul.mubr.bf16.gmra.mxu0 %v576
  %v887 = vpop.f32.mrf.mxu0
  %v888 = vadd.f32 %v168, %v887
  %v889 = vpop.f32.mrf.mxu0
  %v890 = vpop.f32.mrf.mxu0
  %v891 = vadd.f32 %v168, %v890
  %v892 = vpop.f32.mrf.mxu0
  %893 = vmatprep.mubr.bf16.mxu0 0
  %894 = vmatmul.mubr.bf16.gmra.mxu0 %v579
  %v895 = vpop.f32.mrf.mxu0
  %v896 = vadd.f32 %v168, %v895
  %v897 = vpop.f32.mrf.mxu0
  %v898 = vpop.f32.mrf.mxu0
  %v899 = vadd.f32 %v168, %v898
  %v900 = vpop.f32.mrf.mxu0
  %901 = vmatprep.mubr.bf16.mxu0 0
  %902 = vmatmul.mubr.bf16.gmra.mxu0 %v582
  %v903 = vpop.f32.mrf.mxu0
  %v904 = vadd.f32 %v168, %v903
  %v905 = vpop.f32.mrf.mxu0
  %v906 = vpop.f32.mrf.mxu0
  %v907 = vadd.f32 %v168, %v906
  %v908 = vpop.f32.mrf.mxu0
  %909 = vmatprep.mubr.bf16.mxu0 0
  %910 = vmatmul.mubr.bf16.gmra.mxu0 %v585
  %v911 = vpop.f32.mrf.mxu0
  %v912 = vadd.f32 %v168, %v911
  %v913 = vpop.f32.mrf.mxu0
  %v914 = vpop.f32.mrf.mxu0
  %v915 = vadd.f32 %v168, %v914
  %v916 = vpop.f32.mrf.mxu0
  %917 = vmatprep.mubr.bf16.mxu0 0
  %918 = vmatmul.mubr.bf16.gmra.mxu0 %v588
  %v919 = vpop.f32.mrf.mxu0
  %v920 = vadd.f32 %v168, %v919
  %v921 = vpop.f32.mrf.mxu0
  %v922 = vpop.f32.mrf.mxu0
  %v923 = vadd.f32 %v168, %v922
  %v924 = vpop.f32.mrf.mxu0
  %925 = vmatprep.mubr.bf16.mxu0 0
  %926 = vmatmul.mubr.bf16.gmra.mxu0 %v591
  %v927 = vpop.f32.mrf.mxu0
  %v928 = vadd.f32 %v168, %v927
  %v929 = vpop.f32.mrf.mxu0
  %v930 = vpop.f32.mrf.mxu0
  %v931 = vadd.f32 %v168, %v930
  %v932 = vpop.f32.mrf.mxu0
  %933 = vmatprep.mubr.bf16.mxu0 0
  %934 = vmatmul.mubr.bf16.gmra.mxu0 %v594
  %v935 = vpop.f32.mrf.mxu0
  %v936 = vadd.f32 %v168, %v935
  %v937 = vpop.f32.mrf.mxu0
  %v938 = vpop.f32.mrf.mxu0
  %v939 = vadd.f32 %v168, %v938
  %v940 = vpop.f32.mrf.mxu0
  %941 = vmatprep.mubr.bf16.mxu0 0
  %942 = vmatmul.mubr.bf16.gmra.mxu0 %v597
  %v943 = vpop.f32.mrf.mxu0
  %v944 = vadd.f32 %v168, %v943
  %v945 = vpop.f32.mrf.mxu0
  %v946 = vpop.f32.mrf.mxu0
  %v947 = vadd.f32 %v168, %v946
  %v948 = vpop.f32.mrf.mxu0
  %949 = vmatprep.mubr.bf16.mxu0 0
  %950 = vmatmul.mubr.bf16.gmra.mxu0 %v600
  %v951 = vpop.f32.mrf.mxu0
  %v952 = vadd.f32 %v168, %v951
  %v953 = vpop.f32.mrf.mxu0
  %v954 = vpop.f32.mrf.mxu0
  %v955 = vadd.f32 %v168, %v954
  %v956 = vpop.f32.mrf.mxu0
  %957 = vmatprep.mubr.bf16.mxu0 0
  %958 = vmatmul.mubr.bf16.gmra.mxu0 %v603
  %v959 = vpop.f32.mrf.mxu0
  %v960 = vadd.f32 %v168, %v959
  %v961 = vpop.f32.mrf.mxu0
  %v962 = vpop.f32.mrf.mxu0
  %v963 = vadd.f32 %v168, %v962
  %v964 = vpop.f32.mrf.mxu0
  %965 = vmatprep.mubr.bf16.mxu0 0
  %966 = vmatmul.mubr.bf16.gmra.mxu0 %v606
  %v967 = vpop.f32.mrf.mxu0
  %v968 = vadd.f32 %v168, %v967
  %v969 = vpop.f32.mrf.mxu0
  %v970 = vpop.f32.mrf.mxu0
  %v971 = vadd.f32 %v168, %v970
  %v972 = vpop.f32.mrf.mxu0
  %973 = vmatprep.mubr.bf16.mxu0 0
  %974 = vmatmul.mubr.bf16.gmra.mxu0 %v609
  %v975 = vpop.f32.mrf.mxu0
  %v976 = vadd.f32 %v168, %v975
  %v977 = vpop.f32.mrf.mxu0
  %v978 = vpop.f32.mrf.mxu0
  %v979 = vadd.f32 %v168, %v978
  %v980 = vpop.f32.mrf.mxu0
  %981 = vmatprep.mubr.bf16.mxu0 0
  %982 = vmatmul.mubr.bf16.gmra.mxu0 %v612
  %v983 = vpop.f32.mrf.mxu0
  %v984 = vadd.f32 %v168, %v983
  %v985 = vpop.f32.mrf.mxu0
  %v986 = vpop.f32.mrf.mxu0
  %v987 = vadd.f32 %v168, %v986
  %v988 = vpop.f32.mrf.mxu0
  %989 = vmatprep.mubr.bf16.mxu0 0
  %990 = vmatmul.mubr.bf16.gmra.mxu0 %v615
  %v991 = vpop.f32.mrf.mxu0
  %v992 = vadd.f32 %v168, %v991
  %v993 = vpop.f32.mrf.mxu0
  %v994 = vpop.f32.mrf.mxu0
  %v995 = vadd.f32 %v168, %v994
  %v996 = vpop.f32.mrf.mxu0
  %997 = vmatprep.mubr.bf16.mxu0 0
  %998 = vmatmul.mubr.bf16.gmra.mxu0 %v618
  %v999 = vpop.f32.mrf.mxu0
  %v1000 = vadd.f32 %v168, %v999
  %v1001 = vpop.f32.mrf.mxu0
  %v1002 = vpop.f32.mrf.mxu0
  %v1003 = vadd.f32 %v168, %v1002
  %v1004 = vpop.f32.mrf.mxu0
  %1005 = vmatprep.mubr.bf16.mxu0 0
  %1006 = vmatmul.mubr.bf16.gmra.mxu0 %v621
  %v1007 = vpop.f32.mrf.mxu0
  %v1008 = vadd.f32 %v168, %v1007
  %v1009 = vpop.f32.mrf.mxu0
  %v1010 = vpop.f32.mrf.mxu0
  %v1011 = vadd.f32 %v168, %v1010
  %v1012 = vpop.f32.mrf.mxu0
  %1013 = vmatprep.mubr.bf16.mxu0 0
  %1014 = vmatmul.mubr.bf16.gmra.mxu0 %v624
  %v1015 = vpop.f32.mrf.mxu0
  %v1016 = vadd.f32 %v168, %v1015
  %v1017 = vpop.f32.mrf.mxu0
  %v1018 = vpop.f32.mrf.mxu0
  %v1019 = vadd.f32 %v168, %v1018
  %v1020 = vpop.f32.mrf.mxu0
  %1021 = vmatprep.mubr.bf16.mxu0 0
  %1022 = vmatmul.mubr.bf16.gmra.mxu0 %v627
  %v1023 = vpop.f32.mrf.mxu0
  %v1024 = vadd.f32 %v168, %v1023
  %v1025 = vpop.f32.mrf.mxu0
  %v1026 = vpop.f32.mrf.mxu0
  %v1027 = vadd.f32 %v168, %v1026
  %v1028 = vpop.f32.mrf.mxu0
  %1029 = vmatprep.mubr.bf16.mxu0 0
  %1030 = vmatmul.mubr.bf16.gmra.mxu0 %v630
  %v1031 = vpop.f32.mrf.mxu0
  %v1032 = vadd.f32 %v168, %v1031
  %v1033 = vpop.f32.mrf.mxu0
  %v1034 = vpop.f32.mrf.mxu0
  %v1035 = vadd.f32 %v168, %v1034
  %v1036 = vpop.f32.mrf.mxu0
  %1037 = vmatprep.mubr.bf16.mxu0 0
  %1038 = vmatmul.mubr.bf16.gmra.mxu0 %v633
  %v1039 = vpop.f32.mrf.mxu0
  %v1040 = vadd.f32 %v168, %v1039
  %v1041 = vpop.f32.mrf.mxu0
  %v1042 = vpop.f32.mrf.mxu0
  %v1043 = vadd.f32 %v168, %v1042
  %v1044 = vpop.f32.mrf.mxu0
  %1045 = vmatprep.mubr.bf16.mxu0 0
  %1046 = vmatmul.mubr.bf16.gmra.mxu0 %v636
  %v1047 = vpop.f32.mrf.mxu0
  %v1048 = vadd.f32 %v168, %v1047
  %v1049 = vpop.f32.mrf.mxu0
  %v1050 = vpop.f32.mrf.mxu0
  %v1051 = vadd.f32 %v168, %v1050
  %v1052 = vpop.f32.mrf.mxu0
  %1053 = vmatprep.mubr.bf16.mxu0 0
  %1054 = vmatmul.mubr.bf16.gmra.mxu0 %v639
  %v1055 = vpop.f32.mrf.mxu0
  %v1056 = vadd.f32 %v168, %v1055
  %v1057 = vpop.f32.mrf.mxu0
  %v1058 = vpop.f32.mrf.mxu0
  %v1059 = vadd.f32 %v168, %v1058
  %v1060 = vpop.f32.mrf.mxu0
  %1061 = vmatprep.mubr.bf16.mxu0 0
  %1062 = vmatmul.mubr.bf16.gmra.mxu0 %v642
  %v1063 = vpop.f32.mrf.mxu0
  %v1064 = vadd.f32 %v168, %v1063
  %v1065 = vpop.f32.mrf.mxu0
  %v1066 = vpop.f32.mrf.mxu0
  %v1067 = vadd.f32 %v168, %v1066
  %v1068 = vpop.f32.mrf.mxu0
  %1069 = vmatprep.mubr.bf16.mxu0 0
  %1070 = vmatmul.mubr.bf16.gmra.mxu0 %v645
  %v1071 = vpop.f32.mrf.mxu0
  %v1072 = vadd.f32 %v168, %v1071
  %v1073 = vpop.f32.mrf.mxu0
  %v1074 = vpop.f32.mrf.mxu0
  %v1075 = vadd.f32 %v168, %v1074
  %v1076 = vpop.f32.mrf.mxu0
  %1077 = vmatprep.mubr.bf16.mxu0 0
  %1078 = vmatmul.mubr.bf16.gmra.mxu0 %v648
  %v1079 = vpop.f32.mrf.mxu0
  %v1080 = vadd.f32 %v168, %v1079
  %v1081 = vpop.f32.mrf.mxu0
  %v1082 = vpop.f32.mrf.mxu0
  %v1083 = vadd.f32 %v168, %v1082
  %v1084 = vpop.f32.mrf.mxu0
  %1085 = vmatprep.mubr.bf16.mxu0 0
  %1086 = vmatmul.mubr.bf16.gmra.mxu0 %v651
  %v1087 = vpop.f32.mrf.mxu0
  %v1088 = vadd.f32 %v168, %v1087
  %v1089 = vpop.f32.mrf.mxu0
  %v1090 = vpop.f32.mrf.mxu0
  %v1091 = vadd.f32 %v168, %v1090
  %v1092 = vpop.f32.mrf.mxu0
  %1093 = vmatprep.mubr.bf16.mxu0 0
  %1094 = vmatmul.mubr.bf16.gmra.mxu0 %v654
  %v1095 = vpop.f32.mrf.mxu0
  %v1096 = vadd.f32 %v168, %v1095
  %v1097 = vpop.f32.mrf.mxu0
  %v1098 = vpop.f32.mrf.mxu0
  %v1099 = vadd.f32 %v168, %v1098
  %v1100 = vpop.f32.mrf.mxu0
  %1101 = vmatprep.mubr.bf16.mxu0 0
  %1102 = vmatmul.mubr.bf16.gmra.mxu0 %v657
  %v1103 = vpop.f32.mrf.mxu0
  %v1104 = vadd.f32 %v168, %v1103
  %v1105 = vpop.f32.mrf.mxu0
  %v1106 = vpop.f32.mrf.mxu0
  %v1107 = vadd.f32 %v168, %v1106
  %v1108 = vpop.f32.mrf.mxu0
  %1109 = vmatprep.mubr.bf16.mxu0 0
  %1110 = vmatmul.mubr.bf16.gmra.mxu0 %v660
  %v1111 = vpop.f32.mrf.mxu0
  %v1112 = vadd.f32 %v168, %v1111
  %v1113 = vpop.f32.mrf.mxu0
  %v1114 = vpop.f32.mrf.mxu0
  %v1115 = vadd.f32 %v168, %v1114
  %v1116 = vpop.f32.mrf.mxu0
  %1117 = vmatprep.mubr.bf16.mxu0 0
  %1118 = vmatmul.mubr.bf16.gmra.mxu0 %v663
  %v1119 = vpop.f32.mrf.mxu0
  %v1120 = vadd.f32 %v168, %v1119
  %v1121 = vpop.f32.mrf.mxu0
  %v1122 = vpop.f32.mrf.mxu0
  %v1123 = vadd.f32 %v168, %v1122
  %v1124 = vpop.f32.mrf.mxu0
  %1125 = vmatprep.mubr.bf16.mxu0 0
  %1126 = vmatmul.mubr.bf16.gmra.mxu0 %v666
  %v1127 = vpop.f32.mrf.mxu0
  %v1128 = vadd.f32 %v168, %v1127
  %v1129 = vpop.f32.mrf.mxu0
  %v1130 = vpop.f32.mrf.mxu0
  %v1131 = vadd.f32 %v168, %v1130
  %v1132 = vpop.f32.mrf.mxu0
  %1133 = vmatprep.mubr.bf16.mxu0 0
  %1134 = vmatmul.mubr.bf16.gmra.mxu0 %v669
  %v1135 = vpop.f32.mrf.mxu0
  %v1136 = vadd.f32 %v168, %v1135
  %v1137 = vpop.f32.mrf.mxu0
  %v1138 = vpop.f32.mrf.mxu0
  %v1139 = vadd.f32 %v168, %v1138
  %v1140 = vpop.f32.mrf.mxu0
  %1141 = vmatprep.mubr.bf16.mxu0 0
  %1142 = vmatmul.mubr.bf16.gmra.mxu0 %v672
  %v1143 = vpop.f32.mrf.mxu0
  %v1144 = vadd.f32 %v168, %v1143
  %v1145 = vpop.f32.mrf.mxu0
  %v1146 = vpop.f32.mrf.mxu0
  %v1147 = vadd.f32 %v168, %v1146
  %v1148 = vpop.f32.mrf.mxu0
  %1149 = vmatprep.mubr.bf16.mxu0 0
  %1150 = vmatmul.mubr.bf16.gmra.mxu0 %v675
  %v1151 = vpop.f32.mrf.mxu0
  %v1152 = vadd.f32 %v168, %v1151
  %v1153 = vpop.f32.mrf.mxu0
  %v1154 = vpop.f32.mrf.mxu0
  %v1155 = vadd.f32 %v168, %v1154
  %v1156 = vpop.f32.mrf.mxu0
  %1157 = vmatprep.mubr.bf16.mxu0 0
  %1158 = vmatmul.mubr.bf16.gmra.mxu0 %v678
  %v1159 = vpop.f32.mrf.mxu0
  %v1160 = vadd.f32 %v168, %v1159
  %v1161 = vpop.f32.mrf.mxu0
  %v1162 = vpop.f32.mrf.mxu0
  %v1163 = vadd.f32 %v168, %v1162
  %v1164 = vpop.f32.mrf.mxu0
  %1165 = vmatprep.mubr.bf16.mxu0 0
  %1166 = vmatmul.mubr.bf16.gmra.mxu0 %v681
  %v1167 = vpop.f32.mrf.mxu0
  %v1168 = vadd.f32 %v168, %v1167
  %v1169 = vpop.f32.mrf.mxu0
  %v1170 = vpop.f32.mrf.mxu0
  %v1171 = vadd.f32 %v168, %v1170
  %v1172 = vpop.f32.mrf.mxu0
  %1173 = vmatprep.mubr.bf16.mxu0 0
  %1174 = vmatmul.mubr.bf16.gmra.mxu0 %v684
  %v1175 = vpop.f32.mrf.mxu0
  %v1176 = vadd.f32 %v168, %v1175
  %v1177 = vpop.f32.mrf.mxu0
  %v1178 = vpop.f32.mrf.mxu0
  %v1179 = vadd.f32 %v168, %v1178
  %v1180 = vpop.f32.mrf.mxu0
  %1181 = vmatprep.mubr.bf16.mxu0 0
  %1182 = vmatmul.mubr.bf16.gmra.mxu0 %v687
  %v1183 = vpop.f32.mrf.mxu0
  %v1184 = vadd.f32 %v168, %v1183
  %v1185 = vpop.f32.mrf.mxu0
  %v1186 = vpop.f32.mrf.mxu0
  %v1187 = vadd.f32 %v168, %v1186
  %v1188 = vpop.f32.mrf.mxu0
  %1189 = vmatprep.mubr.bf16.mxu0 0
  %1190 = vmatmul.mubr.bf16.gmra.mxu0 %v690
  %v1191 = vpop.f32.mrf.mxu0
  %v1192 = vadd.f32 %v168, %v1191
  %v1193 = vpop.f32.mrf.mxu0
  %v1194 = vpop.f32.mrf.mxu0
  %v1195 = vadd.f32 %v168, %v1194
  %v1196 = vpop.f32.mrf.mxu0
  %1197 = vmatprep.mubr.bf16.mxu0 0
  %1198 = vmatmul.mubr.bf16.gmra.mxu0 %v693
  %v1199 = vpop.f32.mrf.mxu0
  %v1200 = vadd.f32 %v168, %v1199
  %v1201 = vpop.f32.mrf.mxu0
  %v1202 = vpop.f32.mrf.mxu0
  %v1203 = vadd.f32 %v168, %v1202
  %v1204 = vpop.f32.mrf.mxu0
  %1205 = vmatprep.mubr.bf16.mxu0 0
  %1206 = vmatmul.mubr.bf16.gmra.mxu0 %v696
  %v1207 = vpop.f32.mrf.mxu0
  %v1208 = vadd.f32 %v168, %v1207
  %v1209 = vpop.f32.mrf.mxu0
  %v1210 = vpop.f32.mrf.mxu0
  %v1211 = vadd.f32 %v168, %v1210
  %v1212 = vpop.f32.mrf.mxu0
  %1213 = vmatprep.mubr.bf16.mxu0 0
  %1214 = vmatmul.mubr.bf16.gmra.mxu0 %v699
  %v1215 = vpop.f32.mrf.mxu0
  %v1216 = vadd.f32 %v168, %v1215
  %v1217 = vpop.f32.mrf.mxu0
  %v1218 = vpop.f32.mrf.mxu0
  %v1219 = vadd.f32 %v168, %v1218
  %v1220 = vpop.f32.mrf.mxu0
  %1221 = vmatprep.mubr.bf16.mxu0 0
  %1222 = vmatmul.mubr.bf16.gmra.mxu0 %v702
  %v1223 = vpop.f32.mrf.mxu0
  %v1224 = vadd.f32 %v168, %v1223
  %v1225 = vpop.f32.mrf.mxu0
  %v1226 = vpop.f32.mrf.mxu0
  %v1227 = vadd.f32 %v168, %v1226
  %v1228 = vpop.f32.mrf.mxu0
  %1229 = vmatprep.mubr.bf16.mxu0 0
  %1230 = vmatmul.mubr.bf16.gmra.mxu0 %v705
  %v1231 = vpop.f32.mrf.mxu0
  %v1232 = vadd.f32 %v168, %v1231
  %v1233 = vpop.f32.mrf.mxu0
  %v1234 = vpop.f32.mrf.mxu0
  %v1235 = vadd.f32 %v168, %v1234
  %v1236 = vpop.f32.mrf.mxu0
  %1237 = vmatprep.mubr.bf16.mxu0 0
  %1238 = vmatmul.mubr.bf16.gmra.mxu0 %v708
  %v1239 = vpop.f32.mrf.mxu0
  %v1240 = vadd.f32 %v168, %v1239
  %v1241 = vpop.f32.mrf.mxu0
  %v1242 = vpop.f32.mrf.mxu0
  %v1243 = vadd.f32 %v168, %v1242
  %v1244 = vpop.f32.mrf.mxu0
  %1245 = vmatprep.mubr.bf16.mxu0 0
  %1246 = vmatmul.mubr.bf16.gmra.mxu0 %v711
  %v1247 = vpop.f32.mrf.mxu0
  %v1248 = vadd.f32 %v168, %v1247
  %v1249 = vpop.f32.mrf.mxu0
  %v1250 = vpop.f32.mrf.mxu0
  %v1251 = vadd.f32 %v168, %v1250
  %v1252 = vpop.f32.mrf.mxu0
  %1253 = vmatprep.mubr.bf16.mxu0 0
  %1254 = vmatmul.mubr.bf16.gmra.mxu0 %v714
  %v1255 = vpop.f32.mrf.mxu0
  %v1256 = vadd.f32 %v168, %v1255
  %v1257 = vpop.f32.mrf.mxu0
  %v1258 = vpop.f32.mrf.mxu0
  %v1259 = vadd.f32 %v168, %v1258
  %v1260 = vpop.f32.mrf.mxu0
  %1261 = vmatprep.mubr.bf16.mxu0 0
  %1262 = vmatmul.mubr.bf16.gmra.mxu0 %v717
  %v1263 = vpop.f32.mrf.mxu0
  %v1264 = vadd.f32 %v168, %v1263
  %v1265 = vpop.f32.mrf.mxu0
  %v1266 = vpop.f32.mrf.mxu0
  %v1267 = vadd.f32 %v168, %v1266
  %v1268 = vpop.f32.mrf.mxu0
  %1269 = vmatprep.mubr.bf16.mxu0 0
  %1270 = vmatmul.mubr.bf16.gmra.mxu0 %v720
  %v1271 = vpop.f32.mrf.mxu0
  %v1272 = vadd.f32 %v168, %v1271
  %v1273 = vpop.f32.mrf.mxu0
  %v1274 = vpop.f32.mrf.mxu0
  %v1275 = vadd.f32 %v168, %v1274
  %v1276 = vpop.f32.mrf.mxu0
  %1277 = vmatprep.mubr.bf16.mxu0 0
  %1278 = vmatmul.mubr.bf16.gmra.mxu0 %v723
  %v1279 = vpop.f32.mrf.mxu0
  %v1280 = vadd.f32 %v168, %v1279
  %v1281 = vpop.f32.mrf.mxu0
  %v1282 = vpop.f32.mrf.mxu0
  %v1283 = vadd.f32 %v168, %v1282
  %v1284 = vpop.f32.mrf.mxu0
  %1285 = vmatprep.mubr.bf16.mxu0 0
  %1286 = vmatmul.mubr.bf16.gmra.mxu0 %v726
  %v1287 = vpop.f32.mrf.mxu0
  %v1288 = vadd.f32 %v168, %v1287
  %v1289 = vpop.f32.mrf.mxu0
  %v1290 = vpop.f32.mrf.mxu0
  %v1291 = vadd.f32 %v168, %v1290
  %v1292 = vpop.f32.mrf.mxu0
  %1293 = vmatprep.mubr.bf16.mxu0 0
  %1294 = vmatmul.mubr.bf16.gmra.mxu0 %v729
  %v1295 = vpop.f32.mrf.mxu0
  %v1296 = vadd.f32 %v168, %v1295
  %v1297 = vpop.f32.mrf.mxu0
  %v1298 = vpop.f32.mrf.mxu0
  %v1299 = vadd.f32 %v168, %v1298
  %v1300 = vpop.f32.mrf.mxu0
  %1301 = vmatprep.mubr.bf16.mxu0 0
  %1302 = vmatmul.mubr.bf16.gmra.mxu0 %v732
  %v1303 = vpop.f32.mrf.mxu0
  %v1304 = vadd.f32 %v168, %v1303
  %v1305 = vpop.f32.mrf.mxu0
  %v1306 = vpop.f32.mrf.mxu0
  %v1307 = vadd.f32 %v168, %v1306
  %v1308 = vpop.f32.mrf.mxu0
  %1309 = vmatprep.mubr.bf16.mxu0 0
  %1310 = vmatmul.mubr.bf16.gmra.mxu0 %v735
  %v1311 = vpop.f32.mrf.mxu0
  %v1312 = vadd.f32 %v168, %v1311
  %v1313 = vpop.f32.mrf.mxu0
  %v1314 = vpop.f32.mrf.mxu0
  %v1315 = vadd.f32 %v168, %v1314
  %v1316 = vpop.f32.mrf.mxu0
  %1317 = vmatprep.mubr.bf16.mxu0 0
  %1318 = vmatmul.mubr.bf16.gmra.mxu0 %v738
  %v1319 = vpop.f32.mrf.mxu0
  %v1320 = vadd.f32 %v168, %v1319
  %v1321 = vpop.f32.mrf.mxu0
  %v1322 = vpop.f32.mrf.mxu0
  %v1323 = vadd.f32 %v168, %v1322
  %v1324 = vpop.f32.mrf.mxu0
  %1325 = vmatprep.mubr.bf16.mxu0 0
  %1326 = vmatmul.mubr.bf16.gmra.mxu0 %v741
  %v1327 = vpop.f32.mrf.mxu0
  %v1328 = vadd.f32 %v168, %v1327
  %v1329 = vpop.f32.mrf.mxu0
  %v1330 = vpop.f32.mrf.mxu0
  %v1331 = vadd.f32 %v168, %v1330
  %v1332 = vpop.f32.mrf.mxu0
  %1333 = vmatprep.mubr.bf16.mxu0 0
  %1334 = vmatmul.mubr.bf16.gmra.mxu0 %v744
  %v1335 = vpop.f32.mrf.mxu0
  %v1336 = vadd.f32 %v168, %v1335
  %v1337 = vpop.f32.mrf.mxu0
  %v1338 = vpop.f32.mrf.mxu0
  %v1339 = vadd.f32 %v168, %v1338
  %v1340 = vpop.f32.mrf.mxu0
  %1341 = vmatprep.mubr.bf16.mxu0 0
  %1342 = vmatmul.mubr.bf16.gmra.mxu0 %v747
  %v1343 = vpop.f32.mrf.mxu0
  %v1344 = vadd.f32 %v168, %v1343
  %v1345 = vpop.f32.mrf.mxu0
  %v1346 = vpop.f32.mrf.mxu0
  %v1347 = vadd.f32 %v168, %v1346
  %v1348 = vpop.f32.mrf.mxu0
  %1349 = vmatprep.mubr.bf16.mxu0 0
  %1350 = vmatmul.mubr.bf16.gmra.mxu0 %v750
  %v1351 = vpop.f32.mrf.mxu0
  %v1352 = vadd.f32 %v168, %v1351
  %v1353 = vpop.f32.mrf.mxu0
  %v1354 = vpop.f32.mrf.mxu0
  %v1355 = vadd.f32 %v168, %v1354
  %v1356 = vpop.f32.mrf.mxu0
  %1357 = vmatprep.mubr.bf16.mxu0 0
  %1358 = vmatmul.mubr.bf16.gmra.mxu0 %v753
  %v1359 = vpop.f32.mrf.mxu0
  %v1360 = vadd.f32 %v168, %v1359
  %v1361 = vpop.f32.mrf.mxu0
  %v1362 = vpop.f32.mrf.mxu0
  %v1363 = vadd.f32 %v168, %v1362
  %v1364 = vpop.f32.mrf.mxu0
  %1365 = vmatprep.mubr.bf16.mxu0 0
  %1366 = vmatmul.mubr.bf16.gmra.mxu0 %v756
  %v1367 = vpop.f32.mrf.mxu0
  %v1368 = vadd.f32 %v168, %v1367
  %v1369 = vpop.f32.mrf.mxu0
  %v1370 = vpop.f32.mrf.mxu0
  %v1371 = vadd.f32 %v168, %v1370
  %v1372 = vpop.f32.mrf.mxu0
  %1373 = vdwg.mxu0
  %v1374 = vmax.f32 %v800, 0.0
  %v1375 = vmax.f32 %v803, 0.0
  %v1376 = vmax.f32 %v808, 0.0
  %v1377 = vmax.f32 %v811, 0.0
  %v1378 = vmax.f32 %v816, 0.0
  %v1379 = vmax.f32 %v819, 0.0
  %v1380 = vmax.f32 %v824, 0.0
  %v1381 = vmax.f32 %v827, 0.0
  %v1382 = vmax.f32 %v832, 0.0
  %v1383 = vmax.f32 %v835, 0.0
  %v1384 = vmax.f32 %v840, 0.0
  %v1385 = vmax.f32 %v843, 0.0
  %v1386 = vmax.f32 %v848, 0.0
  %v1387 = vmax.f32 %v851, 0.0
  %v1388 = vmax.f32 %v856, 0.0
  %v1389 = vmax.f32 %v859, 0.0
  %v1390 = vmax.f32 %v864, 0.0
  %v1391 = vmax.f32 %v867, 0.0
  %v1392 = vmax.f32 %v872, 0.0
  %v1393 = vmax.f32 %v875, 0.0
  %v1394 = vmax.f32 %v880, 0.0
  %v1395 = vmax.f32 %v883, 0.0
  %v1396 = vmax.f32 %v888, 0.0
  %v1397 = vmax.f32 %v891, 0.0
  %v1398 = vmax.f32 %v896, 0.0
  %v1399 = vmax.f32 %v899, 0.0
  %v1400 = vmax.f32 %v904, 0.0
  %v1401 = vmax.f32 %v907, 0.0
  %v1402 = vmax.f32 %v912, 0.0
  %v1403 = vmax.f32 %v915, 0.0
  %v1404 = vmax.f32 %v920, 0.0
  %v1405 = vmax.f32 %v923, 0.0
  %v1406 = vmax.f32 %v928, 0.0
  %v1407 = vmax.f32 %v931, 0.0
  %v1408 = vmax.f32 %v936, 0.0
  %v1409 = vmax.f32 %v939, 0.0
  %v1410 = vmax.f32 %v944, 0.0
  %v1411 = vmax.f32 %v947, 0.0
  %v1412 = vmax.f32 %v952, 0.0
  %v1413 = vmax.f32 %v955, 0.0
  %v1414 = vmax.f32 %v960, 0.0
  %v1415 = vmax.f32 %v963, 0.0
  %v1416 = vmax.f32 %v968, 0.0
  %v1417 = vmax.f32 %v971, 0.0
  %v1418 = vmax.f32 %v976, 0.0
  %v1419 = vmax.f32 %v979, 0.0
  %v1420 = vmax.f32 %v984, 0.0
  %v1421 = vmax.f32 %v987, 0.0
  %v1422 = vmax.f32 %v992, 0.0
  %v1423 = vmax.f32 %v995, 0.0
  %v1424 = vmax.f32 %v1000, 0.0
  %v1425 = vmax.f32 %v1003, 0.0
  %v1426 = vmax.f32 %v1008, 0.0
  %v1427 = vmax.f32 %v1011, 0.0
  %v1428 = vmax.f32 %v1016, 0.0
  %v1429 = vmax.f32 %v1019, 0.0
  %v1430 = vmax.f32 %v1024, 0.0
  %v1431 = vmax.f32 %v1027, 0.0
  %v1432 = vmax.f32 %v1032, 0.0
  %v1433 = vmax.f32 %v1035, 0.0
  %v1434 = vmax.f32 %v1040, 0.0
  %v1435 = vmax.f32 %v1043, 0.0
  %v1436 = vmax.f32 %v1048, 0.0
  %v1437 = vmax.f32 %v1051, 0.0
  %v1438 = vmax.f32 %v1056, 0.0
  %v1439 = vmax.f32 %v1059, 0.0
  %v1440 = vmax.f32 %v1064, 0.0
  %v1441 = vmax.f32 %v1067, 0.0
  %v1442 = vmax.f32 %v1072, 0.0
  %v1443 = vmax.f32 %v1075, 0.0
  %v1444 = vmax.f32 %v1080, 0.0
  %v1445 = vmax.f32 %v1083, 0.0
  %v1446 = vmax.f32 %v1088, 0.0
  %v1447 = vmax.f32 %v1091, 0.0
  %v1448 = vmax.f32 %v1096, 0.0
  %v1449 = vmax.f32 %v1099, 0.0
  %v1450 = vmax.f32 %v1104, 0.0
  %v1451 = vmax.f32 %v1107, 0.0
  %v1452 = vmax.f32 %v1112, 0.0
  %v1453 = vmax.f32 %v1115, 0.0
  %v1454 = vmax.f32 %v1120, 0.0
  %v1455 = vmax.f32 %v1123, 0.0
  %v1456 = vmax.f32 %v1128, 0.0
  %v1457 = vmax.f32 %v1131, 0.0
  %v1458 = vmax.f32 %v1136, 0.0
  %v1459 = vmax.f32 %v1139, 0.0
  %v1460 = vmax.f32 %v1144, 0.0
  %v1461 = vmax.f32 %v1147, 0.0
  %v1462 = vmax.f32 %v1152, 0.0
  %v1463 = vmax.f32 %v1155, 0.0
  %v1464 = vmax.f32 %v1160, 0.0
  %v1465 = vmax.f32 %v1163, 0.0
  %v1466 = vmax.f32 %v1168, 0.0
  %v1467 = vmax.f32 %v1171, 0.0
  %v1468 = vmax.f32 %v1176, 0.0
  %v1469 = vmax.f32 %v1179, 0.0
  %v1470 = vmax.f32 %v1184, 0.0
  %v1471 = vmax.f32 %v1187, 0.0
  %v1472 = vmax.f32 %v1192, 0.0
  %v1473 = vmax.f32 %v1195, 0.0
  %v1474 = vmax.f32 %v1200, 0.0
  %v1475 = vmax.f32 %v1203, 0.0
  %v1476 = vmax.f32 %v1208, 0.0
  %v1477 = vmax.f32 %v1211, 0.0
  %v1478 = vmax.f32 %v1216, 0.0
  %v1479 = vmax.f32 %v1219, 0.0
  %v1480 = vmax.f32 %v1224, 0.0
  %v1481 = vmax.f32 %v1227, 0.0
  %v1482 = vmax.f32 %v1232, 0.0
  %v1483 = vmax.f32 %v1235, 0.0
  %v1484 = vmax.f32 %v1240, 0.0
  %v1485 = vmax.f32 %v1243, 0.0
  %v1486 = vmax.f32 %v1248, 0.0
  %v1487 = vmax.f32 %v1251, 0.0
  %v1488 = vmax.f32 %v1256, 0.0
  %v1489 = vmax.f32 %v1259, 0.0
  %v1490 = vmax.f32 %v1264, 0.0
  %v1491 = vmax.f32 %v1267, 0.0
  %v1492 = vmax.f32 %v1272, 0.0
  %v1493 = vmax.f32 %v1275, 0.0
  %v1494 = vmax.f32 %v1280, 0.0
  %v1495 = vmax.f32 %v1283, 0.0
  %v1496 = vmax.f32 %v1288, 0.0
  %v1497 = vmax.f32 %v1291, 0.0
  %v1498 = vmax.f32 %v1296, 0.0
  %v1499 = vmax.f32 %v1299, 0.0
  %v1500 = vmax.f32 %v1304, 0.0
  %v1501 = vmax.f32 %v1307, 0.0
  %v1502 = vmax.f32 %v1312, 0.0
  %v1503 = vmax.f32 %v1315, 0.0
  %v1504 = vmax.f32 %v1320, 0.0
  %v1505 = vmax.f32 %v1323, 0.0
  %v1506 = vmax.f32 %v1328, 0.0
  %v1507 = vmax.f32 %v1331, 0.0
  %v1508 = vmax.f32 %v1336, 0.0
  %v1509 = vmax.f32 %v1339, 0.0
  %v1510 = vmax.f32 %v1344, 0.0
  %v1511 = vmax.f32 %v1347, 0.0
  %v1512 = vmax.f32 %v1352, 0.0
  %v1513 = vmax.f32 %v1355, 0.0
  %v1514 = vmax.f32 %v1360, 0.0
  %v1515 = vmax.f32 %v1363, 0.0
  %v1516 = vmax.f32 %v1368, 0.0
  %v1517 = vmax.f32 %v1371, 0.0
  %v1518 = vpack.c.bf16 %v1375, %v1374
  %v1519 = vpack.c.bf16 %v1377, %v1376
  %v1520 = vpack.c.bf16 %v1379, %v1378
  %v1521 = vpack.c.bf16 %v1381, %v1380
  %v1522 = vpack.c.bf16 %v1383, %v1382
  %v1523 = vpack.c.bf16 %v1385, %v1384
  %v1524 = vpack.c.bf16 %v1387, %v1386
  %v1525 = vpack.c.bf16 %v1389, %v1388
  %v1526 = vpack.c.bf16 %v1391, %v1390
  %v1527 = vpack.c.bf16 %v1393, %v1392
  %v1528 = vpack.c.bf16 %v1395, %v1394
  %v1529 = vpack.c.bf16 %v1397, %v1396
  %v1530 = vpack.c.bf16 %v1399, %v1398
  %v1531 = vpack.c.bf16 %v1401, %v1400
  %v1532 = vpack.c.bf16 %v1403, %v1402
  %v1533 = vpack.c.bf16 %v1405, %v1404
  %v1534 = vpack.c.bf16 %v1407, %v1406
  %v1535 = vpack.c.bf16 %v1409, %v1408
  %v1536 = vpack.c.bf16 %v1411, %v1410
  %v1537 = vpack.c.bf16 %v1413, %v1412
  %v1538 = vpack.c.bf16 %v1415, %v1414
  %v1539 = vpack.c.bf16 %v1417, %v1416
  %v1540 = vpack.c.bf16 %v1419, %v1418
  %v1541 = vpack.c.bf16 %v1421, %v1420
  %v1542 = vpack.c.bf16 %v1423, %v1422
  %v1543 = vpack.c.bf16 %v1425, %v1424
  %v1544 = vpack.c.bf16 %v1427, %v1426
  %v1545 = vpack.c.bf16 %v1429, %v1428
  %v1546 = vpack.c.bf16 %v1431, %v1430
  %v1547 = vpack.c.bf16 %v1433, %v1432
  %v1548 = vpack.c.bf16 %v1435, %v1434
  %v1549 = vpack.c.bf16 %v1437, %v1436
  %v1550 = vpack.c.bf16 %v1439, %v1438
  %v1551 = vpack.c.bf16 %v1441, %v1440
  %v1552 = vpack.c.bf16 %v1443, %v1442
  %v1553 = vpack.c.bf16 %v1445, %v1444
  %v1554 = vpack.c.bf16 %v1447, %v1446
  %v1555 = vpack.c.bf16 %v1449, %v1448
  %v1556 = vpack.c.bf16 %v1451, %v1450
  %v1557 = vpack.c.bf16 %v1453, %v1452
  %v1558 = vpack.c.bf16 %v1455, %v1454
  %v1559 = vpack.c.bf16 %v1457, %v1456
  %v1560 = vpack.c.bf16 %v1459, %v1458
  %v1561 = vpack.c.bf16 %v1461, %v1460
  %v1562 = vpack.c.bf16 %v1463, %v1462
  %v1563 = vpack.c.bf16 %v1465, %v1464
  %v1564 = vpack.c.bf16 %v1467, %v1466
  %v1565 = vpack.c.bf16 %v1469, %v1468
  %v1566 = vpack.c.bf16 %v1471, %v1470
  %v1567 = vpack.c.bf16 %v1473, %v1472
  %v1568 = vpack.c.bf16 %v1475, %v1474
  %v1569 = vpack.c.bf16 %v1477, %v1476
  %v1570 = vpack.c.bf16 %v1479, %v1478
  %v1571 = vpack.c.bf16 %v1481, %v1480
  %v1572 = vpack.c.bf16 %v1483, %v1482
  %v1573 = vpack.c.bf16 %v1485, %v1484
  %v1574 = vpack.c.bf16 %v1487, %v1486
  %v1575 = vpack.c.bf16 %v1489, %v1488
  %v1576 = vpack.c.bf16 %v1491, %v1490
  %v1577 = vpack.c.bf16 %v1493, %v1492
  %v1578 = vpack.c.bf16 %v1495, %v1494
  %v1579 = vpack.c.bf16 %v1497, %v1496
  %v1580 = vpack.c.bf16 %v1499, %v1498
  %v1581 = vpack.c.bf16 %v1501, %v1500
  %v1582 = vpack.c.bf16 %v1503, %v1502
  %v1583 = vpack.c.bf16 %v1505, %v1504
  %v1584 = vpack.c.bf16 %v1507, %v1506
  %v1585 = vpack.c.bf16 %v1509, %v1508
  %v1586 = vpack.c.bf16 %v1511, %v1510
  %v1587 = vpack.c.bf16 %v1513, %v1512
  %v1588 = vpack.c.bf16 %v1515, %v1514
  %v1589 = vpack.c.bf16 %v1517, %v1516
  %v1662 = vunpack.c.l.b16 %v1518
  %v1663 = vunpack.c.h.b16 %v1518
  %v1664 = vunpack.c.l.b16 %v1519
  %v1665 = vunpack.c.h.b16 %v1519
  %v1666 = vunpack.c.l.b16 %v1520
  %v1667 = vunpack.c.h.b16 %v1520
  %v1668 = vunpack.c.l.b16 %v1521
  %v1669 = vunpack.c.h.b16 %v1521
  %v1670 = vunpack.c.l.b16 %v1522
  %v1671 = vunpack.c.h.b16 %v1522
  %v1672 = vunpack.c.l.b16 %v1523
  %v1673 = vunpack.c.h.b16 %v1523
  %v1674 = vunpack.c.l.b16 %v1524
  %v1675 = vunpack.c.h.b16 %v1524
  %v1676 = vunpack.c.l.b16 %v1525
  %v1677 = vunpack.c.h.b16 %v1525
  %v1678 = vunpack.c.l.b16 %v1526
  %v1679 = vunpack.c.h.b16 %v1526
  %v1680 = vunpack.c.l.b16 %v1527
  %v1681 = vunpack.c.h.b16 %v1527
  %v1682 = vunpack.c.l.b16 %v1528
  %v1683 = vunpack.c.h.b16 %v1528
  %v1684 = vunpack.c.l.b16 %v1529
  %v1685 = vunpack.c.h.b16 %v1529
  %v1686 = vunpack.c.l.b16 %v1530
  %v1687 = vunpack.c.h.b16 %v1530
  %v1688 = vunpack.c.l.b16 %v1531
  %v1689 = vunpack.c.h.b16 %v1531
  %v1690 = vunpack.c.l.b16 %v1532
  %v1691 = vunpack.c.h.b16 %v1532
  %v1692 = vunpack.c.l.b16 %v1533
  %v1693 = vunpack.c.h.b16 %v1533
  %v1694 = vunpack.c.l.b16 %v1534
  %v1695 = vunpack.c.h.b16 %v1534
  %v1696 = vunpack.c.l.b16 %v1535
  %v1697 = vunpack.c.h.b16 %v1535
  %v1698 = vunpack.c.l.b16 %v1536
  %v1699 = vunpack.c.h.b16 %v1536
  %v1700 = vunpack.c.l.b16 %v1537
  %v1701 = vunpack.c.h.b16 %v1537
  %v1702 = vunpack.c.l.b16 %v1538
  %v1703 = vunpack.c.h.b16 %v1538
  %v1704 = vunpack.c.l.b16 %v1539
  %v1705 = vunpack.c.h.b16 %v1539
  %v1706 = vunpack.c.l.b16 %v1540
  %v1707 = vunpack.c.h.b16 %v1540
  %v1708 = vunpack.c.l.b16 %v1541
  %v1709 = vunpack.c.h.b16 %v1541
  %v1710 = vunpack.c.l.b16 %v1542
  %v1711 = vunpack.c.h.b16 %v1542
  %v1712 = vunpack.c.l.b16 %v1543
  %v1713 = vunpack.c.h.b16 %v1543
  %v1714 = vunpack.c.l.b16 %v1544
  %v1715 = vunpack.c.h.b16 %v1544
  %v1716 = vunpack.c.l.b16 %v1545
  %v1717 = vunpack.c.h.b16 %v1545
  %v1718 = vunpack.c.l.b16 %v1546
  %v1719 = vunpack.c.h.b16 %v1546
  %v1720 = vunpack.c.l.b16 %v1547
  %v1721 = vunpack.c.h.b16 %v1547
  %v1722 = vunpack.c.l.b16 %v1548
  %v1723 = vunpack.c.h.b16 %v1548
  %v1724 = vunpack.c.l.b16 %v1549
  %v1725 = vunpack.c.h.b16 %v1549
  %v1726 = vunpack.c.l.b16 %v1550
  %v1727 = vunpack.c.h.b16 %v1550
  %v1728 = vunpack.c.l.b16 %v1551
  %v1729 = vunpack.c.h.b16 %v1551
  %v1730 = vunpack.c.l.b16 %v1552
  %v1731 = vunpack.c.h.b16 %v1552
  %v1732 = vunpack.c.l.b16 %v1553
  %v1733 = vunpack.c.h.b16 %v1553
  %v1734 = vunpack.c.l.b16 %v1554
  %v1735 = vunpack.c.h.b16 %v1554
  %v1736 = vunpack.c.l.b16 %v1555
  %v1737 = vunpack.c.h.b16 %v1555
  %v1738 = vunpack.c.l.b16 %v1556
  %v1739 = vunpack.c.h.b16 %v1556
  %v1740 = vunpack.c.l.b16 %v1557
  %v1741 = vunpack.c.h.b16 %v1557
  %v1742 = vunpack.c.l.b16 %v1558
  %v1743 = vunpack.c.h.b16 %v1558
  %v1744 = vunpack.c.l.b16 %v1559
  %v1745 = vunpack.c.h.b16 %v1559
  %v1746 = vunpack.c.l.b16 %v1560
  %v1747 = vunpack.c.h.b16 %v1560
  %v1748 = vunpack.c.l.b16 %v1561
  %v1749 = vunpack.c.h.b16 %v1561
  %v1750 = vunpack.c.l.b16 %v1562
  %v1751 = vunpack.c.h.b16 %v1562
  %v1752 = vunpack.c.l.b16 %v1563
  %v1753 = vunpack.c.h.b16 %v1563
  %v1754 = vunpack.c.l.b16 %v1564
  %v1755 = vunpack.c.h.b16 %v1564
  %v1756 = vunpack.c.l.b16 %v1565
  %v1757 = vunpack.c.h.b16 %v1565
  %v1758 = vunpack.c.l.b16 %v1566
  %v1759 = vunpack.c.h.b16 %v1566
  %v1760 = vunpack.c.l.b16 %v1567
  %v1761 = vunpack.c.h.b16 %v1567
  %v1762 = vunpack.c.l.b16 %v1568
  %v1763 = vunpack.c.h.b16 %v1568
  %v1764 = vunpack.c.l.b16 %v1569
  %v1765 = vunpack.c.h.b16 %v1569
  %v1766 = vunpack.c.l.b16 %v1570
  %v1767 = vunpack.c.h.b16 %v1570
  %v1768 = vunpack.c.l.b16 %v1571
  %v1769 = vunpack.c.h.b16 %v1571
  %v1770 = vunpack.c.l.b16 %v1572
  %v1771 = vunpack.c.h.b16 %v1572
  %v1772 = vunpack.c.l.b16 %v1573
  %v1773 = vunpack.c.h.b16 %v1573
  %v1774 = vunpack.c.l.b16 %v1574
  %v1775 = vunpack.c.h.b16 %v1574
  %v1776 = vunpack.c.l.b16 %v1575
  %v1777 = vunpack.c.h.b16 %v1575
  %v1778 = vunpack.c.l.b16 %v1576
  %v1779 = vunpack.c.h.b16 %v1576
  %v1780 = vunpack.c.l.b16 %v1577
  %v1781 = vunpack.c.h.b16 %v1577
  %v1782 = vunpack.c.l.b16 %v1578
  %v1783 = vunpack.c.h.b16 %v1578
  %v1784 = vunpack.c.l.b16 %v1579
  %v1785 = vunpack.c.h.b16 %v1579
  %v1786 = vunpack.c.l.b16 %v1580
  %v1787 = vunpack.c.h.b16 %v1580
  %v1788 = vunpack.c.l.b16 %v1581
  %v1789 = vunpack.c.h.b16 %v1581
  %v1790 = vunpack.c.l.b16 %v1582
  %v1791 = vunpack.c.h.b16 %v1582
  %v1792 = vunpack.c.l.b16 %v1583
  %v1793 = vunpack.c.h.b16 %v1583
  %v1794 = vunpack.c.l.b16 %v1584
  %v1795 = vunpack.c.h.b16 %v1584
  %v1796 = vunpack.c.l.b16 %v1585
  %v1797 = vunpack.c.h.b16 %v1585
  %v1798 = vunpack.c.l.b16 %v1586
  %v1799 = vunpack.c.h.b16 %v1586
  %v1800 = vunpack.c.l.b16 %v1587
  %v1801 = vunpack.c.h.b16 %v1587
  %v1802 = vunpack.c.l.b16 %v1588
  %v1803 = vunpack.c.h.b16 %v1588
  %v1804 = vunpack.c.l.b16 %v1589
  %v1805 = vunpack.c.h.b16 %v1589
  %v1806 = vpack.c.b16 %v1662, %v1662
  %v1807 = vpack.c.b16 %v1663, %v1663
  %v1808 = vpack.c.b16 %v1664, %v1664
  %v1809 = vpack.c.b16 %v1665, %v1665
  %v1810 = vpack.c.b16 %v1666, %v1666
  %v1811 = vpack.c.b16 %v1667, %v1667
  %v1812 = vpack.c.b16 %v1668, %v1668
  %v1813 = vpack.c.b16 %v1669, %v1669
  %v1814 = vpack.c.b16 %v1670, %v1670
  %v1815 = vpack.c.b16 %v1671, %v1671
  %v1816 = vpack.c.b16 %v1672, %v1672
  %v1817 = vpack.c.b16 %v1673, %v1673
  %v1818 = vpack.c.b16 %v1674, %v1674
  %v1819 = vpack.c.b16 %v1675, %v1675
  %v1820 = vpack.c.b16 %v1676, %v1676
  %v1821 = vpack.c.b16 %v1677, %v1677
  %v1822 = vpack.c.b16 %v1678, %v1678
  %v1823 = vpack.c.b16 %v1679, %v1679
  %v1824 = vpack.c.b16 %v1680, %v1680
  %v1825 = vpack.c.b16 %v1681, %v1681
  %v1826 = vpack.c.b16 %v1682, %v1682
  %v1827 = vpack.c.b16 %v1683, %v1683
  %v1828 = vpack.c.b16 %v1684, %v1684
  %v1829 = vpack.c.b16 %v1685, %v1685
  %v1830 = vpack.c.b16 %v1686, %v1686
  %v1831 = vpack.c.b16 %v1687, %v1687
  %v1832 = vpack.c.b16 %v1688, %v1688
  %v1833 = vpack.c.b16 %v1689, %v1689
  %v1834 = vpack.c.b16 %v1690, %v1690
  %v1835 = vpack.c.b16 %v1691, %v1691
  %v1836 = vpack.c.b16 %v1692, %v1692
  %v1837 = vpack.c.b16 %v1693, %v1693
  %v1838 = vpack.c.b16 %v1694, %v1694
  %v1839 = vpack.c.b16 %v1695, %v1695
  %v1840 = vpack.c.b16 %v1696, %v1696
  %v1841 = vpack.c.b16 %v1697, %v1697
  %v1842 = vpack.c.b16 %v1698, %v1698
  %v1843 = vpack.c.b16 %v1699, %v1699
  %v1844 = vpack.c.b16 %v1700, %v1700
  %v1845 = vpack.c.b16 %v1701, %v1701
  %v1846 = vpack.c.b16 %v1702, %v1702
  %v1847 = vpack.c.b16 %v1703, %v1703
  %v1848 = vpack.c.b16 %v1704, %v1704
  %v1849 = vpack.c.b16 %v1705, %v1705
  %v1850 = vpack.c.b16 %v1706, %v1706
  %v1851 = vpack.c.b16 %v1707, %v1707
  %v1852 = vpack.c.b16 %v1708, %v1708
  %v1853 = vpack.c.b16 %v1709, %v1709
  %v1854 = vpack.c.b16 %v1710, %v1710
  %v1855 = vpack.c.b16 %v1711, %v1711
  %v1856 = vpack.c.b16 %v1712, %v1712
  %v1857 = vpack.c.b16 %v1713, %v1713
  %v1858 = vpack.c.b16 %v1714, %v1714
  %v1859 = vpack.c.b16 %v1715, %v1715
  %v1860 = vpack.c.b16 %v1716, %v1716
  %v1861 = vpack.c.b16 %v1717, %v1717
  %v1862 = vpack.c.b16 %v1718, %v1718
  %v1863 = vpack.c.b16 %v1719, %v1719
  %v1864 = vpack.c.b16 %v1720, %v1720
  %v1865 = vpack.c.b16 %v1721, %v1721
  %v1866 = vpack.c.b16 %v1722, %v1722
  %v1867 = vpack.c.b16 %v1723, %v1723
  %v1868 = vpack.c.b16 %v1724, %v1724
  %v1869 = vpack.c.b16 %v1725, %v1725
  %v1870 = vpack.c.b16 %v1726, %v1726
  %v1871 = vpack.c.b16 %v1727, %v1727
  %v1872 = vpack.c.b16 %v1728, %v1728
  %v1873 = vpack.c.b16 %v1729, %v1729
  %v1874 = vpack.c.b16 %v1730, %v1730
  %v1875 = vpack.c.b16 %v1731, %v1731
  %v1876 = vpack.c.b16 %v1732, %v1732
  %v1877 = vpack.c.b16 %v1733, %v1733
  %v1878 = vpack.c.b16 %v1734, %v1734
  %v1879 = vpack.c.b16 %v1735, %v1735
  %v1880 = vpack.c.b16 %v1736, %v1736
  %v1881 = vpack.c.b16 %v1737, %v1737
  %v1882 = vpack.c.b16 %v1738, %v1738
  %v1883 = vpack.c.b16 %v1739, %v1739
  %v1884 = vpack.c.b16 %v1740, %v1740
  %v1885 = vpack.c.b16 %v1741, %v1741
  %v1886 = vpack.c.b16 %v1742, %v1742
  %v1887 = vpack.c.b16 %v1743, %v1743
  %v1888 = vpack.c.b16 %v1744, %v1744
  %v1889 = vpack.c.b16 %v1745, %v1745
  %v1890 = vpack.c.b16 %v1746, %v1746
  %v1891 = vpack.c.b16 %v1747, %v1747
  %v1892 = vpack.c.b16 %v1748, %v1748
  %v1893 = vpack.c.b16 %v1749, %v1749
  %v1894 = vpack.c.b16 %v1750, %v1750
  %v1895 = vpack.c.b16 %v1751, %v1751
  %v1896 = vpack.c.b16 %v1752, %v1752
  %v1897 = vpack.c.b16 %v1753, %v1753
  %v1898 = vpack.c.b16 %v1754, %v1754
  %v1899 = vpack.c.b16 %v1755, %v1755
  %v1900 = vpack.c.b16 %v1756, %v1756
  %v1901 = vpack.c.b16 %v1757, %v1757
  %v1902 = vpack.c.b16 %v1758, %v1758
  %v1903 = vpack.c.b16 %v1759, %v1759
  %v1904 = vpack.c.b16 %v1760, %v1760
  %v1905 = vpack.c.b16 %v1761, %v1761
  %v1906 = vpack.c.b16 %v1762, %v1762
  %v1907 = vpack.c.b16 %v1763, %v1763
  %v1908 = vpack.c.b16 %v1764, %v1764
  %v1909 = vpack.c.b16 %v1765, %v1765
  %v1910 = vpack.c.b16 %v1766, %v1766
  %v1911 = vpack.c.b16 %v1767, %v1767
  %v1912 = vpack.c.b16 %v1768, %v1768
  %v1913 = vpack.c.b16 %v1769, %v1769
  %v1914 = vpack.c.b16 %v1770, %v1770
  %v1915 = vpack.c.b16 %v1771, %v1771
  %v1916 = vpack.c.b16 %v1772, %v1772
  %v1917 = vpack.c.b16 %v1773, %v1773
  %v1918 = vpack.c.b16 %v1774, %v1774
  %v1919 = vpack.c.b16 %v1775, %v1775
  %v1920 = vpack.c.b16 %v1776, %v1776
  %v1921 = vpack.c.b16 %v1777, %v1777
  %v1922 = vpack.c.b16 %v1778, %v1778
  %v1923 = vpack.c.b16 %v1779, %v1779
  %v1924 = vpack.c.b16 %v1780, %v1780
  %v1925 = vpack.c.b16 %v1781, %v1781
  %v1926 = vpack.c.b16 %v1782, %v1782
  %v1927 = vpack.c.b16 %v1783, %v1783
  %v1928 = vpack.c.b16 %v1784, %v1784
  %v1929 = vpack.c.b16 %v1785, %v1785
  %v1930 = vpack.c.b16 %v1786, %v1786
  %v1931 = vpack.c.b16 %v1787, %v1787
  %v1932 = vpack.c.b16 %v1788, %v1788
  %v1933 = vpack.c.b16 %v1789, %v1789
  %v1934 = vpack.c.b16 %v1790, %v1790
  %v1935 = vpack.c.b16 %v1791, %v1791
  %v1936 = vpack.c.b16 %v1792, %v1792
  %v1937 = vpack.c.b16 %v1793, %v1793
  %v1938 = vpack.c.b16 %v1794, %v1794
  %v1939 = vpack.c.b16 %v1795, %v1795
  %v1940 = vpack.c.b16 %v1796, %v1796
  %v1941 = vpack.c.b16 %v1797, %v1797
  %v1942 = vpack.c.b16 %v1798, %v1798
  %v1943 = vpack.c.b16 %v1799, %v1799
  %v1944 = vpack.c.b16 %v1800, %v1800
  %v1945 = vpack.c.b16 %v1801, %v1801
  %v1946 = vpack.c.b16 %v1802, %v1802
  %v1947 = vpack.c.b16 %v1803, %v1803
  %v1948 = vpack.c.b16 %v1804, %v1804
  %v1949 = vpack.c.b16 %v1805, %v1805
  %vm2094 = vcmask 93184
  %2095 = vst.msk [vmem:[%s3] sm:$0xf] %vm2094, %v1806
  %2096 = vst.msk [vmem:[%s3 + $0x4] sm:$0xf] %vm2094, %v1807
  %2097 = vst.msk [vmem:[%s3 + $0x8] sm:$0xf] %vm2094, %v1808
  %2098 = vst.msk [vmem:[%s3 + $0xc] sm:$0xf] %vm2094, %v1809
  %2099 = vst.msk [vmem:[%s3 + $0x10] sm:$0xf] %vm2094, %v1810
  %2100 = vst.msk [vmem:[%s3 + $0x14] sm:$0xf] %vm2094, %v1811
  %2101 = vst.msk [vmem:[%s3 + $0x18] sm:$0xf] %vm2094, %v1812
  %2102 = vst.msk [vmem:[%s3 + $0x1c] sm:$0xf] %vm2094, %v1813
  %2103 = vst.msk [vmem:[%s3 + $0x20] sm:$0xf] %vm2094, %v1814
  %2104 = vst.msk [vmem:[%s3 + $0x24] sm:$0xf] %vm2094, %v1815
  %2105 = vst.msk [vmem:[%s3 + $0x28] sm:$0xf] %vm2094, %v1816
  %2106 = vst.msk [vmem:[%s3 + $0x2c] sm:$0xf] %vm2094, %v1817
  %2107 = vst.msk [vmem:[%s3 + $0x30] sm:$0xf] %vm2094, %v1818
  %2108 = vst.msk [vmem:[%s3 + $0x34] sm:$0xf] %vm2094, %v1819
  %2109 = vst.msk [vmem:[%s3 + $0x38] sm:$0xf] %vm2094, %v1820
  %2110 = vst.msk [vmem:[%s3 + $0x3c] sm:$0xf] %vm2094, %v1821
  %2111 = vst.msk [vmem:[%s3 + $0x40] sm:$0xf] %vm2094, %v1822
  %2112 = vst.msk [vmem:[%s3 + $0x44] sm:$0xf] %vm2094, %v1823
  %2113 = vst.msk [vmem:[%s3 + $0x48] sm:$0xf] %vm2094, %v1824
  %2114 = vst.msk [vmem:[%s3 + $0x4c] sm:$0xf] %vm2094, %v1825
  %2115 = vst.msk [vmem:[%s3 + $0x50] sm:$0xf] %vm2094, %v1826
  %2116 = vst.msk [vmem:[%s3 + $0x54] sm:$0xf] %vm2094, %v1827
  %2117 = vst.msk [vmem:[%s3 + $0x58] sm:$0xf] %vm2094, %v1828
  %2118 = vst.msk [vmem:[%s3 + $0x5c] sm:$0xf] %vm2094, %v1829
  %2119 = vst.msk [vmem:[%s3 + $0x60] sm:$0xf] %vm2094, %v1830
  %2120 = vst.msk [vmem:[%s3 + $0x64] sm:$0xf] %vm2094, %v1831
  %2121 = vst.msk [vmem:[%s3 + $0x68] sm:$0xf] %vm2094, %v1832
  %2122 = vst.msk [vmem:[%s3 + $0x6c] sm:$0xf] %vm2094, %v1833
  %2123 = vst.msk [vmem:[%s3 + $0x70] sm:$0xf] %vm2094, %v1834
  %2124 = vst.msk [vmem:[%s3 + $0x74] sm:$0xf] %vm2094, %v1835
  %2125 = vst.msk [vmem:[%s3 + $0x78] sm:$0xf] %vm2094, %v1836
  %2126 = vst.msk [vmem:[%s3 + $0x7c] sm:$0xf] %vm2094, %v1837
  %2127 = vst.msk [vmem:[%s3 + $0x80] sm:$0xf] %vm2094, %v1838
  %2128 = vst.msk [vmem:[%s3 + $0x84] sm:$0xf] %vm2094, %v1839
  %2129 = vst.msk [vmem:[%s3 + $0x88] sm:$0xf] %vm2094, %v1840
  %2130 = vst.msk [vmem:[%s3 + $0x8c] sm:$0xf] %vm2094, %v1841
  %2131 = vst.msk [vmem:[%s3 + $0x90] sm:$0xf] %vm2094, %v1842
  %2132 = vst.msk [vmem:[%s3 + $0x94] sm:$0xf] %vm2094, %v1843
  %2133 = vst.msk [vmem:[%s3 + $0x98] sm:$0xf] %vm2094, %v1844
  %2134 = vst.msk [vmem:[%s3 + $0x9c] sm:$0xf] %vm2094, %v1845
  %2135 = vst.msk [vmem:[%s3 + $0xa0] sm:$0xf] %vm2094, %v1846
  %2136 = vst.msk [vmem:[%s3 + $0xa4] sm:$0xf] %vm2094, %v1847
  %2137 = vst.msk [vmem:[%s3 + $0xa8] sm:$0xf] %vm2094, %v1848
  %2138 = vst.msk [vmem:[%s3 + $0xac] sm:$0xf] %vm2094, %v1849
  %2139 = vst.msk [vmem:[%s3 + $0xb0] sm:$0xf] %vm2094, %v1850
  %2140 = vst.msk [vmem:[%s3 + $0xb4] sm:$0xf] %vm2094, %v1851
  %2141 = vst.msk [vmem:[%s3 + $0xb8] sm:$0xf] %vm2094, %v1852
  %2142 = vst.msk [vmem:[%s3 + $0xbc] sm:$0xf] %vm2094, %v1853
  %2143 = vst.msk [vmem:[%s3 + $0xc0] sm:$0xf] %vm2094, %v1854
  %2144 = vst.msk [vmem:[%s3 + $0xc4] sm:$0xf] %vm2094, %v1855
  %2145 = vst.msk [vmem:[%s3 + $0xc8] sm:$0xf] %vm2094, %v1856
  %2146 = vst.msk [vmem:[%s3 + $0xcc] sm:$0xf] %vm2094, %v1857
  %2147 = vst.msk [vmem:[%s3 + $0xd0] sm:$0xf] %vm2094, %v1858
  %2148 = vst.msk [vmem:[%s3 + $0xd4] sm:$0xf] %vm2094, %v1859
  %2149 = vst.msk [vmem:[%s3 + $0xd8] sm:$0xf] %vm2094, %v1860
  %2150 = vst.msk [vmem:[%s3 + $0xdc] sm:$0xf] %vm2094, %v1861
  %2151 = vst.msk [vmem:[%s3 + $0xe0] sm:$0xf] %vm2094, %v1862
  %2152 = vst.msk [vmem:[%s3 + $0xe4] sm:$0xf] %vm2094, %v1863
  %2153 = vst.msk [vmem:[%s3 + $0xe8] sm:$0xf] %vm2094, %v1864
  %2154 = vst.msk [vmem:[%s3 + $0xec] sm:$0xf] %vm2094, %v1865
  %2155 = vst.msk [vmem:[%s3 + $0xf0] sm:$0xf] %vm2094, %v1866
  %2156 = vst.msk [vmem:[%s3 + $0xf4] sm:$0xf] %vm2094, %v1867
  %2157 = vst.msk [vmem:[%s3 + $0xf8] sm:$0xf] %vm2094, %v1868
  %2158 = vst.msk [vmem:[%s3 + $0xfc] sm:$0xf] %vm2094, %v1869
  %2159 = vst.msk [vmem:[%s3 + $0x100] sm:$0xf] %vm2094, %v1870
  %2160 = vst.msk [vmem:[%s3 + $0x104] sm:$0xf] %vm2094, %v1871
  %2161 = vst.msk [vmem:[%s3 + $0x108] sm:$0xf] %vm2094, %v1872
  %2162 = vst.msk [vmem:[%s3 + $0x10c] sm:$0xf] %vm2094, %v1873
  %2163 = vst.msk [vmem:[%s3 + $0x110] sm:$0xf] %vm2094, %v1874
  %2164 = vst.msk [vmem:[%s3 + $0x114] sm:$0xf] %vm2094, %v1875
  %2165 = vst.msk [vmem:[%s3 + $0x118] sm:$0xf] %vm2094, %v1876
  %2166 = vst.msk [vmem:[%s3 + $0x11c] sm:$0xf] %vm2094, %v1877
  %2167 = vst.msk [vmem:[%s3 + $0x120] sm:$0xf] %vm2094, %v1878
  %2168 = vst.msk [vmem:[%s3 + $0x124] sm:$0xf] %vm2094, %v1879
  %2169 = vst.msk [vmem:[%s3 + $0x128] sm:$0xf] %vm2094, %v1880
  %2170 = vst.msk [vmem:[%s3 + $0x12c] sm:$0xf] %vm2094, %v1881
  %2171 = vst.msk [vmem:[%s3 + $0x130] sm:$0xf] %vm2094, %v1882
  %2172 = vst.msk [vmem:[%s3 + $0x134] sm:$0xf] %vm2094, %v1883
  %2173 = vst.msk [vmem:[%s3 + $0x138] sm:$0xf] %vm2094, %v1884
  %2174 = vst.msk [vmem:[%s3 + $0x13c] sm:$0xf] %vm2094, %v1885
  %2175 = vst.msk [vmem:[%s3 + $0x140] sm:$0xf] %vm2094, %v1886
  %2176 = vst.msk [vmem:[%s3 + $0x144] sm:$0xf] %vm2094, %v1887
  %2177 = vst.msk [vmem:[%s3 + $0x148] sm:$0xf] %vm2094, %v1888
  %2178 = vst.msk [vmem:[%s3 + $0x14c] sm:$0xf] %vm2094, %v1889
  %2179 = vst.msk [vmem:[%s3 + $0x150] sm:$0xf] %vm2094, %v1890
  %2180 = vst.msk [vmem:[%s3 + $0x154] sm:$0xf] %vm2094, %v1891
  %2181 = vst.msk [vmem:[%s3 + $0x158] sm:$0xf] %vm2094, %v1892
  %2182 = vst.msk [vmem:[%s3 + $0x15c] sm:$0xf] %vm2094, %v1893
  %2183 = vst.msk [vmem:[%s3 + $0x160] sm:$0xf] %vm2094, %v1894
  %2184 = vst.msk [vmem:[%s3 + $0x164] sm:$0xf] %vm2094, %v1895
  %2185 = vst.msk [vmem:[%s3 + $0x168] sm:$0xf] %vm2094, %v1896
  %2186 = vst.msk [vmem:[%s3 + $0x16c] sm:$0xf] %vm2094, %v1897
  %2187 = vst.msk [vmem:[%s3 + $0x170] sm:$0xf] %vm2094, %v1898
  %2188 = vst.msk [vmem:[%s3 + $0x174] sm:$0xf] %vm2094, %v1899
  %2189 = vst.msk [vmem:[%s3 + $0x178] sm:$0xf] %vm2094, %v1900
  %2190 = vst.msk [vmem:[%s3 + $0x17c] sm:$0xf] %vm2094, %v1901
  %2191 = vst.msk [vmem:[%s3 + $0x180] sm:$0xf] %vm2094, %v1902
  %2192 = vst.msk [vmem:[%s3 + $0x184] sm:$0xf] %vm2094, %v1903
  %2193 = vst.msk [vmem:[%s3 + $0x188] sm:$0xf] %vm2094, %v1904
  %2194 = vst.msk [vmem:[%s3 + $0x18c] sm:$0xf] %vm2094, %v1905
  %2195 = vst.msk [vmem:[%s3 + $0x190] sm:$0xf] %vm2094, %v1906
  %2196 = vst.msk [vmem:[%s3 + $0x194] sm:$0xf] %vm2094, %v1907
  %2197 = vst.msk [vmem:[%s3 + $0x198] sm:$0xf] %vm2094, %v1908
  %2198 = vst.msk [vmem:[%s3 + $0x19c] sm:$0xf] %vm2094, %v1909
  %2199 = vst.msk [vmem:[%s3 + $0x1a0] sm:$0xf] %vm2094, %v1910
  %2200 = vst.msk [vmem:[%s3 + $0x1a4] sm:$0xf] %vm2094, %v1911
  %2201 = vst.msk [vmem:[%s3 + $0x1a8] sm:$0xf] %vm2094, %v1912
  %2202 = vst.msk [vmem:[%s3 + $0x1ac] sm:$0xf] %vm2094, %v1913
  %2203 = vst.msk [vmem:[%s3 + $0x1b0] sm:$0xf] %vm2094, %v1914
  %2204 = vst.msk [vmem:[%s3 + $0x1b4] sm:$0xf] %vm2094, %v1915
  %2205 = vst.msk [vmem:[%s3 + $0x1b8] sm:$0xf] %vm2094, %v1916
  %2206 = vst.msk [vmem:[%s3 + $0x1bc] sm:$0xf] %vm2094, %v1917
  %2207 = vst.msk [vmem:[%s3 + $0x1c0] sm:$0xf] %vm2094, %v1918
  %2208 = vst.msk [vmem:[%s3 + $0x1c4] sm:$0xf] %vm2094, %v1919
  %2209 = vst.msk [vmem:[%s3 + $0x1c8] sm:$0xf] %vm2094, %v1920
  %2210 = vst.msk [vmem:[%s3 + $0x1cc] sm:$0xf] %vm2094, %v1921
  %2211 = vst.msk [vmem:[%s3 + $0x1d0] sm:$0xf] %vm2094, %v1922
  %2212 = vst.msk [vmem:[%s3 + $0x1d4] sm:$0xf] %vm2094, %v1923
  %2213 = vst.msk [vmem:[%s3 + $0x1d8] sm:$0xf] %vm2094, %v1924
  %2214 = vst.msk [vmem:[%s3 + $0x1dc] sm:$0xf] %vm2094, %v1925
  %2215 = vst.msk [vmem:[%s3 + $0x1e0] sm:$0xf] %vm2094, %v1926
  %2216 = vst.msk [vmem:[%s3 + $0x1e4] sm:$0xf] %vm2094, %v1927
  %2217 = vst.msk [vmem:[%s3 + $0x1e8] sm:$0xf] %vm2094, %v1928
  %2218 = vst.msk [vmem:[%s3 + $0x1ec] sm:$0xf] %vm2094, %v1929
  %2219 = vst.msk [vmem:[%s3 + $0x1f0] sm:$0xf] %vm2094, %v1930
  %2220 = vst.msk [vmem:[%s3 + $0x1f4] sm:$0xf] %vm2094, %v1931
  %2221 = vst.msk [vmem:[%s3 + $0x1f8] sm:$0xf] %vm2094, %v1932
  %2222 = vst.msk [vmem:[%s3 + $0x1fc] sm:$0xf] %vm2094, %v1933
  %2223 = vst.msk [vmem:[%s3 + $0x200] sm:$0xf] %vm2094, %v1934
  %2224 = vst.msk [vmem:[%s3 + $0x204] sm:$0xf] %vm2094, %v1935
  %2225 = vst.msk [vmem:[%s3 + $0x208] sm:$0xf] %vm2094, %v1936
  %2226 = vst.msk [vmem:[%s3 + $0x20c] sm:$0xf] %vm2094, %v1937
  %2227 = vst.msk [vmem:[%s3 + $0x210] sm:$0xf] %vm2094, %v1938
  %2228 = vst.msk [vmem:[%s3 + $0x214] sm:$0xf] %vm2094, %v1939
  %2229 = vst.msk [vmem:[%s3 + $0x218] sm:$0xf] %vm2094, %v1940
  %2230 = vst.msk [vmem:[%s3 + $0x21c] sm:$0xf] %vm2094, %v1941
  %2231 = vst.msk [vmem:[%s3 + $0x220] sm:$0xf] %vm2094, %v1942
  %2232 = vst.msk [vmem:[%s3 + $0x224] sm:$0xf] %vm2094, %v1943
  %2233 = vst.msk [vmem:[%s3 + $0x228] sm:$0xf] %vm2094, %v1944
  %2234 = vst.msk [vmem:[%s3 + $0x22c] sm:$0xf] %vm2094, %v1945
  %2235 = vst.msk [vmem:[%s3 + $0x230] sm:$0xf] %vm2094, %v1946
  %2236 = vst.msk [vmem:[%s3 + $0x234] sm:$0xf] %vm2094, %v1947
  %2237 = vst.msk [vmem:[%s3 + $0x238] sm:$0xf] %vm2094, %v1948
  %2238 = vst.msk [vmem:[%s3 + $0x23c] sm:$0xf] %vm2094, %v1949
  // Predicated region
  $region14: #{simpleconv3_forward.4} parent=0 // pred_check
    _
  $region15: #{simpleconv3_forward.4} parent=0 // pred_check_branch
    %2240 = sbr.rel (0) target = $region17
  $region16: #{simpleconv3_forward.4} parent=0 // pred_region
    _
  $region17: #{simpleconv3_forward.4} parent=0 // pred_fallthru
    _
  // Predicated region
  $region18: #{simpleconv3_forward.4} parent=0 // pred_check
    _
  $region19: #{simpleconv3_forward.4} parent=0 // pred_check_branch
    %2242 = sbr.rel (0) target = $region21
  $region20: #{simpleconv3_forward.4} parent=0 // pred_region
    _
  $region21: #{simpleconv3_forward.4} parent=0 // pred_fallthru
    _

// kernel: simpleconv3_forward.5
$region0: #{simpleconv3_forward.5}
  #allocation0 [shape = 'u32[]', space=smem, size = 0x4, offset = 0x4, fixed_abs, tag = 'smem constant byte address 0x4 - core index']
  #allocation1 [shape = 'u32[144,128]{1,0:T(1,128)}', space=vmem, size = 0x12000, scoped, tag = 'internal scratch']
  %s0 = inlined_call_operand.vmem [shape: bf16[288,108], index: 0, kind: input, shape index: {}]
  %s1 = inlined_call_operand.vmem [shape: bf16[108,24], index: 1, kind: input, shape index: {}]
  %s2 = inlined_call_operand.vmem [shape: f32[1,24], index: 2, kind: input, shape index: {}]
  %s3 = inlined_call_operand.vmem [shape: bf16[288,24], index: 3, kind: output, shape index: {}]
  %s4 = sld [smem:[#allocation0]]
  $region22: #{simpleconv3_forward.5} parent=0
    _
  %s6 = ssub.s32 1, %s4
  %s7 = scalar_select 0, %s6, %s4
  // Predicated region
  $region2: #{simpleconv3_forward.5} parent=0 // pred_check
    _
  $region3: #{simpleconv3_forward.5} parent=0 // pred_check_branch
    %9 = sbr.rel (0) target = $region5
  $region4: #{simpleconv3_forward.5} parent=0 // pred_region
    _
  $region5: #{simpleconv3_forward.5} parent=0 // pred_fallthru
    _
  // Predicated region
  $region6: #{simpleconv3_forward.5} parent=0 // pred_check
    _
  $region7: #{simpleconv3_forward.5} parent=0 // pred_check_branch
    %11 = sbr.rel (0) target = $region9
  $region8: #{simpleconv3_forward.5} parent=0 // pred_region
    _
  $region9: #{simpleconv3_forward.5} parent=0 // pred_fallthru
    _
  // Predicated region
  $region10: #{simpleconv3_forward.5} parent=0 // pred_check
    _
  $region11: #{simpleconv3_forward.5} parent=0 // pred_check_branch
    %13 = sbr.rel (0) target = $region13
  $region12: #{simpleconv3_forward.5} parent=0 // pred_region
    _
  $region13: #{simpleconv3_forward.5} parent=0 // pred_fallthru
    _
  %v15 = vld [vmem:[%s0] sm:$0xf]
  %v16 = vld [vmem:[%s0 + $0x4] sm:$0xf]
  %v17 = vld [vmem:[%s0 + $0x8] sm:$0xf]
  %v18 = vld [vmem:[%s0 + $0xc] sm:$0xf]
  %v19 = vld [vmem:[%s0 + $0x10] sm:$0xf]
  %v20 = vld [vmem:[%s0 + $0x14] sm:$0xf]
  %v21 = vld [vmem:[%s0 + $0x18] sm:$0xf]
  %v22 = vld [vmem:[%s0 + $0x1c] sm:$0xf]
  %v23 = vld [vmem:[%s0 + $0x20] sm:$0xf]
  %v24 = vld [vmem:[%s0 + $0x24] sm:$0xf]
  %v25 = vld [vmem:[%s0 + $0x28] sm:$0xf]
  %v26 = vld [vmem:[%s0 + $0x2c] sm:$0xf]
  %v27 = vld [vmem:[%s0 + $0x30] sm:$0xf]
  %v28 = vld [vmem:[%s0 + $0x34] sm:$0xf]
  %v29 = vld [vmem:[%s0 + $0x38] sm:$0xf]
  %v30 = vld [vmem:[%s0 + $0x3c] sm:$0xf]
  %v31 = vld [vmem:[%s0 + $0x40] sm:$0xf]
  %v32 = vld [vmem:[%s0 + $0x44] sm:$0xf]
  %v33 = vld [vmem:[%s0 + $0x48] sm:$0xf]
  %v34 = vld [vmem:[%s0 + $0x4c] sm:$0xf]
  %v35 = vld [vmem:[%s0 + $0x50] sm:$0xf]
  %v36 = vld [vmem:[%s0 + $0x54] sm:$0xf]
  %v37 = vld [vmem:[%s0 + $0x58] sm:$0xf]
  %v38 = vld [vmem:[%s0 + $0x5c] sm:$0xf]
  %v39 = vld [vmem:[%s0 + $0x60] sm:$0xf]
  %v40 = vld [vmem:[%s0 + $0x64] sm:$0xf]
  %v41 = vld [vmem:[%s0 + $0x68] sm:$0xf]
  %v42 = vld [vmem:[%s0 + $0x6c] sm:$0xf]
  %v43 = vld [vmem:[%s0 + $0x70] sm:$0xf]
  %v44 = vld [vmem:[%s0 + $0x74] sm:$0xf]
  %v45 = vld [vmem:[%s0 + $0x78] sm:$0xf]
  %v46 = vld [vmem:[%s0 + $0x7c] sm:$0xf]
  %v47 = vld [vmem:[%s0 + $0x80] sm:$0xf]
  %v48 = vld [vmem:[%s0 + $0x84] sm:$0xf]
  %v49 = vld [vmem:[%s0 + $0x88] sm:$0xf]
  %v50 = vld [vmem:[%s0 + $0x8c] sm:$0xf]
  %v51 = vld [vmem:[%s1] sm:$0xf]
  %v52 = vld [vmem:[%s1 + $0x4] sm:$0xf]
  %v53 = vld [vmem:[%s1 + $0x8] sm:$0xf]
  %v54 = vld [vmem:[%s1 + $0xc] sm:$0xf]
  %v55 = vld [vmem:[%s1 + $0x10] sm:$0xf]
  %v56 = vld [vmem:[%s1 + $0x14] sm:$0xf]
  %v57 = vld [vmem:[%s1 + $0x18] sm:$0xf]
  %v58 = vld [vmem:[%s1 + $0x1c] sm:$0xf]
  %v59 = vld [vmem:[%s1 + $0x20] sm:$0xf]
  %v60 = vld [vmem:[%s1 + $0x24] sm:$0xf]
  %v61 = vld [vmem:[%s1 + $0x28] sm:$0xf]
  %v62 = vld [vmem:[%s1 + $0x2c] sm:$0xf]
  %v63 = vld [vmem:[%s1 + $0x30] sm:$0xf]
  %v64 = vld [vmem:[%s1 + $0x34] sm:$0x3]
  %v65 = vld [vmem:[%s2] sm:$0x1]
  %v67 = vlaneseq
  %v68 = vshrl.u32 %v67, 7
  %v69 = vsub.s32 0, %v68
  %v70 = vrot.slane %v65, %v69
  %v108 = vunpack.c.l.b16 %v15
  %v109 = vunpack.c.l.b16 %v16
  %v110 = vunpack.c.l.b16 %v17
  %v111 = vunpack.c.l.b16 %v18
  %v112 = vunpack.c.l.b16 %v19
  %v113 = vunpack.c.l.b16 %v20
  %v114 = vunpack.c.l.b16 %v21
  %v115 = vunpack.c.l.b16 %v22
  %v116 = vunpack.c.l.b16 %v23
  %v117 = vunpack.c.l.b16 %v24
  %v118 = vunpack.c.l.b16 %v25
  %v119 = vunpack.c.l.b16 %v26
  %v120 = vunpack.c.l.b16 %v27
  %v121 = vunpack.c.l.b16 %v28
  %v122 = vunpack.c.l.b16 %v29
  %v123 = vunpack.c.l.b16 %v30
  %v124 = vunpack.c.l.b16 %v31
  %v125 = vunpack.c.l.b16 %v32
  %v126 = vunpack.c.l.b16 %v33
  %v127 = vunpack.c.l.b16 %v34
  %v128 = vunpack.c.l.b16 %v35
  %v129 = vunpack.c.l.b16 %v36
  %v130 = vunpack.c.l.b16 %v37
  %v131 = vunpack.c.l.b16 %v38
  %v132 = vunpack.c.l.b16 %v39
  %v133 = vunpack.c.l.b16 %v40
  %v134 = vunpack.c.l.b16 %v41
  %v135 = vunpack.c.l.b16 %v42
  %v136 = vunpack.c.l.b16 %v43
  %v137 = vunpack.c.l.b16 %v44
  %v138 = vunpack.c.l.b16 %v45
  %v139 = vunpack.c.l.b16 %v46
  %v140 = vunpack.c.l.b16 %v47
  %v141 = vunpack.c.l.b16 %v48
  %v142 = vunpack.c.l.b16 %v49
  %v143 = vunpack.c.l.b16 %v50
  %v144 = vpack.c.b16 %v109, %v108
  %v145 = vpack.c.b16 %v111, %v110
  %v146 = vpack.c.b16 %v113, %v112
  %v147 = vpack.c.b16 %v115, %v114
  %v148 = vpack.c.b16 %v117, %v116
  %v149 = vpack.c.b16 %v119, %v118
  %v150 = vpack.c.b16 %v121, %v120
  %v151 = vpack.c.b16 %v123, %v122
  %v152 = vpack.c.b16 %v125, %v124
  %v153 = vpack.c.b16 %v127, %v126
  %v154 = vpack.c.b16 %v129, %v128
  %v155 = vpack.c.b16 %v131, %v130
  %v156 = vpack.c.b16 %v133, %v132
  %v157 = vpack.c.b16 %v135, %v134
  %v158 = vpack.c.b16 %v137, %v136
  %v159 = vpack.c.b16 %v139, %v138
  %v160 = vpack.c.b16 %v141, %v140
  %v161 = vpack.c.b16 %v143, %v142
  %v176 = vunpack.c.l.b16 %v51
  %v177 = vunpack.c.l.b16 %v52
  %v178 = vunpack.c.l.b16 %v53
  %v179 = vunpack.c.l.b16 %v54
  %v180 = vunpack.c.l.b16 %v55
  %v181 = vunpack.c.l.b16 %v56
  %v182 = vunpack.c.l.b16 %v57
  %v183 = vunpack.c.l.b16 %v58
  %v184 = vunpack.c.l.b16 %v59
  %v185 = vunpack.c.l.b16 %v60
  %v186 = vunpack.c.l.b16 %v61
  %v187 = vunpack.c.l.b16 %v62
  %v188 = vunpack.c.l.b16 %v63
  %v189 = vunpack.c.l.b16 %v64
  %v190 = vpack.c.b16 %v177, %v176
  %v191 = vpack.c.b16 %v179, %v178
  %v192 = vpack.c.b16 %v181, %v180
  %v193 = vpack.c.b16 %v183, %v182
  %v194 = vpack.c.b16 %v185, %v184
  %v195 = vpack.c.b16 %v187, %v186
  %v196 = vpack.c.b16 %v189, %v188
  %vm203 = vcmask 883712
  %v205 = vsel %vm203, %v144, 0
  %v208 = vsel %vm203, %v145, 0
  %v211 = vsel %vm203, %v146, 0
  %v214 = vsel %vm203, %v147, 0
  %v217 = vsel %vm203, %v148, 0
  %v220 = vsel %vm203, %v149, 0
  %v223 = vsel %vm203, %v150, 0
  %v226 = vsel %vm203, %v151, 0
  %v229 = vsel %vm203, %v152, 0
  %v232 = vsel %vm203, %v153, 0
  %v235 = vsel %vm203, %v154, 0
  %v238 = vsel %vm203, %v155, 0
  %v241 = vsel %vm203, %v156, 0
  %v244 = vsel %vm203, %v157, 0
  %v247 = vsel %vm203, %v158, 0
  %v250 = vsel %vm203, %v159, 0
  %v253 = vsel %vm203, %v160, 0
  %v256 = vsel %vm203, %v161, 0
  %vm258 = vcmask 1045504
  %v260 = vsel %vm258, %v196, 0
  %262 = vmatprep.subr.bf16.mxu0 0
  %263 = vmatpush1.bf16.msra.mxu0 0
  %264 = vmatprep.subr.bf16.mxu0 0
  %265 = vmatpush1.bf16.msra.mxu0 %v260
  %266 = vmatprep.subr.bf16.mxu0 0
  %267 = vmatpush1.bf16.msra.mxu0 %v195
  %268 = vmatprep.subr.bf16.mxu0 0
  %269 = vmatpush1.bf16.msra.mxu0 %v194
  %270 = vmatprep.subr.bf16.mxu0 0
  %271 = vmatpush1.bf16.msra.mxu0 %v193
  %272 = vmatprep.subr.bf16.mxu0 0
  %273 = vmatpush1.bf16.msra.mxu0 %v192
  %274 = vmatprep.subr.bf16.mxu0 0
  %275 = vmatpush1.bf16.msra.mxu0 %v191
  %276 = vmatprep.subr.bf16.mxu0 0
  %277 = vmatpush1.bf16.msra.mxu0 %v190
  %278 = vmatprep.subr.bf16.mxu0 0
  %279 = vmatpush2.bf16.msra.mxu0 0
  %280 = vmatprep.subr.bf16.mxu0 0
  %281 = vmatpush2.bf16.msra.mxu0 0
  %282 = vmatprep.subr.bf16.mxu0 0
  %283 = vmatpush2.bf16.msra.mxu0 0
  %284 = vmatprep.subr.bf16.mxu0 0
  %285 = vmatpush2.bf16.msra.mxu0 0
  %286 = vmatprep.subr.bf16.mxu0 0
  %287 = vmatpush2.bf16.msra.mxu0 0
  %288 = vmatprep.subr.bf16.mxu0 0
  %289 = vmatpush2.bf16.msra.mxu0 0
  %290 = vmatprep.subr.bf16.mxu0 0
  %291 = vmatpush2.bf16.msra.mxu0 0
  %292 = vmatprep.subr.bf16.mxu0 0
  %293 = vmatpush2.bf16.msra.mxu0 0
  %294 = vmatprep.mubr.bf16.mxu0 0
  %295 = vmatmul.mubr.bf16.gmra.mxu0 %v205
  %v296 = vpop.f32.mrf.mxu0
  %v297 = vadd.f32 %v70, %v296
  %v298 = vpop.f32.mrf.mxu0
  %v299 = vpop.f32.mrf.mxu0
  %v300 = vadd.f32 %v70, %v299
  %v301 = vpop.f32.mrf.mxu0
  %302 = vmatprep.mubr.bf16.mxu0 0
  %303 = vmatmul.mubr.bf16.gmra.mxu0 %v208
  %v304 = vpop.f32.mrf.mxu0
  %v305 = vadd.f32 %v70, %v304
  %v306 = vpop.f32.mrf.mxu0
  %v307 = vpop.f32.mrf.mxu0
  %v308 = vadd.f32 %v70, %v307
  %v309 = vpop.f32.mrf.mxu0
  %310 = vmatprep.mubr.bf16.mxu0 0
  %311 = vmatmul.mubr.bf16.gmra.mxu0 %v211
  %v312 = vpop.f32.mrf.mxu0
  %v313 = vadd.f32 %v70, %v312
  %v314 = vpop.f32.mrf.mxu0
  %v315 = vpop.f32.mrf.mxu0
  %v316 = vadd.f32 %v70, %v315
  %v317 = vpop.f32.mrf.mxu0
  %318 = vmatprep.mubr.bf16.mxu0 0
  %319 = vmatmul.mubr.bf16.gmra.mxu0 %v214
  %v320 = vpop.f32.mrf.mxu0
  %v321 = vadd.f32 %v70, %v320
  %v322 = vpop.f32.mrf.mxu0
  %v323 = vpop.f32.mrf.mxu0
  %v324 = vadd.f32 %v70, %v323
  %v325 = vpop.f32.mrf.mxu0
  %326 = vmatprep.mubr.bf16.mxu0 0
  %327 = vmatmul.mubr.bf16.gmra.mxu0 %v217
  %v328 = vpop.f32.mrf.mxu0
  %v329 = vadd.f32 %v70, %v328
  %v330 = vpop.f32.mrf.mxu0
  %v331 = vpop.f32.mrf.mxu0
  %v332 = vadd.f32 %v70, %v331
  %v333 = vpop.f32.mrf.mxu0
  %334 = vmatprep.mubr.bf16.mxu0 0
  %335 = vmatmul.mubr.bf16.gmra.mxu0 %v220
  %v336 = vpop.f32.mrf.mxu0
  %v337 = vadd.f32 %v70, %v336
  %v338 = vpop.f32.mrf.mxu0
  %v339 = vpop.f32.mrf.mxu0
  %v340 = vadd.f32 %v70, %v339
  %v341 = vpop.f32.mrf.mxu0
  %342 = vmatprep.mubr.bf16.mxu0 0
  %343 = vmatmul.mubr.bf16.gmra.mxu0 %v223
  %v344 = vpop.f32.mrf.mxu0
  %v345 = vadd.f32 %v70, %v344
  %v346 = vpop.f32.mrf.mxu0
  %v347 = vpop.f32.mrf.mxu0
  %v348 = vadd.f32 %v70, %v347
  %v349 = vpop.f32.mrf.mxu0
  %350 = vmatprep.mubr.bf16.mxu0 0
  %351 = vmatmul.mubr.bf16.gmra.mxu0 %v226
  %v352 = vpop.f32.mrf.mxu0
  %v353 = vadd.f32 %v70, %v352
  %v354 = vpop.f32.mrf.mxu0
  %v355 = vpop.f32.mrf.mxu0
  %v356 = vadd.f32 %v70, %v355
  %v357 = vpop.f32.mrf.mxu0
  %358 = vmatprep.mubr.bf16.mxu0 0
  %359 = vmatmul.mubr.bf16.gmra.mxu0 %v229
  %v360 = vpop.f32.mrf.mxu0
  %v361 = vadd.f32 %v70, %v360
  %v362 = vpop.f32.mrf.mxu0
  %v363 = vpop.f32.mrf.mxu0
  %v364 = vadd.f32 %v70, %v363
  %v365 = vpop.f32.mrf.mxu0
  %366 = vmatprep.mubr.bf16.mxu0 0
  %367 = vmatmul.mubr.bf16.gmra.mxu0 %v232
  %v368 = vpop.f32.mrf.mxu0
  %v369 = vadd.f32 %v70, %v368
  %v370 = vpop.f32.mrf.mxu0
  %v371 = vpop.f32.mrf.mxu0
  %v372 = vadd.f32 %v70, %v371
  %v373 = vpop.f32.mrf.mxu0
  %374 = vmatprep.mubr.bf16.mxu0 0
  %375 = vmatmul.mubr.bf16.gmra.mxu0 %v235
  %v376 = vpop.f32.mrf.mxu0
  %v377 = vadd.f32 %v70, %v376
  %v378 = vpop.f32.mrf.mxu0
  %v379 = vpop.f32.mrf.mxu0
  %v380 = vadd.f32 %v70, %v379
  %v381 = vpop.f32.mrf.mxu0
  %382 = vmatprep.mubr.bf16.mxu0 0
  %383 = vmatmul.mubr.bf16.gmra.mxu0 %v238
  %v384 = vpop.f32.mrf.mxu0
  %v385 = vadd.f32 %v70, %v384
  %v386 = vpop.f32.mrf.mxu0
  %v387 = vpop.f32.mrf.mxu0
  %v388 = vadd.f32 %v70, %v387
  %v389 = vpop.f32.mrf.mxu0
  %390 = vmatprep.mubr.bf16.mxu0 0
  %391 = vmatmul.mubr.bf16.gmra.mxu0 %v241
  %v392 = vpop.f32.mrf.mxu0
  %v393 = vadd.f32 %v70, %v392
  %v394 = vpop.f32.mrf.mxu0
  %v395 = vpop.f32.mrf.mxu0
  %v396 = vadd.f32 %v70, %v395
  %v397 = vpop.f32.mrf.mxu0
  %398 = vmatprep.mubr.bf16.mxu0 0
  %399 = vmatmul.mubr.bf16.gmra.mxu0 %v244
  %v400 = vpop.f32.mrf.mxu0
  %v401 = vadd.f32 %v70, %v400
  %v402 = vpop.f32.mrf.mxu0
  %v403 = vpop.f32.mrf.mxu0
  %v404 = vadd.f32 %v70, %v403
  %v405 = vpop.f32.mrf.mxu0
  %406 = vmatprep.mubr.bf16.mxu0 0
  %407 = vmatmul.mubr.bf16.gmra.mxu0 %v247
  %v408 = vpop.f32.mrf.mxu0
  %v409 = vadd.f32 %v70, %v408
  %v410 = vpop.f32.mrf.mxu0
  %v411 = vpop.f32.mrf.mxu0
  %v412 = vadd.f32 %v70, %v411
  %v413 = vpop.f32.mrf.mxu0
  %414 = vmatprep.mubr.bf16.mxu0 0
  %415 = vmatmul.mubr.bf16.gmra.mxu0 %v250
  %v416 = vpop.f32.mrf.mxu0
  %v417 = vadd.f32 %v70, %v416
  %v418 = vpop.f32.mrf.mxu0
  %v419 = vpop.f32.mrf.mxu0
  %v420 = vadd.f32 %v70, %v419
  %v421 = vpop.f32.mrf.mxu0
  %422 = vmatprep.mubr.bf16.mxu0 0
  %423 = vmatmul.mubr.bf16.gmra.mxu0 %v253
  %v424 = vpop.f32.mrf.mxu0
  %v425 = vadd.f32 %v70, %v424
  %v426 = vpop.f32.mrf.mxu0
  %v427 = vpop.f32.mrf.mxu0
  %v428 = vadd.f32 %v70, %v427
  %v429 = vpop.f32.mrf.mxu0
  %430 = vmatprep.mubr.bf16.mxu0 0
  %431 = vmatmul.mubr.bf16.gmra.mxu0 %v256
  %v432 = vpop.f32.mrf.mxu0
  %v433 = vadd.f32 %v70, %v432
  %v434 = vpop.f32.mrf.mxu0
  %v435 = vpop.f32.mrf.mxu0
  %v436 = vadd.f32 %v70, %v435
  %v437 = vpop.f32.mrf.mxu0
  %438 = vdwg.mxu0
  %v439 = vmax.f32 %v297, 0.0
  %v440 = vmax.f32 %v300, 0.0
  %v441 = vmax.f32 %v305, 0.0
  %v442 = vmax.f32 %v308, 0.0
  %v443 = vmax.f32 %v313, 0.0
  %v444 = vmax.f32 %v316, 0.0
  %v445 = vmax.f32 %v321, 0.0
  %v446 = vmax.f32 %v324, 0.0
  %v447 = vmax.f32 %v329, 0.0
  %v448 = vmax.f32 %v332, 0.0
  %v449 = vmax.f32 %v337, 0.0
  %v450 = vmax.f32 %v340, 0.0
  %v451 = vmax.f32 %v345, 0.0
  %v452 = vmax.f32 %v348, 0.0
  %v453 = vmax.f32 %v353, 0.0
  %v454 = vmax.f32 %v356, 0.0
  %v455 = vmax.f32 %v361, 0.0
  %v456 = vmax.f32 %v364, 0.0
  %v457 = vmax.f32 %v369, 0.0
  %v458 = vmax.f32 %v372, 0.0
  %v459 = vmax.f32 %v377, 0.0
  %v460 = vmax.f32 %v380, 0.0
  %v461 = vmax.f32 %v385, 0.0
  %v462 = vmax.f32 %v388, 0.0
  %v463 = vmax.f32 %v393, 0.0
  %v464 = vmax.f32 %v396, 0.0
  %v465 = vmax.f32 %v401, 0.0
  %v466 = vmax.f32 %v404, 0.0
  %v467 = vmax.f32 %v409, 0.0
  %v468 = vmax.f32 %v412, 0.0
  %v469 = vmax.f32 %v417, 0.0
  %v470 = vmax.f32 %v420, 0.0
  %v471 = vmax.f32 %v425, 0.0
  %v472 = vmax.f32 %v428, 0.0
  %v473 = vmax.f32 %v433, 0.0
  %v474 = vmax.f32 %v436, 0.0
  %v475 = vpack.c.bf16 %v440, %v439
  %v476 = vpack.c.bf16 %v442, %v441
  %v477 = vpack.c.bf16 %v444, %v443
  %v478 = vpack.c.bf16 %v446, %v445
  %v479 = vpack.c.bf16 %v448, %v447
  %v480 = vpack.c.bf16 %v450, %v449
  %v481 = vpack.c.bf16 %v452, %v451
  %v482 = vpack.c.bf16 %v454, %v453
  %v483 = vpack.c.bf16 %v456, %v455
  %v484 = vpack.c.bf16 %v458, %v457
  %v485 = vpack.c.bf16 %v460, %v459
  %v486 = vpack.c.bf16 %v462, %v461
  %v487 = vpack.c.bf16 %v464, %v463
  %v488 = vpack.c.bf16 %v466, %v465
  %v489 = vpack.c.bf16 %v468, %v467
  %v490 = vpack.c.bf16 %v470, %v469
  %v491 = vpack.c.bf16 %v472, %v471
  %v492 = vpack.c.bf16 %v474, %v473
  %v511 = vunpack.c.l.b16 %v475
  %v512 = vunpack.c.h.b16 %v475
  %v513 = vunpack.c.l.b16 %v476
  %v514 = vunpack.c.h.b16 %v476
  %v515 = vunpack.c.l.b16 %v477
  %v516 = vunpack.c.h.b16 %v477
  %v517 = vunpack.c.l.b16 %v478
  %v518 = vunpack.c.h.b16 %v478
  %v519 = vunpack.c.l.b16 %v479
  %v520 = vunpack.c.h.b16 %v479
  %v521 = vunpack.c.l.b16 %v480
  %v522 = vunpack.c.h.b16 %v480
  %v523 = vunpack.c.l.b16 %v481
  %v524 = vunpack.c.h.b16 %v481
  %v525 = vunpack.c.l.b16 %v482
  %v526 = vunpack.c.h.b16 %v482
  %v527 = vunpack.c.l.b16 %v483
  %v528 = vunpack.c.h.b16 %v483
  %v529 = vunpack.c.l.b16 %v484
  %v530 = vunpack.c.h.b16 %v484
  %v531 = vunpack.c.l.b16 %v485
  %v532 = vunpack.c.h.b16 %v485
  %v533 = vunpack.c.l.b16 %v486
  %v534 = vunpack.c.h.b16 %v486
  %v535 = vunpack.c.l.b16 %v487
  %v536 = vunpack.c.h.b16 %v487
  %v537 = vunpack.c.l.b16 %v488
  %v538 = vunpack.c.h.b16 %v488
  %v539 = vunpack.c.l.b16 %v489
  %v540 = vunpack.c.h.b16 %v489
  %v541 = vunpack.c.l.b16 %v490
  %v542 = vunpack.c.h.b16 %v490
  %v543 = vunpack.c.l.b16 %v491
  %v544 = vunpack.c.h.b16 %v491
  %v545 = vunpack.c.l.b16 %v492
  %v546 = vunpack.c.h.b16 %v492
  %v547 = vpack.c.b16 %v511, %v511
  %v548 = vpack.c.b16 %v512, %v512
  %v549 = vpack.c.b16 %v513, %v513
  %v550 = vpack.c.b16 %v514, %v514
  %v551 = vpack.c.b16 %v515, %v515
  %v552 = vpack.c.b16 %v516, %v516
  %v553 = vpack.c.b16 %v517, %v517
  %v554 = vpack.c.b16 %v518, %v518
  %v555 = vpack.c.b16 %v519, %v519
  %v556 = vpack.c.b16 %v520, %v520
  %v557 = vpack.c.b16 %v521, %v521
  %v558 = vpack.c.b16 %v522, %v522
  %v559 = vpack.c.b16 %v523, %v523
  %v560 = vpack.c.b16 %v524, %v524
  %v561 = vpack.c.b16 %v525, %v525
  %v562 = vpack.c.b16 %v526, %v526
  %v563 = vpack.c.b16 %v527, %v527
  %v564 = vpack.c.b16 %v528, %v528
  %v565 = vpack.c.b16 %v529, %v529
  %v566 = vpack.c.b16 %v530, %v530
  %v567 = vpack.c.b16 %v531, %v531
  %v568 = vpack.c.b16 %v532, %v532
  %v569 = vpack.c.b16 %v533, %v533
  %v570 = vpack.c.b16 %v534, %v534
  %v571 = vpack.c.b16 %v535, %v535
  %v572 = vpack.c.b16 %v536, %v536
  %v573 = vpack.c.b16 %v537, %v537
  %v574 = vpack.c.b16 %v538, %v538
  %v575 = vpack.c.b16 %v539, %v539
  %v576 = vpack.c.b16 %v540, %v540
  %v577 = vpack.c.b16 %v541, %v541
  %v578 = vpack.c.b16 %v542, %v542
  %v579 = vpack.c.b16 %v543, %v543
  %v580 = vpack.c.b16 %v544, %v544
  %v581 = vpack.c.b16 %v545, %v545
  %v582 = vpack.c.b16 %v546, %v546
  %vm619 = vcmask 191488
  %620 = vst.msk [vmem:[%s3] sm:$0xf] %vm619, %v547
  %621 = vst.msk [vmem:[%s3 + $0x4] sm:$0xf] %vm619, %v548
  %622 = vst.msk [vmem:[%s3 + $0x8] sm:$0xf] %vm619, %v549
  %623 = vst.msk [vmem:[%s3 + $0xc] sm:$0xf] %vm619, %v550
  %624 = vst.msk [vmem:[%s3 + $0x10] sm:$0xf] %vm619, %v551
  %625 = vst.msk [vmem:[%s3 + $0x14] sm:$0xf] %vm619, %v552
  %626 = vst.msk [vmem:[%s3 + $0x18] sm:$0xf] %vm619, %v553
  %627 = vst.msk [vmem:[%s3 + $0x1c] sm:$0xf] %vm619, %v554
  %628 = vst.msk [vmem:[%s3 + $0x20] sm:$0xf] %vm619, %v555
  %629 = vst.msk [vmem:[%s3 + $0x24] sm:$0xf] %vm619, %v556
  %630 = vst.msk [vmem:[%s3 + $0x28] sm:$0xf] %vm619, %v557
  %631 = vst.msk [vmem:[%s3 + $0x2c] sm:$0xf] %vm619, %v558
  %632 = vst.msk [vmem:[%s3 + $0x30] sm:$0xf] %vm619, %v559
  %633 = vst.msk [vmem:[%s3 + $0x34] sm:$0xf] %vm619, %v560
  %634 = vst.msk [vmem:[%s3 + $0x38] sm:$0xf] %vm619, %v561
  %635 = vst.msk [vmem:[%s3 + $0x3c] sm:$0xf] %vm619, %v562
  %636 = vst.msk [vmem:[%s3 + $0x40] sm:$0xf] %vm619, %v563
  %637 = vst.msk [vmem:[%s3 + $0x44] sm:$0xf] %vm619, %v564
  %638 = vst.msk [vmem:[%s3 + $0x48] sm:$0xf] %vm619, %v565
  %639 = vst.msk [vmem:[%s3 + $0x4c] sm:$0xf] %vm619, %v566
  %640 = vst.msk [vmem:[%s3 + $0x50] sm:$0xf] %vm619, %v567
  %641 = vst.msk [vmem:[%s3 + $0x54] sm:$0xf] %vm619, %v568
  %642 = vst.msk [vmem:[%s3 + $0x58] sm:$0xf] %vm619, %v569
  %643 = vst.msk [vmem:[%s3 + $0x5c] sm:$0xf] %vm619, %v570
  %644 = vst.msk [vmem:[%s3 + $0x60] sm:$0xf] %vm619, %v571
  %645 = vst.msk [vmem:[%s3 + $0x64] sm:$0xf] %vm619, %v572
  %646 = vst.msk [vmem:[%s3 + $0x68] sm:$0xf] %vm619, %v573
  %647 = vst.msk [vmem:[%s3 + $0x6c] sm:$0xf] %vm619, %v574
  %648 = vst.msk [vmem:[%s3 + $0x70] sm:$0xf] %vm619, %v575
  %649 = vst.msk [vmem:[%s3 + $0x74] sm:$0xf] %vm619, %v576
  %650 = vst.msk [vmem:[%s3 + $0x78] sm:$0xf] %vm619, %v577
  %651 = vst.msk [vmem:[%s3 + $0x7c] sm:$0xf] %vm619, %v578
  %652 = vst.msk [vmem:[%s3 + $0x80] sm:$0xf] %vm619, %v579
  %653 = vst.msk [vmem:[%s3 + $0x84] sm:$0xf] %vm619, %v580
  %654 = vst.msk [vmem:[%s3 + $0x88] sm:$0xf] %vm619, %v581
  %655 = vst.msk [vmem:[%s3 + $0x8c] sm:$0xf] %vm619, %v582
  // Predicated region
  $region14: #{simpleconv3_forward.5} parent=0 // pred_check
    _
  $region15: #{simpleconv3_forward.5} parent=0 // pred_check_branch
    %657 = sbr.rel (0) target = $region17
  $region16: #{simpleconv3_forward.5} parent=0 // pred_region
    _
  $region17: #{simpleconv3_forward.5} parent=0 // pred_fallthru
    _
  // Predicated region
  $region18: #{simpleconv3_forward.5} parent=0 // pred_check
    _
  $region19: #{simpleconv3_forward.5} parent=0 // pred_check_branch
    %659 = sbr.rel (0) target = $region21
  $region20: #{simpleconv3_forward.5} parent=0 // pred_region
    _
  $region21: #{simpleconv3_forward.5} parent=0 // pred_fallthru
    _

// kernel: simpleconv3_forward.6
$region0: #{simpleconv3_forward.6}
  #allocation0 [shape = 'u32[]', space=smem, size = 0x4, offset = 0x4, fixed_abs, tag = 'smem constant byte address 0x4 - core index']
  #allocation1 [shape = 'u32[144,128]{1,0:T(1,128)}', space=vmem, size = 0x12000, scoped, tag = 'internal scratch']
  %s0 = inlined_call_operand.vmem [shape: bf16[72,216], index: 0, kind: input, shape index: {}]
  %s1 = inlined_call_operand.vmem [shape: bf16[216,48], index: 1, kind: input, shape index: {}]
  %s2 = inlined_call_operand.vmem [shape: f32[1,48], index: 2, kind: input, shape index: {}]
  %s3 = inlined_call_operand.vmem [shape: bf16[72,48], index: 3, kind: output, shape index: {}]
  %s4 = sld [smem:[#allocation0]]
  $region22: #{simpleconv3_forward.6} parent=0
    _
  %s6 = ssub.s32 1, %s4
  %s7 = scalar_select 0, %s6, %s4
  // Predicated region
  $region2: #{simpleconv3_forward.6} parent=0 // pred_check
    _
  $region3: #{simpleconv3_forward.6} parent=0 // pred_check_branch
    %9 = sbr.rel (0) target = $region5
  $region4: #{simpleconv3_forward.6} parent=0 // pred_region
    _
  $region5: #{simpleconv3_forward.6} parent=0 // pred_fallthru
    _
  // Predicated region
  $region6: #{simpleconv3_forward.6} parent=0 // pred_check
    _
  $region7: #{simpleconv3_forward.6} parent=0 // pred_check_branch
    %11 = sbr.rel (0) target = $region9
  $region8: #{simpleconv3_forward.6} parent=0 // pred_region
    _
  $region9: #{simpleconv3_forward.6} parent=0 // pred_fallthru
    _
  // Predicated region
  $region10: #{simpleconv3_forward.6} parent=0 // pred_check
    _
  $region11: #{simpleconv3_forward.6} parent=0 // pred_check_branch
    %13 = sbr.rel (0) target = $region13
  $region12: #{simpleconv3_forward.6} parent=0 // pred_region
    _
  $region13: #{simpleconv3_forward.6} parent=0 // pred_fallthru
    _
  %v15 = vld [vmem:[%s0] sm:$0xff]
  %v16 = vld [vmem:[%s0 + $0x8] sm:$0xff]
  %v17 = vld [vmem:[%s0 + $0x10] sm:$0xff]
  %v18 = vld [vmem:[%s0 + $0x18] sm:$0xff]
  %v19 = vld [vmem:[%s0 + $0x20] sm:$0xff]
  %v20 = vld [vmem:[%s0 + $0x28] sm:$0xff]
  %v21 = vld [vmem:[%s0 + $0x30] sm:$0xff]
  %v22 = vld [vmem:[%s0 + $0x38] sm:$0xff]
  %v23 = vld [vmem:[%s0 + $0x40] sm:$0xff]
  %v24 = vld [vmem:[%s1] sm:$0xf]
  %v25 = vld [vmem:[%s1 + $0x4] sm:$0xf]
  %v26 = vld [vmem:[%s1 + $0x8] sm:$0xf]
  %v27 = vld [vmem:[%s1 + $0xc] sm:$0xf]
  %v28 = vld [vmem:[%s1 + $0x10] sm:$0xf]
  %v29 = vld [vmem:[%s1 + $0x14] sm:$0xf]
  %v30 = vld [vmem:[%s1 + $0x18] sm:$0xf]
  %v31 = vld [vmem:[%s1 + $0x1c] sm:$0xf]
  %v32 = vld [vmem:[%s1 + $0x20] sm:$0xf]
  %v33 = vld [vmem:[%s1 + $0x24] sm:$0xf]
  %v34 = vld [vmem:[%s1 + $0x28] sm:$0xf]
  %v35 = vld [vmem:[%s1 + $0x2c] sm:$0xf]
  %v36 = vld [vmem:[%s1 + $0x30] sm:$0xf]
  %v37 = vld [vmem:[%s1 + $0x34] sm:$0xf]
  %v38 = vld [vmem:[%s1 + $0x38] sm:$0xf]
  %v39 = vld [vmem:[%s1 + $0x3c] sm:$0xf]
  %v40 = vld [vmem:[%s1 + $0x40] sm:$0xf]
  %v41 = vld [vmem:[%s1 + $0x44] sm:$0xf]
  %v42 = vld [vmem:[%s1 + $0x48] sm:$0xf]
  %v43 = vld [vmem:[%s1 + $0x4c] sm:$0xf]
  %v44 = vld [vmem:[%s1 + $0x50] sm:$0xf]
  %v45 = vld [vmem:[%s1 + $0x54] sm:$0xf]
  %v46 = vld [vmem:[%s1 + $0x58] sm:$0xf]
  %v47 = vld [vmem:[%s1 + $0x5c] sm:$0xf]
  %v48 = vld [vmem:[%s1 + $0x60] sm:$0xf]
  %v49 = vld [vmem:[%s1 + $0x64] sm:$0xf]
  %v50 = vld [vmem:[%s1 + $0x68] sm:$0xf]
  %v51 = vld [vmem:[%s2] sm:$0x1]
  %v53 = vlaneseq
  %v54 = vshrl.u32 %v53, 7
  %v55 = vsub.s32 0, %v54
  %v56 = vrot.slane %v51, %v55
  %v67 = vunpack.c.l.b16 %v15
  %v68 = vunpack.c.h.b16 %v15
  %v69 = vunpack.c.l.b16 %v16
  %v70 = vunpack.c.h.b16 %v16
  %v71 = vunpack.c.l.b16 %v17
  %v72 = vunpack.c.h.b16 %v17
  %v73 = vunpack.c.l.b16 %v18
  %v74 = vunpack.c.h.b16 %v18
  %v75 = vunpack.c.l.b16 %v19
  %v76 = vunpack.c.h.b16 %v19
  %v77 = vunpack.c.l.b16 %v20
  %v78 = vunpack.c.h.b16 %v20
  %v79 = vunpack.c.l.b16 %v21
  %v80 = vunpack.c.h.b16 %v21
  %v81 = vunpack.c.l.b16 %v22
  %v82 = vunpack.c.h.b16 %v22
  %v83 = vunpack.c.l.b16 %v23
  %v84 = vunpack.c.h.b16 %v23
  %v85 = vpack.c.b16 %v69, %v67
  %v86 = vpack.c.b16 %v70, %v68
  %v87 = vpack.c.b16 %v73, %v71
  %v88 = vpack.c.b16 %v74, %v72
  %v89 = vpack.c.b16 %v77, %v75
  %v90 = vpack.c.b16 %v78, %v76
  %v91 = vpack.c.b16 %v81, %v79
  %v92 = vpack.c.b16 %v82, %v80
  %v93 = vpack.c.b16 %v83, %v83
  %v94 = vpack.c.b16 %v84, %v84
  %v127 = vunpack.c.l.b16 %v24
  %v128 = vunpack.c.l.b16 %v25
  %v129 = vunpack.c.l.b16 %v26
  %v130 = vunpack.c.l.b16 %v27
  %v131 = vunpack.c.l.b16 %v28
  %v132 = vunpack.c.l.b16 %v29
  %v133 = vunpack.c.l.b16 %v30
  %v134 = vunpack.c.l.b16 %v31
  %v135 = vunpack.c.l.b16 %v32
  %v136 = vunpack.c.l.b16 %v33
  %v137 = vunpack.c.l.b16 %v34
  %v138 = vunpack.c.l.b16 %v35
  %v139 = vunpack.c.l.b16 %v36
  %v140 = vunpack.c.l.b16 %v37
  %v141 = vunpack.c.l.b16 %v38
  %v142 = vunpack.c.l.b16 %v39
  %v143 = vunpack.c.l.b16 %v40
  %v144 = vunpack.c.l.b16 %v41
  %v145 = vunpack.c.l.b16 %v42
  %v146 = vunpack.c.l.b16 %v43
  %v147 = vunpack.c.l.b16 %v44
  %v148 = vunpack.c.l.b16 %v45
  %v149 = vunpack.c.l.b16 %v46
  %v150 = vunpack.c.l.b16 %v47
  %v151 = vunpack.c.l.b16 %v48
  %v152 = vunpack.c.l.b16 %v49
  %v153 = vunpack.c.l.b16 %v50
  %v154 = vpack.c.b16 %v128, %v127
  %v155 = vpack.c.b16 %v130, %v129
  %v156 = vpack.c.b16 %v132, %v131
  %v157 = vpack.c.b16 %v134, %v133
  %v158 = vpack.c.b16 %v136, %v135
  %v159 = vpack.c.b16 %v138, %v137
  %v160 = vpack.c.b16 %v140, %v139
  %v161 = vpack.c.b16 %v142, %v141
  %v162 = vpack.c.b16 %v144, %v143
  %v163 = vpack.c.b16 %v146, %v145
  %v164 = vpack.c.b16 %v148, %v147
  %v165 = vpack.c.b16 %v150, %v149
  %v166 = vpack.c.b16 %v152, %v151
  %v167 = vpack.c.b16 %v153, %v153
  %vm181 = vcmask 719872
  %v183 = vsel %vm181, %v86, 0
  %v186 = vsel %vm181, %v88, 0
  %v189 = vsel %vm181, %v90, 0
  %v192 = vsel %vm181, %v92, 0
  %v195 = vsel %vm181, %v94, 0
  %vm197 = vcmask 1043456
  %v199 = vsel %vm197, %v167, 0
  %201 = vmatprep.subr.bf16.mxu0 0
  %202 = vmatpush1.bf16.msra.mxu0 %v161
  %203 = vmatprep.subr.bf16.mxu0 0
  %204 = vmatpush1.bf16.msra.mxu0 %v160
  %205 = vmatprep.subr.bf16.mxu0 0
  %206 = vmatpush1.bf16.msra.mxu0 %v159
  %207 = vmatprep.subr.bf16.mxu0 0
  %208 = vmatpush1.bf16.msra.mxu0 %v158
  %209 = vmatprep.subr.bf16.mxu0 0
  %210 = vmatpush1.bf16.msra.mxu0 %v157
  %211 = vmatprep.subr.bf16.mxu0 0
  %212 = vmatpush1.bf16.msra.mxu0 %v156
  %213 = vmatprep.subr.bf16.mxu0 0
  %214 = vmatpush1.bf16.msra.mxu0 %v155
  %215 = vmatprep.subr.bf16.mxu0 0
  %216 = vmatpush1.bf16.msra.mxu0 %v154
  %217 = vmatprep.subr.bf16.mxu0 0
  %218 = vmatpush2.bf16.msra.mxu0 0
  %219 = vmatprep.subr.bf16.mxu0 0
  %220 = vmatpush2.bf16.msra.mxu0 0
  %221 = vmatprep.subr.bf16.mxu0 0
  %222 = vmatpush2.bf16.msra.mxu0 %v199
  %223 = vmatprep.subr.bf16.mxu0 0
  %224 = vmatpush2.bf16.msra.mxu0 %v166
  %225 = vmatprep.subr.bf16.mxu0 0
  %226 = vmatpush2.bf16.msra.mxu0 %v165
  %227 = vmatprep.subr.bf16.mxu0 0
  %228 = vmatpush2.bf16.msra.mxu0 %v164
  %229 = vmatprep.subr.bf16.mxu0 0
  %230 = vmatpush2.bf16.msra.mxu0 %v163
  %231 = vmatprep.subr.bf16.mxu0 0
  %232 = vmatpush2.bf16.msra.mxu0 %v162
  %233 = vmatprep.mubr.bf16.mxu0 %v183
  %234 = vmatmul.mubr.bf16.gmra.mxu0 %v85
  %v235 = vpop.f32.mrf.mxu0
  %v236 = vadd.f32 %v56, %v235
  %v237 = vpop.f32.mrf.mxu0
  %v238 = vpop.f32.mrf.mxu0
  %v239 = vadd.f32 %v56, %v238
  %v240 = vpop.f32.mrf.mxu0
  %241 = vmatprep.mubr.bf16.mxu0 %v186
  %242 = vmatmul.mubr.bf16.gmra.mxu0 %v87
  %v243 = vpop.f32.mrf.mxu0
  %v244 = vadd.f32 %v56, %v243
  %v245 = vpop.f32.mrf.mxu0
  %v246 = vpop.f32.mrf.mxu0
  %v247 = vadd.f32 %v56, %v246
  %v248 = vpop.f32.mrf.mxu0
  %249 = vmatprep.mubr.bf16.mxu0 %v189
  %250 = vmatmul.mubr.bf16.gmra.mxu0 %v89
  %v251 = vpop.f32.mrf.mxu0
  %v252 = vadd.f32 %v56, %v251
  %v253 = vpop.f32.mrf.mxu0
  %v254 = vpop.f32.mrf.mxu0
  %v255 = vadd.f32 %v56, %v254
  %v256 = vpop.f32.mrf.mxu0
  %257 = vmatprep.mubr.bf16.mxu0 %v192
  %258 = vmatmul.mubr.bf16.gmra.mxu0 %v91
  %v259 = vpop.f32.mrf.mxu0
  %v260 = vadd.f32 %v56, %v259
  %v261 = vpop.f32.mrf.mxu0
  %v262 = vpop.f32.mrf.mxu0
  %v263 = vadd.f32 %v56, %v262
  %v264 = vpop.f32.mrf.mxu0
  %265 = vmatprep.mubr.bf16.mxu0 %v195
  %266 = vmatmul.mubr.bf16.gmra.mxu0 %v93
  %v267 = vpop.f32.mrf.mxu0
  %v268 = vadd.f32 %v56, %v267
  %v269 = vpop.f32.mrf.mxu0
  %v270 = vpop.f32.mrf.mxu0
  %v271 = vpop.f32.mrf.mxu0
  %272 = vdwg.mxu0
  %v273 = vmax.f32 %v236, 0.0
  %v274 = vmax.f32 %v239, 0.0
  %v275 = vmax.f32 %v244, 0.0
  %v276 = vmax.f32 %v247, 0.0
  %v277 = vmax.f32 %v252, 0.0
  %v278 = vmax.f32 %v255, 0.0
  %v279 = vmax.f32 %v260, 0.0
  %v280 = vmax.f32 %v263, 0.0
  %v281 = vmax.f32 %v268, 0.0
  %v282 = vpack.c.bf16 %v274, %v273
  %v283 = vpack.c.bf16 %v276, %v275
  %v284 = vpack.c.bf16 %v278, %v277
  %v285 = vpack.c.bf16 %v280, %v279
  %v286 = vpack.c.bf16 %v281, %v281
  %v292 = vunpack.c.l.b16 %v282
  %v293 = vunpack.c.h.b16 %v282
  %v294 = vunpack.c.l.b16 %v283
  %v295 = vunpack.c.h.b16 %v283
  %v296 = vunpack.c.l.b16 %v284
  %v297 = vunpack.c.h.b16 %v284
  %v298 = vunpack.c.l.b16 %v285
  %v299 = vunpack.c.h.b16 %v285
  %v300 = vunpack.c.l.b16 %v286
  %v301 = vpack.c.b16 %v292, %v292
  %v302 = vpack.c.b16 %v293, %v293
  %v303 = vpack.c.b16 %v294, %v294
  %v304 = vpack.c.b16 %v295, %v295
  %v305 = vpack.c.b16 %v296, %v296
  %v306 = vpack.c.b16 %v297, %v297
  %v307 = vpack.c.b16 %v298, %v298
  %v308 = vpack.c.b16 %v299, %v299
  %v309 = vpack.c.b16 %v300, %v300
  %vm319 = vcmask 388096
  %320 = vst.msk [vmem:[%s3] sm:$0xf] %vm319, %v301
  %321 = vst.msk [vmem:[%s3 + $0x4] sm:$0xf] %vm319, %v302
  %322 = vst.msk [vmem:[%s3 + $0x8] sm:$0xf] %vm319, %v303
  %323 = vst.msk [vmem:[%s3 + $0xc] sm:$0xf] %vm319, %v304
  %324 = vst.msk [vmem:[%s3 + $0x10] sm:$0xf] %vm319, %v305
  %325 = vst.msk [vmem:[%s3 + $0x14] sm:$0xf] %vm319, %v306
  %326 = vst.msk [vmem:[%s3 + $0x18] sm:$0xf] %vm319, %v307
  %327 = vst.msk [vmem:[%s3 + $0x1c] sm:$0xf] %vm319, %v308
  %328 = vst.msk [vmem:[%s3 + $0x20] sm:$0xf] %vm319, %v309
  // Predicated region
  $region14: #{simpleconv3_forward.6} parent=0 // pred_check
    _
  $region15: #{simpleconv3_forward.6} parent=0 // pred_check_branch
    %330 = sbr.rel (0) target = $region17
  $region16: #{simpleconv3_forward.6} parent=0 // pred_region
    _
  $region17: #{simpleconv3_forward.6} parent=0 // pred_fallthru
    _
  // Predicated region
  $region18: #{simpleconv3_forward.6} parent=0 // pred_check
    _
  $region19: #{simpleconv3_forward.6} parent=0 // pred_check_branch
    %332 = sbr.rel (0) target = $region21
  $region20: #{simpleconv3_forward.6} parent=0 // pred_region
    _
  $region21: #{simpleconv3_forward.6} parent=0 // pred_fallthru
    _

// kernel: simpleconv3_forward.7
$region0: #{simpleconv3_forward.7}
  #allocation0 [shape = 'u32[]', space=smem, size = 0x4, offset = 0x4, fixed_abs, tag = 'smem constant byte address 0x4 - core index']
  #allocation1 [shape = 'u32[144,128]{1,0:T(1,128)}', space=vmem, size = 0x12000, scoped, tag = 'internal scratch']
  %s0 = inlined_call_operand.vmem [shape: bf16[2,1728], index: 0, kind: input, shape index: {}]
  %s1 = inlined_call_operand.vmem [shape: bf16[1728,512], index: 1, kind: input, shape index: {}]
  %s2 = inlined_call_operand.vmem [shape: f32[1,512], index: 2, kind: input, shape index: {}]
  %s3 = inlined_call_operand.vmem [shape: bf16[512,128], index: 3, kind: input, shape index: {}]
  %s4 = inlined_call_operand.vmem [shape: f32[1,128], index: 4, kind: input, shape index: {}]
  %s5 = inlined_call_operand.vmem [shape: bf16[128,4], index: 5, kind: input, shape index: {}]
  %s6 = inlined_call_operand.vmem [shape: f32[1,4], index: 6, kind: input, shape index: {}]
  %s7 = inlined_call_operand.hbm [shape: f32[2,4], index: 7, kind: output, shape index: {}]
  %s8 = sld [smem:[#allocation0]]
  $region38: #{simpleconv3_forward.7} parent=0
    _
  %s10 = ssub.s32 1, %s8
  %s11 = scalar_select 0, %s10, %s8
  $region1: #{simpleconv3_forward.7} parent=0
    #allocation2 [shape = 'u8[1024]{0}', space=vmem, size = 0x400, scoped, tag = 'output window, operand 0, single buffered']
    #allocation3 [shape = 's32[1]{0}', space=sflag, size = 0x4, scoped, tag = 'scoped memory for simpleconv3_forward.7']
    %12 = vsyncpa [#allocation3], 0
    // Predicated region
    $region2: #{simpleconv3_forward.7} parent=1 // pred_check
      _
    $region3: #{simpleconv3_forward.7} parent=1 // pred_check_branch
      %14 = sbr.rel (0) target = $region5
    $region4: #{simpleconv3_forward.7} parent=1 // pred_region
      _
    $region5: #{simpleconv3_forward.7} parent=1 // pred_fallthru
      _
    // Predicated region
    $region6: #{simpleconv3_forward.7} parent=1 // pred_check
      _
    $region7: #{simpleconv3_forward.7} parent=1 // pred_check_branch
      %16 = sbr.rel (0) target = $region9
    $region8: #{simpleconv3_forward.7} parent=1 // pred_region
      _
    $region9: #{simpleconv3_forward.7} parent=1 // pred_fallthru
      _
    // Predicated region
    $region10: #{simpleconv3_forward.7} parent=1 // pred_check
      _
    $region11: #{simpleconv3_forward.7} parent=1 // pred_check_branch
      %18 = sbr.rel (0) target = $region13
    $region12: #{simpleconv3_forward.7} parent=1 // pred_region
      _
    $region13: #{simpleconv3_forward.7} parent=1 // pred_fallthru
      _
    // Predicated region
    $region14: #{simpleconv3_forward.7} parent=1 // pred_check
      _
    $region15: #{simpleconv3_forward.7} parent=1 // pred_check_branch
      %20 = sbr.rel (0) target = $region17
    $region16: #{simpleconv3_forward.7} parent=1 // pred_region
      _
    $region17: #{simpleconv3_forward.7} parent=1 // pred_fallthru
      _
    // Predicated region
    $region18: #{simpleconv3_forward.7} parent=1 // pred_check
      _
    $region19: #{simpleconv3_forward.7} parent=1 // pred_check_branch
      %22 = sbr.rel (0) target = $region21
    $region20: #{simpleconv3_forward.7} parent=1 // pred_region
      _
    $region21: #{simpleconv3_forward.7} parent=1 // pred_fallthru
      _
    // Predicated region
    $region22: #{simpleconv3_forward.7} parent=1 // pred_check
      _
    $region23: #{simpleconv3_forward.7} parent=1 // pred_check_branch
      %24 = sbr.rel (0) target = $region25
    $region24: #{simpleconv3_forward.7} parent=1 // pred_region
      _
    $region25: #{simpleconv3_forward.7} parent=1 // pred_fallthru
      _
    // Predicated region
    $region26: #{simpleconv3_forward.7} parent=1 // pred_check
      _
    $region27: #{simpleconv3_forward.7} parent=1 // pred_check_branch
      %26 = sbr.rel (0) target = $region29
    $region28: #{simpleconv3_forward.7} parent=1 // pred_region
      _
    $region29: #{simpleconv3_forward.7} parent=1 // pred_fallthru
      _
    %v28 = vld [vmem:[%s0] sm:$0xff]
    %v29 = vld [vmem:[%s0 + $0x8] sm:$0x3f]
    %v30 = vld [vmem:[%s1] sm:$0xff]
    %v31 = vld [vmem:[%s1 + $0x8] sm:$0xff]
    %v32 = vld [vmem:[%s1 + $0x10] sm:$0xff]
    %v33 = vld [vmem:[%s1 + $0x18] sm:$0xff]
    %v34 = vld [vmem:[%s1 + $0x20] sm:$0xff]
    %v35 = vld [vmem:[%s1 + $0x28] sm:$0xff]
    %v36 = vld [vmem:[%s1 + $0x30] sm:$0xff]
    %v37 = vld [vmem:[%s1 + $0x38] sm:$0xff]
    %v38 = vld [vmem:[%s1 + $0x40] sm:$0xff]
    %v39 = vld [vmem:[%s1 + $0x48] sm:$0xff]
    %v40 = vld [vmem:[%s1 + $0x50] sm:$0xff]
    %v41 = vld [vmem:[%s1 + $0x58] sm:$0xff]
    %v42 = vld [vmem:[%s1 + $0x60] sm:$0xff]
    %v43 = vld [vmem:[%s1 + $0x68] sm:$0xff]
    %v44 = vld [vmem:[%s1 + $0x70] sm:$0xff]
    %v45 = vld [vmem:[%s1 + $0x78] sm:$0xff]
    %v46 = vld [vmem:[%s1 + $0x80] sm:$0xff]
    %v47 = vld [vmem:[%s1 + $0x88] sm:$0xff]
    %v48 = vld [vmem:[%s1 + $0x90] sm:$0xff]
    %v49 = vld [vmem:[%s1 + $0x98] sm:$0xff]
    %v50 = vld [vmem:[%s1 + $0xa0] sm:$0xff]
    %v51 = vld [vmem:[%s1 + $0xa8] sm:$0xff]
    %v52 = vld [vmem:[%s1 + $0xb0] sm:$0xff]
    %v53 = vld [vmem:[%s1 + $0xb8] sm:$0xff]
    %v54 = vld [vmem:[%s1 + $0xc0] sm:$0xff]
    %v55 = vld [vmem:[%s1 + $0xc8] sm:$0xff]
    %v56 = vld [vmem:[%s1 + $0xd0] sm:$0xff]
    %v57 = vld [vmem:[%s1 + $0xd8] sm:$0xff]
    %v58 = vld [vmem:[%s1 + $0xe0] sm:$0xff]
    %v59 = vld [vmem:[%s1 + $0xe8] sm:$0xff]
    %v60 = vld [vmem:[%s1 + $0xf0] sm:$0xff]
    %v61 = vld [vmem:[%s1 + $0xf8] sm:$0xff]
    %v62 = vld [vmem:[%s1 + $0x100] sm:$0xff]
    %v63 = vld [vmem:[%s1 + $0x108] sm:$0xff]
    %v64 = vld [vmem:[%s1 + $0x110] sm:$0xff]
    %v65 = vld [vmem:[%s1 + $0x118] sm:$0xff]
    %v66 = vld [vmem:[%s1 + $0x120] sm:$0xff]
    %v67 = vld [vmem:[%s1 + $0x128] sm:$0xff]
    %v68 = vld [vmem:[%s1 + $0x130] sm:$0xff]
    %v69 = vld [vmem:[%s1 + $0x138] sm:$0xff]
    %v70 = vld [vmem:[%s1 + $0x140] sm:$0xff]
    %v71 = vld [vmem:[%s1 + $0x148] sm:$0xff]
    %v72 = vld [vmem:[%s1 + $0x150] sm:$0xff]
    %v73 = vld [vmem:[%s1 + $0x158] sm:$0xff]
    %v74 = vld [vmem:[%s1 + $0x160] sm:$0xff]
    %v75 = vld [vmem:[%s1 + $0x168] sm:$0xff]
    %v76 = vld [vmem:[%s1 + $0x170] sm:$0xff]
    %v77 = vld [vmem:[%s1 + $0x178] sm:$0xff]
    %v78 = vld [vmem:[%s1 + $0x180] sm:$0xff]
    %v79 = vld [vmem:[%s1 + $0x188] sm:$0xff]
    %v80 = vld [vmem:[%s1 + $0x190] sm:$0xff]
    %v81 = vld [vmem:[%s1 + $0x198] sm:$0xff]
    %v82 = vld [vmem:[%s1 + $0x1a0] sm:$0xff]
    %v83 = vld [vmem:[%s1 + $0x1a8] sm:$0xff]
    %v84 = vld [vmem:[%s1 + $0x1b0] sm:$0xff]
    %v85 = vld [vmem:[%s1 + $0x1b8] sm:$0xff]
    %v86 = vld [vmem:[%s1 + $0x1c0] sm:$0xff]
    %v87 = vld [vmem:[%s1 + $0x1c8] sm:$0xff]
    %v88 = vld [vmem:[%s1 + $0x1d0] sm:$0xff]
    %v89 = vld [vmem:[%s1 + $0x1d8] sm:$0xff]
    %v90 = vld [vmem:[%s1 + $0x1e0] sm:$0xff]
    %v91 = vld [vmem:[%s1 + $0x1e8] sm:$0xff]
    %v92 = vld [vmem:[%s1 + $0x1f0] sm:$0xff]
    %v93 = vld [vmem:[%s1 + $0x1f8] sm:$0xff]
    %v94 = vld [vmem:[%s1 + $0x200] sm:$0xff]
    %v95 = vld [vmem:[%s1 + $0x208] sm:$0xff]
    %v96 = vld [vmem:[%s1 + $0x210] sm:$0xff]
    %v97 = vld [vmem:[%s1 + $0x218] sm:$0xff]
    %v98 = vld [vmem:[%s1 + $0x220] sm:$0xff]
    %v99 = vld [vmem:[%s1 + $0x228] sm:$0xff]
    %v100 = vld [vmem:[%s1 + $0x230] sm:$0xff]
    %v101 = vld [vmem:[%s1 + $0x238] sm:$0xff]
    %v102 = vld [vmem:[%s1 + $0x240] sm:$0xff]
    %v103 = vld [vmem:[%s1 + $0x248] sm:$0xff]
    %v104 = vld [vmem:[%s1 + $0x250] sm:$0xff]
    %v105 = vld [vmem:[%s1 + $0x258] sm:$0xff]
    %v106 = vld [vmem:[%s1 + $0x260] sm:$0xff]
    %v107 = vld [vmem:[%s1 + $0x268] sm:$0xff]
    %v108 = vld [vmem:[%s1 + $0x270] sm:$0xff]
    %v109 = vld [vmem:[%s1 + $0x278] sm:$0xff]
    %v110 = vld [vmem:[%s1 + $0x280] sm:$0xff]
    %v111 = vld [vmem:[%s1 + $0x288] sm:$0xff]
    %v112 = vld [vmem:[%s1 + $0x290] sm:$0xff]
    %v113 = vld [vmem:[%s1 + $0x298] sm:$0xff]
    %v114 = vld [vmem:[%s1 + $0x2a0] sm:$0xff]
    %v115 = vld [vmem:[%s1 + $0x2a8] sm:$0xff]
    %v116 = vld [vmem:[%s1 + $0x2b0] sm:$0xff]
    %v117 = vld [vmem:[%s1 + $0x2b8] sm:$0xff]
    %v118 = vld [vmem:[%s1 + $0x2c0] sm:$0xff]
    %v119 = vld [vmem:[%s1 + $0x2c8] sm:$0xff]
    %v120 = vld [vmem:[%s1 + $0x2d0] sm:$0xff]
    %v121 = vld [vmem:[%s1 + $0x2d8] sm:$0xff]
    %v122 = vld [vmem:[%s1 + $0x2e0] sm:$0xff]
    %v123 = vld [vmem:[%s1 + $0x2e8] sm:$0xff]
    %v124 = vld [vmem:[%s1 + $0x2f0] sm:$0xff]
    %v125 = vld [vmem:[%s1 + $0x2f8] sm:$0xff]
    %v126 = vld [vmem:[%s1 + $0x300] sm:$0xff]
    %v127 = vld [vmem:[%s1 + $0x308] sm:$0xff]
    %v128 = vld [vmem:[%s1 + $0x310] sm:$0xff]
    %v129 = vld [vmem:[%s1 + $0x318] sm:$0xff]
    %v130 = vld [vmem:[%s1 + $0x320] sm:$0xff]
    %v131 = vld [vmem:[%s1 + $0x328] sm:$0xff]
    %v132 = vld [vmem:[%s1 + $0x330] sm:$0xff]
    %v133 = vld [vmem:[%s1 + $0x338] sm:$0xff]
    %v134 = vld [vmem:[%s1 + $0x340] sm:$0xff]
    %v135 = vld [vmem:[%s1 + $0x348] sm:$0xff]
    %v136 = vld [vmem:[%s1 + $0x350] sm:$0xff]
    %v137 = vld [vmem:[%s1 + $0x358] sm:$0xff]
    %v138 = vld [vmem:[%s1 + $0x360] sm:$0xff]
    %v139 = vld [vmem:[%s1 + $0x368] sm:$0xff]
    %v140 = vld [vmem:[%s1 + $0x370] sm:$0xff]
    %v141 = vld [vmem:[%s1 + $0x378] sm:$0xff]
    %v142 = vld [vmem:[%s1 + $0x380] sm:$0xff]
    %v143 = vld [vmem:[%s1 + $0x388] sm:$0xff]
    %v144 = vld [vmem:[%s1 + $0x390] sm:$0xff]
    %v145 = vld [vmem:[%s1 + $0x398] sm:$0xff]
    %v146 = vld [vmem:[%s1 + $0x3a0] sm:$0xff]
    %v147 = vld [vmem:[%s1 + $0x3a8] sm:$0xff]
    %v148 = vld [vmem:[%s1 + $0x3b0] sm:$0xff]
    %v149 = vld [vmem:[%s1 + $0x3b8] sm:$0xff]
    %v150 = vld [vmem:[%s1 + $0x3c0] sm:$0xff]
    %v151 = vld [vmem:[%s1 + $0x3c8] sm:$0xff]
    %v152 = vld [vmem:[%s1 + $0x3d0] sm:$0xff]
    %v153 = vld [vmem:[%s1 + $0x3d8] sm:$0xff]
    %v154 = vld [vmem:[%s1 + $0x3e0] sm:$0xff]
    %v155 = vld [vmem:[%s1 + $0x3e8] sm:$0xff]
    %v156 = vld [vmem:[%s1 + $0x3f0] sm:$0xff]
    %v157 = vld [vmem:[%s1 + $0x3f8] sm:$0xff]
    %v158 = vld [vmem:[%s1 + $0x400] sm:$0xff]
    %v159 = vld [vmem:[%s1 + $0x408] sm:$0xff]
    %v160 = vld [vmem:[%s1 + $0x410] sm:$0xff]
    %v161 = vld [vmem:[%s1 + $0x418] sm:$0xff]
    %v162 = vld [vmem:[%s1 + $0x420] sm:$0xff]
    %v163 = vld [vmem:[%s1 + $0x428] sm:$0xff]
    %v164 = vld [vmem:[%s1 + $0x430] sm:$0xff]
    %v165 = vld [vmem:[%s1 + $0x438] sm:$0xff]
    %v166 = vld [vmem:[%s1 + $0x440] sm:$0xff]
    %v167 = vld [vmem:[%s1 + $0x448] sm:$0xff]
    %v168 = vld [vmem:[%s1 + $0x450] sm:$0xff]
    %v169 = vld [vmem:[%s1 + $0x458] sm:$0xff]
    %v170 = vld [vmem:[%s1 + $0x460] sm:$0xff]
    %v171 = vld [vmem:[%s1 + $0x468] sm:$0xff]
    %v172 = vld [vmem:[%s1 + $0x470] sm:$0xff]
    %v173 = vld [vmem:[%s1 + $0x478] sm:$0xff]
    %v174 = vld [vmem:[%s1 + $0x480] sm:$0xff]
    %v175 = vld [vmem:[%s1 + $0x488] sm:$0xff]
    %v176 = vld [vmem:[%s1 + $0x490] sm:$0xff]
    %v177 = vld [vmem:[%s1 + $0x498] sm:$0xff]
    %v178 = vld [vmem:[%s1 + $0x4a0] sm:$0xff]
    %v179 = vld [vmem:[%s1 + $0x4a8] sm:$0xff]
    %v180 = vld [vmem:[%s1 + $0x4b0] sm:$0xff]
    %v181 = vld [vmem:[%s1 + $0x4b8] sm:$0xff]
    %v182 = vld [vmem:[%s1 + $0x4c0] sm:$0xff]
    %v183 = vld [vmem:[%s1 + $0x4c8] sm:$0xff]
    %v184 = vld [vmem:[%s1 + $0x4d0] sm:$0xff]
    %v185 = vld [vmem:[%s1 + $0x4d8] sm:$0xff]
    %v186 = vld [vmem:[%s1 + $0x4e0] sm:$0xff]
    %v187 = vld [vmem:[%s1 + $0x4e8] sm:$0xff]
    %v188 = vld [vmem:[%s1 + $0x4f0] sm:$0xff]
    %v189 = vld [vmem:[%s1 + $0x4f8] sm:$0xff]
    %v190 = vld [vmem:[%s1 + $0x500] sm:$0xff]
    %v191 = vld [vmem:[%s1 + $0x508] sm:$0xff]
    %v192 = vld [vmem:[%s1 + $0x510] sm:$0xff]
    %v193 = vld [vmem:[%s1 + $0x518] sm:$0xff]
    %v194 = vld [vmem:[%s1 + $0x520] sm:$0xff]
    %v195 = vld [vmem:[%s1 + $0x528] sm:$0xff]
    %v196 = vld [vmem:[%s1 + $0x530] sm:$0xff]
    %v197 = vld [vmem:[%s1 + $0x538] sm:$0xff]
    %v198 = vld [vmem:[%s1 + $0x540] sm:$0xff]
    %v199 = vld [vmem:[%s1 + $0x548] sm:$0xff]
    %v200 = vld [vmem:[%s1 + $0x550] sm:$0xff]
    %v201 = vld [vmem:[%s1 + $0x558] sm:$0xff]
    %v202 = vld [vmem:[%s1 + $0x560] sm:$0xff]
    %v203 = vld [vmem:[%s1 + $0x568] sm:$0xff]
    %v204 = vld [vmem:[%s1 + $0x570] sm:$0xff]
    %v205 = vld [vmem:[%s1 + $0x578] sm:$0xff]
    %v206 = vld [vmem:[%s1 + $0x580] sm:$0xff]
    %v207 = vld [vmem:[%s1 + $0x588] sm:$0xff]
    %v208 = vld [vmem:[%s1 + $0x590] sm:$0xff]
    %v209 = vld [vmem:[%s1 + $0x598] sm:$0xff]
    %v210 = vld [vmem:[%s1 + $0x5a0] sm:$0xff]
    %v211 = vld [vmem:[%s1 + $0x5a8] sm:$0xff]
    %v212 = vld [vmem:[%s1 + $0x5b0] sm:$0xff]
    %v213 = vld [vmem:[%s1 + $0x5b8] sm:$0xff]
    %v214 = vld [vmem:[%s1 + $0x5c0] sm:$0xff]
    %v215 = vld [vmem:[%s1 + $0x5c8] sm:$0xff]
    %v216 = vld [vmem:[%s1 + $0x5d0] sm:$0xff]
    %v217 = vld [vmem:[%s1 + $0x5d8] sm:$0xff]
    %v218 = vld [vmem:[%s1 + $0x5e0] sm:$0xff]
    %v219 = vld [vmem:[%s1 + $0x5e8] sm:$0xff]
    %v220 = vld [vmem:[%s1 + $0x5f0] sm:$0xff]
    %v221 = vld [vmem:[%s1 + $0x5f8] sm:$0xff]
    %v222 = vld [vmem:[%s1 + $0x600] sm:$0xff]
    %v223 = vld [vmem:[%s1 + $0x608] sm:$0xff]
    %v224 = vld [vmem:[%s1 + $0x610] sm:$0xff]
    %v225 = vld [vmem:[%s1 + $0x618] sm:$0xff]
    %v226 = vld [vmem:[%s1 + $0x620] sm:$0xff]
    %v227 = vld [vmem:[%s1 + $0x628] sm:$0xff]
    %v228 = vld [vmem:[%s1 + $0x630] sm:$0xff]
    %v229 = vld [vmem:[%s1 + $0x638] sm:$0xff]
    %v230 = vld [vmem:[%s1 + $0x640] sm:$0xff]
    %v231 = vld [vmem:[%s1 + $0x648] sm:$0xff]
    %v232 = vld [vmem:[%s1 + $0x650] sm:$0xff]
    %v233 = vld [vmem:[%s1 + $0x658] sm:$0xff]
    %v234 = vld [vmem:[%s1 + $0x660] sm:$0xff]
    %v235 = vld [vmem:[%s1 + $0x668] sm:$0xff]
    %v236 = vld [vmem:[%s1 + $0x670] sm:$0xff]
    %v237 = vld [vmem:[%s1 + $0x678] sm:$0xff]
    %v238 = vld [vmem:[%s1 + $0x680] sm:$0xff]
    %v239 = vld [vmem:[%s1 + $0x688] sm:$0xff]
    %v240 = vld [vmem:[%s1 + $0x690] sm:$0xff]
    %v241 = vld [vmem:[%s1 + $0x698] sm:$0xff]
    %v242 = vld [vmem:[%s1 + $0x6a0] sm:$0xff]
    %v243 = vld [vmem:[%s1 + $0x6a8] sm:$0xff]
    %v244 = vld [vmem:[%s1 + $0x6b0] sm:$0xff]
    %v245 = vld [vmem:[%s1 + $0x6b8] sm:$0xff]
    %v246 = vld [vmem:[%s1 + $0x6c0] sm:$0xff]
    %v247 = vld [vmem:[%s1 + $0x6c8] sm:$0xff]
    %v248 = vld [vmem:[%s1 + $0x6d0] sm:$0xff]
    %v249 = vld [vmem:[%s1 + $0x6d8] sm:$0xff]
    %v250 = vld [vmem:[%s1 + $0x6e0] sm:$0xff]
    %v251 = vld [vmem:[%s1 + $0x6e8] sm:$0xff]
    %v252 = vld [vmem:[%s1 + $0x6f0] sm:$0xff]
    %v253 = vld [vmem:[%s1 + $0x6f8] sm:$0xff]
    %v254 = vld [vmem:[%s1 + $0x700] sm:$0xff]
    %v255 = vld [vmem:[%s1 + $0x708] sm:$0xff]
    %v256 = vld [vmem:[%s1 + $0x710] sm:$0xff]
    %v257 = vld [vmem:[%s1 + $0x718] sm:$0xff]
    %v258 = vld [vmem:[%s1 + $0x720] sm:$0xff]
    %v259 = vld [vmem:[%s1 + $0x728] sm:$0xff]
    %v260 = vld [vmem:[%s1 + $0x730] sm:$0xff]
    %v261 = vld [vmem:[%s1 + $0x738] sm:$0xff]
    %v262 = vld [vmem:[%s1 + $0x740] sm:$0xff]
    %v263 = vld [vmem:[%s1 + $0x748] sm:$0xff]
    %v264 = vld [vmem:[%s1 + $0x750] sm:$0xff]
    %v265 = vld [vmem:[%s1 + $0x758] sm:$0xff]
    %v266 = vld [vmem:[%s1 + $0x760] sm:$0xff]
    %v267 = vld [vmem:[%s1 + $0x768] sm:$0xff]
    %v268 = vld [vmem:[%s1 + $0x770] sm:$0xff]
    %v269 = vld [vmem:[%s1 + $0x778] sm:$0xff]
    %v270 = vld [vmem:[%s1 + $0x780] sm:$0xff]
    %v271 = vld [vmem:[%s1 + $0x788] sm:$0xff]
    %v272 = vld [vmem:[%s1 + $0x790] sm:$0xff]
    %v273 = vld [vmem:[%s1 + $0x798] sm:$0xff]
    %v274 = vld [vmem:[%s1 + $0x7a0] sm:$0xff]
    %v275 = vld [vmem:[%s1 + $0x7a8] sm:$0xff]
    %v276 = vld [vmem:[%s1 + $0x7b0] sm:$0xff]
    %v277 = vld [vmem:[%s1 + $0x7b8] sm:$0xff]
    %v278 = vld [vmem:[%s1 + $0x7c0] sm:$0xff]
    %v279 = vld [vmem:[%s1 + $0x7c8] sm:$0xff]
    %v280 = vld [vmem:[%s1 + $0x7d0] sm:$0xff]
    %v281 = vld [vmem:[%s1 + $0x7d8] sm:$0xff]
    %v282 = vld [vmem:[%s1 + $0x7e0] sm:$0xff]
    %v283 = vld [vmem:[%s1 + $0x7e8] sm:$0xff]
    %v284 = vld [vmem:[%s1 + $0x7f0] sm:$0xff]
    %v285 = vld [vmem:[%s1 + $0x7f8] sm:$0xff]
    %v286 = vld [vmem:[%s1 + $0x800] sm:$0xff]
    %v287 = vld [vmem:[%s1 + $0x808] sm:$0xff]
    %v288 = vld [vmem:[%s1 + $0x810] sm:$0xff]
    %v289 = vld [vmem:[%s1 + $0x818] sm:$0xff]
    %v290 = vld [vmem:[%s1 + $0x820] sm:$0xff]
    %v291 = vld [vmem:[%s1 + $0x828] sm:$0xff]
    %v292 = vld [vmem:[%s1 + $0x830] sm:$0xff]
    %v293 = vld [vmem:[%s1 + $0x838] sm:$0xff]
    %v294 = vld [vmem:[%s1 + $0x840] sm:$0xff]
    %v295 = vld [vmem:[%s1 + $0x848] sm:$0xff]
    %v296 = vld [vmem:[%s1 + $0x850] sm:$0xff]
    %v297 = vld [vmem:[%s1 + $0x858] sm:$0xff]
    %v298 = vld [vmem:[%s1 + $0x860] sm:$0xff]
    %v299 = vld [vmem:[%s1 + $0x868] sm:$0xff]
    %v300 = vld [vmem:[%s1 + $0x870] sm:$0xff]
    %v301 = vld [vmem:[%s1 + $0x878] sm:$0xff]
    %v302 = vld [vmem:[%s1 + $0x880] sm:$0xff]
    %v303 = vld [vmem:[%s1 + $0x888] sm:$0xff]
    %v304 = vld [vmem:[%s1 + $0x890] sm:$0xff]
    %v305 = vld [vmem:[%s1 + $0x898] sm:$0xff]
    %v306 = vld [vmem:[%s1 + $0x8a0] sm:$0xff]
    %v307 = vld [vmem:[%s1 + $0x8a8] sm:$0xff]
    %v308 = vld [vmem:[%s1 + $0x8b0] sm:$0xff]
    %v309 = vld [vmem:[%s1 + $0x8b8] sm:$0xff]
    %v310 = vld [vmem:[%s1 + $0x8c0] sm:$0xff]
    %v311 = vld [vmem:[%s1 + $0x8c8] sm:$0xff]
    %v312 = vld [vmem:[%s1 + $0x8d0] sm:$0xff]
    %v313 = vld [vmem:[%s1 + $0x8d8] sm:$0xff]
    %v314 = vld [vmem:[%s1 + $0x8e0] sm:$0xff]
    %v315 = vld [vmem:[%s1 + $0x8e8] sm:$0xff]
    %v316 = vld [vmem:[%s1 + $0x8f0] sm:$0xff]
    %v317 = vld [vmem:[%s1 + $0x8f8] sm:$0xff]
    %v318 = vld [vmem:[%s1 + $0x900] sm:$0xff]
    %v319 = vld [vmem:[%s1 + $0x908] sm:$0xff]
    %v320 = vld [vmem:[%s1 + $0x910] sm:$0xff]
    %v321 = vld [vmem:[%s1 + $0x918] sm:$0xff]
    %v322 = vld [vmem:[%s1 + $0x920] sm:$0xff]
    %v323 = vld [vmem:[%s1 + $0x928] sm:$0xff]
    %v324 = vld [vmem:[%s1 + $0x930] sm:$0xff]
    %v325 = vld [vmem:[%s1 + $0x938] sm:$0xff]
    %v326 = vld [vmem:[%s1 + $0x940] sm:$0xff]
    %v327 = vld [vmem:[%s1 + $0x948] sm:$0xff]
    %v328 = vld [vmem:[%s1 + $0x950] sm:$0xff]
    %v329 = vld [vmem:[%s1 + $0x958] sm:$0xff]
    %v330 = vld [vmem:[%s1 + $0x960] sm:$0xff]
    %v331 = vld [vmem:[%s1 + $0x968] sm:$0xff]
    %v332 = vld [vmem:[%s1 + $0x970] sm:$0xff]
    %v333 = vld [vmem:[%s1 + $0x978] sm:$0xff]
    %v334 = vld [vmem:[%s1 + $0x980] sm:$0xff]
    %v335 = vld [vmem:[%s1 + $0x988] sm:$0xff]
    %v336 = vld [vmem:[%s1 + $0x990] sm:$0xff]
    %v337 = vld [vmem:[%s1 + $0x998] sm:$0xff]
    %v338 = vld [vmem:[%s1 + $0x9a0] sm:$0xff]
    %v339 = vld [vmem:[%s1 + $0x9a8] sm:$0xff]
    %v340 = vld [vmem:[%s1 + $0x9b0] sm:$0xff]
    %v341 = vld [vmem:[%s1 + $0x9b8] sm:$0xff]
    %v342 = vld [vmem:[%s1 + $0x9c0] sm:$0xff]
    %v343 = vld [vmem:[%s1 + $0x9c8] sm:$0xff]
    %v344 = vld [vmem:[%s1 + $0x9d0] sm:$0xff]
    %v345 = vld [vmem:[%s1 + $0x9d8] sm:$0xff]
    %v346 = vld [vmem:[%s1 + $0x9e0] sm:$0xff]
    %v347 = vld [vmem:[%s1 + $0x9e8] sm:$0xff]
    %v348 = vld [vmem:[%s1 + $0x9f0] sm:$0xff]
    %v349 = vld [vmem:[%s1 + $0x9f8] sm:$0xff]
    %v350 = vld [vmem:[%s1 + $0xa00] sm:$0xff]
    %v351 = vld [vmem:[%s1 + $0xa08] sm:$0xff]
    %v352 = vld [vmem:[%s1 + $0xa10] sm:$0xff]
    %v353 = vld [vmem:[%s1 + $0xa18] sm:$0xff]
    %v354 = vld [vmem:[%s1 + $0xa20] sm:$0xff]
    %v355 = vld [vmem:[%s1 + $0xa28] sm:$0xff]
    %v356 = vld [vmem:[%s1 + $0xa30] sm:$0xff]
    %v357 = vld [vmem:[%s1 + $0xa38] sm:$0xff]
    %v358 = vld [vmem:[%s1 + $0xa40] sm:$0xff]
    %v359 = vld [vmem:[%s1 + $0xa48] sm:$0xff]
    %v360 = vld [vmem:[%s1 + $0xa50] sm:$0xff]
    %v361 = vld [vmem:[%s1 + $0xa58] sm:$0xff]
    %v362 = vld [vmem:[%s1 + $0xa60] sm:$0xff]
    %v363 = vld [vmem:[%s1 + $0xa68] sm:$0xff]
    %v364 = vld [vmem:[%s1 + $0xa70] sm:$0xff]
    %v365 = vld [vmem:[%s1 + $0xa78] sm:$0xff]
    %v366 = vld [vmem:[%s1 + $0xa80] sm:$0xff]
    %v367 = vld [vmem:[%s1 + $0xa88] sm:$0xff]
    %v368 = vld [vmem:[%s1 + $0xa90] sm:$0xff]
    %v369 = vld [vmem:[%s1 + $0xa98] sm:$0xff]
    %v370 = vld [vmem:[%s1 + $0xaa0] sm:$0xff]
    %v371 = vld [vmem:[%s1 + $0xaa8] sm:$0xff]
    %v372 = vld [vmem:[%s1 + $0xab0] sm:$0xff]
    %v373 = vld [vmem:[%s1 + $0xab8] sm:$0xff]
    %v374 = vld [vmem:[%s1 + $0xac0] sm:$0xff]
    %v375 = vld [vmem:[%s1 + $0xac8] sm:$0xff]
    %v376 = vld [vmem:[%s1 + $0xad0] sm:$0xff]
    %v377 = vld [vmem:[%s1 + $0xad8] sm:$0xff]
    %v378 = vld [vmem:[%s1 + $0xae0] sm:$0xff]
    %v379 = vld [vmem:[%s1 + $0xae8] sm:$0xff]
    %v380 = vld [vmem:[%s1 + $0xaf0] sm:$0xff]
    %v381 = vld [vmem:[%s1 + $0xaf8] sm:$0xff]
    %v382 = vld [vmem:[%s1 + $0xb00] sm:$0xff]
    %v383 = vld [vmem:[%s1 + $0xb08] sm:$0xff]
    %v384 = vld [vmem:[%s1 + $0xb10] sm:$0xff]
    %v385 = vld [vmem:[%s1 + $0xb18] sm:$0xff]
    %v386 = vld [vmem:[%s1 + $0xb20] sm:$0xff]
    %v387 = vld [vmem:[%s1 + $0xb28] sm:$0xff]
    %v388 = vld [vmem:[%s1 + $0xb30] sm:$0xff]
    %v389 = vld [vmem:[%s1 + $0xb38] sm:$0xff]
    %v390 = vld [vmem:[%s1 + $0xb40] sm:$0xff]
    %v391 = vld [vmem:[%s1 + $0xb48] sm:$0xff]
    %v392 = vld [vmem:[%s1 + $0xb50] sm:$0xff]
    %v393 = vld [vmem:[%s1 + $0xb58] sm:$0xff]
    %v394 = vld [vmem:[%s1 + $0xb60] sm:$0xff]
    %v395 = vld [vmem:[%s1 + $0xb68] sm:$0xff]
    %v396 = vld [vmem:[%s1 + $0xb70] sm:$0xff]
    %v397 = vld [vmem:[%s1 + $0xb78] sm:$0xff]
    %v398 = vld [vmem:[%s1 + $0xb80] sm:$0xff]
    %v399 = vld [vmem:[%s1 + $0xb88] sm:$0xff]
    %v400 = vld [vmem:[%s1 + $0xb90] sm:$0xff]
    %v401 = vld [vmem:[%s1 + $0xb98] sm:$0xff]
    %v402 = vld [vmem:[%s1 + $0xba0] sm:$0xff]
    %v403 = vld [vmem:[%s1 + $0xba8] sm:$0xff]
    %v404 = vld [vmem:[%s1 + $0xbb0] sm:$0xff]
    %v405 = vld [vmem:[%s1 + $0xbb8] sm:$0xff]
    %v406 = vld [vmem:[%s1 + $0xbc0] sm:$0xff]
    %v407 = vld [vmem:[%s1 + $0xbc8] sm:$0xff]
    %v408 = vld [vmem:[%s1 + $0xbd0] sm:$0xff]
    %v409 = vld [vmem:[%s1 + $0xbd8] sm:$0xff]
    %v410 = vld [vmem:[%s1 + $0xbe0] sm:$0xff]
    %v411 = vld [vmem:[%s1 + $0xbe8] sm:$0xff]
    %v412 = vld [vmem:[%s1 + $0xbf0] sm:$0xff]
    %v413 = vld [vmem:[%s1 + $0xbf8] sm:$0xff]
    %v414 = vld [vmem:[%s1 + $0xc00] sm:$0xff]
    %v415 = vld [vmem:[%s1 + $0xc08] sm:$0xff]
    %v416 = vld [vmem:[%s1 + $0xc10] sm:$0xff]
    %v417 = vld [vmem:[%s1 + $0xc18] sm:$0xff]
    %v418 = vld [vmem:[%s1 + $0xc20] sm:$0xff]
    %v419 = vld [vmem:[%s1 + $0xc28] sm:$0xff]
    %v420 = vld [vmem:[%s1 + $0xc30] sm:$0xff]
    %v421 = vld [vmem:[%s1 + $0xc38] sm:$0xff]
    %v422 = vld [vmem:[%s1 + $0xc40] sm:$0xff]
    %v423 = vld [vmem:[%s1 + $0xc48] sm:$0xff]
    %v424 = vld [vmem:[%s1 + $0xc50] sm:$0xff]
    %v425 = vld [vmem:[%s1 + $0xc58] sm:$0xff]
    %v426 = vld [vmem:[%s1 + $0xc60] sm:$0xff]
    %v427 = vld [vmem:[%s1 + $0xc68] sm:$0xff]
    %v428 = vld [vmem:[%s1 + $0xc70] sm:$0xff]
    %v429 = vld [vmem:[%s1 + $0xc78] sm:$0xff]
    %v430 = vld [vmem:[%s1 + $0xc80] sm:$0xff]
    %v431 = vld [vmem:[%s1 + $0xc88] sm:$0xff]
    %v432 = vld [vmem:[%s1 + $0xc90] sm:$0xff]
    %v433 = vld [vmem:[%s1 + $0xc98] sm:$0xff]
    %v434 = vld [vmem:[%s1 + $0xca0] sm:$0xff]
    %v435 = vld [vmem:[%s1 + $0xca8] sm:$0xff]
    %v436 = vld [vmem:[%s1 + $0xcb0] sm:$0xff]
    %v437 = vld [vmem:[%s1 + $0xcb8] sm:$0xff]
    %v438 = vld [vmem:[%s1 + $0xcc0] sm:$0xff]
    %v439 = vld [vmem:[%s1 + $0xcc8] sm:$0xff]
    %v440 = vld [vmem:[%s1 + $0xcd0] sm:$0xff]
    %v441 = vld [vmem:[%s1 + $0xcd8] sm:$0xff]
    %v442 = vld [vmem:[%s1 + $0xce0] sm:$0xff]
    %v443 = vld [vmem:[%s1 + $0xce8] sm:$0xff]
    %v444 = vld [vmem:[%s1 + $0xcf0] sm:$0xff]
    %v445 = vld [vmem:[%s1 + $0xcf8] sm:$0xff]
    %v446 = vld [vmem:[%s1 + $0xd00] sm:$0xff]
    %v447 = vld [vmem:[%s1 + $0xd08] sm:$0xff]
    %v448 = vld [vmem:[%s1 + $0xd10] sm:$0xff]
    %v449 = vld [vmem:[%s1 + $0xd18] sm:$0xff]
    %v450 = vld [vmem:[%s1 + $0xd20] sm:$0xff]
    %v451 = vld [vmem:[%s1 + $0xd28] sm:$0xff]
    %v452 = vld [vmem:[%s1 + $0xd30] sm:$0xff]
    %v453 = vld [vmem:[%s1 + $0xd38] sm:$0xff]
    %v454 = vld [vmem:[%s1 + $0xd40] sm:$0xff]
    %v455 = vld [vmem:[%s1 + $0xd48] sm:$0xff]
    %v456 = vld [vmem:[%s1 + $0xd50] sm:$0xff]
    %v457 = vld [vmem:[%s1 + $0xd58] sm:$0xff]
    %v458 = vld [vmem:[%s1 + $0xd60] sm:$0xff]
    %v459 = vld [vmem:[%s1 + $0xd68] sm:$0xff]
    %v460 = vld [vmem:[%s1 + $0xd70] sm:$0xff]
    %v461 = vld [vmem:[%s1 + $0xd78] sm:$0xff]
    %v462 = vld [vmem:[%s2] sm:$0xf]
    %v464 = vlaneseq
    %v465 = vshrl.u32 %v464, 7
    %v466 = vsub.s32 0, %v465
    %v467 = vrot.slane %v462, %v466
    %v468 = vlaneseq
    %v469 = vshrl.u32 %v468, 7
    %v470 = vsub.s32 1, %v469
    %v471 = vrot.slane %v462, %v470
    %v472 = vlaneseq
    %v473 = vshrl.u32 %v472, 7
    %v474 = vsub.s32 2, %v473
    %v475 = vrot.slane %v462, %v474
    %v476 = vlaneseq
    %v477 = vshrl.u32 %v476, 7
    %v478 = vsub.s32 3, %v477
    %v479 = vrot.slane %v462, %v478
    %v486 = vcombine.high %v28, %v28
    %v488 = vunpack.c.l.s4 1966171168
    %v489 = vunpack.c.0.s8 %v488
    %v490 = vlaneseq
    %v491 = vshrl.u32 %v490, 7
    %v492 = vsub.s32 %v489, %v491
    %v493 = vrot.slane %v28, %v492
    %v495 = vunpack.c.l.s4 1966171168
    %v496 = vunpack.c.0.s8 %v495
    %v497 = vlaneseq
    %v498 = vshrl.u32 %v497, 7
    %v499 = vsub.s32 %v496, %v498
    %v500 = vrot.slane %v486, %v499
    %v501 = vcombine.high %v493, %v493
    %v502 = vcombine.high %v500, %v500
    %v504 = vunpack.c.l.s4 1966171168
    %v505 = vunpack.c.0.s8 %v504
    %v506 = vlaneseq
    %v507 = vshrl.u32 %v506, 7
    %v508 = vsub.s32 %v505, %v507
    %v509 = vrot.slane %v493, %v508
    %v511 = vunpack.c.l.s4 1966171168
    %v512 = vunpack.c.0.s8 %v511
    %v513 = vlaneseq
    %v514 = vshrl.u32 %v513, 7
    %v515 = vsub.s32 %v512, %v514
    %v516 = vrot.slane %v500, %v515
    %v518 = vunpack.c.l.s4 1966171168
    %v519 = vunpack.c.0.s8 %v518
    %v520 = vlaneseq
    %v521 = vshrl.u32 %v520, 7
    %v522 = vsub.s32 %v519, %v521
    %v523 = vrot.slane %v501, %v522
    %v525 = vunpack.c.l.s4 1966171168
    %v526 = vunpack.c.0.s8 %v525
    %v527 = vlaneseq
    %v528 = vshrl.u32 %v527, 7
    %v529 = vsub.s32 %v526, %v528
    %v530 = vrot.slane %v502, %v529
    %v531 = vcombine.high %v509, %v509
    %v532 = vcombine.high %v516, %v516
    %v533 = vcombine.high %v523, %v523
    %v534 = vcombine.high %v530, %v530
    %v535 = vcombine.high %v29, %v29
    %v537 = vunpack.c.l.s4 1966171168
    %v538 = vunpack.c.0.s8 %v537
    %v539 = vlaneseq
    %v540 = vshrl.u32 %v539, 7
    %v541 = vsub.s32 %v538, %v540
    %v542 = vrot.slane %v29, %v541
    %v544 = vunpack.c.l.s4 1966171168
    %v545 = vunpack.c.0.s8 %v544
    %v546 = vlaneseq
    %v547 = vshrl.u32 %v546, 7
    %v548 = vsub.s32 %v545, %v547
    %v549 = vrot.slane %v535, %v548
    %v550 = vcombine.high %v542, %v542
    %v551 = vcombine.high %v549, %v549
    %v553 = vunpack.c.l.s4 1966171168
    %v554 = vunpack.c.0.s8 %v553
    %v555 = vlaneseq
    %v556 = vshrl.u32 %v555, 7
    %v557 = vsub.s32 %v554, %v556
    %v558 = vrot.slane %v542, %v557
    %v560 = vunpack.c.l.s4 1966171168
    %v561 = vunpack.c.0.s8 %v560
    %v562 = vlaneseq
    %v563 = vshrl.u32 %v562, 7
    %v564 = vsub.s32 %v561, %v563
    %v565 = vrot.slane %v549, %v564
    %v567 = vunpack.c.l.s4 1966171168
    %v568 = vunpack.c.0.s8 %v567
    %v569 = vlaneseq
    %v570 = vshrl.u32 %v569, 7
    %v571 = vsub.s32 %v568, %v570
    %v572 = vrot.slane %v550, %v571
    %v574 = vunpack.c.l.s4 1966171168
    %v575 = vunpack.c.0.s8 %v574
    %v576 = vlaneseq
    %v577 = vshrl.u32 %v576, 7
    %v578 = vsub.s32 %v575, %v577
    %v579 = vrot.slane %v551, %v578
    %v580 = vcombine.high %v558, %v558
    %v581 = vcombine.high %v572, %v572
    %v1027 = vunpack.c.l.b16 %v30
    %v1028 = vunpack.c.h.b16 %v30
    %v1029 = vunpack.c.l.b16 %v31
    %v1030 = vunpack.c.h.b16 %v31
    %v1031 = vunpack.c.l.b16 %v32
    %v1032 = vunpack.c.h.b16 %v32
    %v1033 = vunpack.c.l.b16 %v33
    %v1034 = vunpack.c.h.b16 %v33
    %v1035 = vunpack.c.l.b16 %v34
    %v1036 = vunpack.c.h.b16 %v34
    %v1037 = vunpack.c.l.b16 %v35
    %v1038 = vunpack.c.h.b16 %v35
    %v1039 = vunpack.c.l.b16 %v36
    %v1040 = vunpack.c.h.b16 %v36
    %v1041 = vunpack.c.l.b16 %v37
    %v1042 = vunpack.c.h.b16 %v37
    %v1043 = vunpack.c.l.b16 %v38
    %v1044 = vunpack.c.h.b16 %v38
    %v1045 = vunpack.c.l.b16 %v39
    %v1046 = vunpack.c.h.b16 %v39
    %v1047 = vunpack.c.l.b16 %v40
    %v1048 = vunpack.c.h.b16 %v40
    %v1049 = vunpack.c.l.b16 %v41
    %v1050 = vunpack.c.h.b16 %v41
    %v1051 = vunpack.c.l.b16 %v42
    %v1052 = vunpack.c.h.b16 %v42
    %v1053 = vunpack.c.l.b16 %v43
    %v1054 = vunpack.c.h.b16 %v43
    %v1055 = vunpack.c.l.b16 %v44
    %v1056 = vunpack.c.h.b16 %v44
    %v1057 = vunpack.c.l.b16 %v45
    %v1058 = vunpack.c.h.b16 %v45
    %v1059 = vunpack.c.l.b16 %v46
    %v1060 = vunpack.c.h.b16 %v46
    %v1061 = vunpack.c.l.b16 %v47
    %v1062 = vunpack.c.h.b16 %v47
    %v1063 = vunpack.c.l.b16 %v48
    %v1064 = vunpack.c.h.b16 %v48
    %v1065 = vunpack.c.l.b16 %v49
    %v1066 = vunpack.c.h.b16 %v49
    %v1067 = vunpack.c.l.b16 %v50
    %v1068 = vunpack.c.h.b16 %v50
    %v1069 = vunpack.c.l.b16 %v51
    %v1070 = vunpack.c.h.b16 %v51
    %v1071 = vunpack.c.l.b16 %v52
    %v1072 = vunpack.c.h.b16 %v52
    %v1073 = vunpack.c.l.b16 %v53
    %v1074 = vunpack.c.h.b16 %v53
    %v1075 = vunpack.c.l.b16 %v54
    %v1076 = vunpack.c.h.b16 %v54
    %v1077 = vunpack.c.l.b16 %v55
    %v1078 = vunpack.c.h.b16 %v55
    %v1079 = vunpack.c.l.b16 %v56
    %v1080 = vunpack.c.h.b16 %v56
    %v1081 = vunpack.c.l.b16 %v57
    %v1082 = vunpack.c.h.b16 %v57
    %v1083 = vunpack.c.l.b16 %v58
    %v1084 = vunpack.c.h.b16 %v58
    %v1085 = vunpack.c.l.b16 %v59
    %v1086 = vunpack.c.h.b16 %v59
    %v1087 = vunpack.c.l.b16 %v60
    %v1088 = vunpack.c.h.b16 %v60
    %v1089 = vunpack.c.l.b16 %v61
    %v1090 = vunpack.c.h.b16 %v61
    %v1091 = vunpack.c.l.b16 %v62
    %v1092 = vunpack.c.h.b16 %v62
    %v1093 = vunpack.c.l.b16 %v63
    %v1094 = vunpack.c.h.b16 %v63
    %v1095 = vunpack.c.l.b16 %v64
    %v1096 = vunpack.c.h.b16 %v64
    %v1097 = vunpack.c.l.b16 %v65
    %v1098 = vunpack.c.h.b16 %v65
    %v1099 = vunpack.c.l.b16 %v66
    %v1100 = vunpack.c.h.b16 %v66
    %v1101 = vunpack.c.l.b16 %v67
    %v1102 = vunpack.c.h.b16 %v67
    %v1103 = vunpack.c.l.b16 %v68
    %v1104 = vunpack.c.h.b16 %v68
    %v1105 = vunpack.c.l.b16 %v69
    %v1106 = vunpack.c.h.b16 %v69
    %v1107 = vunpack.c.l.b16 %v70
    %v1108 = vunpack.c.h.b16 %v70
    %v1109 = vunpack.c.l.b16 %v71
    %v1110 = vunpack.c.h.b16 %v71
    %v1111 = vunpack.c.l.b16 %v72
    %v1112 = vunpack.c.h.b16 %v72
    %v1113 = vunpack.c.l.b16 %v73
    %v1114 = vunpack.c.h.b16 %v73
    %v1115 = vunpack.c.l.b16 %v74
    %v1116 = vunpack.c.h.b16 %v74
    %v1117 = vunpack.c.l.b16 %v75
    %v1118 = vunpack.c.h.b16 %v75
    %v1119 = vunpack.c.l.b16 %v76
    %v1120 = vunpack.c.h.b16 %v76
    %v1121 = vunpack.c.l.b16 %v77
    %v1122 = vunpack.c.h.b16 %v77
    %v1123 = vunpack.c.l.b16 %v78
    %v1124 = vunpack.c.h.b16 %v78
    %v1125 = vunpack.c.l.b16 %v79
    %v1126 = vunpack.c.h.b16 %v79
    %v1127 = vunpack.c.l.b16 %v80
    %v1128 = vunpack.c.h.b16 %v80
    %v1129 = vunpack.c.l.b16 %v81
    %v1130 = vunpack.c.h.b16 %v81
    %v1131 = vunpack.c.l.b16 %v82
    %v1132 = vunpack.c.h.b16 %v82
    %v1133 = vunpack.c.l.b16 %v83
    %v1134 = vunpack.c.h.b16 %v83
    %v1135 = vunpack.c.l.b16 %v84
    %v1136 = vunpack.c.h.b16 %v84
    %v1137 = vunpack.c.l.b16 %v85
    %v1138 = vunpack.c.h.b16 %v85
    %v1139 = vunpack.c.l.b16 %v86
    %v1140 = vunpack.c.h.b16 %v86
    %v1141 = vunpack.c.l.b16 %v87
    %v1142 = vunpack.c.h.b16 %v87
    %v1143 = vunpack.c.l.b16 %v88
    %v1144 = vunpack.c.h.b16 %v88
    %v1145 = vunpack.c.l.b16 %v89
    %v1146 = vunpack.c.h.b16 %v89
    %v1147 = vunpack.c.l.b16 %v90
    %v1148 = vunpack.c.h.b16 %v90
    %v1149 = vunpack.c.l.b16 %v91
    %v1150 = vunpack.c.h.b16 %v91
    %v1151 = vunpack.c.l.b16 %v92
    %v1152 = vunpack.c.h.b16 %v92
    %v1153 = vunpack.c.l.b16 %v93
    %v1154 = vunpack.c.h.b16 %v93
    %v1155 = vunpack.c.l.b16 %v94
    %v1156 = vunpack.c.h.b16 %v94
    %v1157 = vunpack.c.l.b16 %v95
    %v1158 = vunpack.c.h.b16 %v95
    %v1159 = vunpack.c.l.b16 %v96
    %v1160 = vunpack.c.h.b16 %v96
    %v1161 = vunpack.c.l.b16 %v97
    %v1162 = vunpack.c.h.b16 %v97
    %v1163 = vunpack.c.l.b16 %v98
    %v1164 = vunpack.c.h.b16 %v98
    %v1165 = vunpack.c.l.b16 %v99
    %v1166 = vunpack.c.h.b16 %v99
    %v1167 = vunpack.c.l.b16 %v100
    %v1168 = vunpack.c.h.b16 %v100
    %v1169 = vunpack.c.l.b16 %v101
    %v1170 = vunpack.c.h.b16 %v101
    %v1171 = vunpack.c.l.b16 %v102
    %v1172 = vunpack.c.h.b16 %v102
    %v1173 = vunpack.c.l.b16 %v103
    %v1174 = vunpack.c.h.b16 %v103
    %v1175 = vunpack.c.l.b16 %v104
    %v1176 = vunpack.c.h.b16 %v104
    %v1177 = vunpack.c.l.b16 %v105
    %v1178 = vunpack.c.h.b16 %v105
    %v1179 = vunpack.c.l.b16 %v106
    %v1180 = vunpack.c.h.b16 %v106
    %v1181 = vunpack.c.l.b16 %v107
    %v1182 = vunpack.c.h.b16 %v107
    %v1183 = vunpack.c.l.b16 %v108
    %v1184 = vunpack.c.h.b16 %v108
    %v1185 = vunpack.c.l.b16 %v109
    %v1186 = vunpack.c.h.b16 %v109
    %v1187 = vunpack.c.l.b16 %v110
    %v1188 = vunpack.c.h.b16 %v110
    %v1189 = vunpack.c.l.b16 %v111
    %v1190 = vunpack.c.h.b16 %v111
    %v1191 = vunpack.c.l.b16 %v112
    %v1192 = vunpack.c.h.b16 %v112
    %v1193 = vunpack.c.l.b16 %v113
    %v1194 = vunpack.c.h.b16 %v113
    %v1195 = vunpack.c.l.b16 %v114
    %v1196 = vunpack.c.h.b16 %v114
    %v1197 = vunpack.c.l.b16 %v115
    %v1198 = vunpack.c.h.b16 %v115
    %v1199 = vunpack.c.l.b16 %v116
    %v1200 = vunpack.c.h.b16 %v116
    %v1201 = vunpack.c.l.b16 %v117
    %v1202 = vunpack.c.h.b16 %v117
    %v1203 = vunpack.c.l.b16 %v118
    %v1204 = vunpack.c.h.b16 %v118
    %v1205 = vunpack.c.l.b16 %v119
    %v1206 = vunpack.c.h.b16 %v119
    %v1207 = vunpack.c.l.b16 %v120
    %v1208 = vunpack.c.h.b16 %v120
    %v1209 = vunpack.c.l.b16 %v121
    %v1210 = vunpack.c.h.b16 %v121
    %v1211 = vunpack.c.l.b16 %v122
    %v1212 = vunpack.c.h.b16 %v122
    %v1213 = vunpack.c.l.b16 %v123
    %v1214 = vunpack.c.h.b16 %v123
    %v1215 = vunpack.c.l.b16 %v124
    %v1216 = vunpack.c.h.b16 %v124
    %v1217 = vunpack.c.l.b16 %v125
    %v1218 = vunpack.c.h.b16 %v125
    %v1219 = vunpack.c.l.b16 %v126
    %v1220 = vunpack.c.h.b16 %v126
    %v1221 = vunpack.c.l.b16 %v127
    %v1222 = vunpack.c.h.b16 %v127
    %v1223 = vunpack.c.l.b16 %v128
    %v1224 = vunpack.c.h.b16 %v128
    %v1225 = vunpack.c.l.b16 %v129
    %v1226 = vunpack.c.h.b16 %v129
    %v1227 = vunpack.c.l.b16 %v130
    %v1228 = vunpack.c.h.b16 %v130
    %v1229 = vunpack.c.l.b16 %v131
    %v1230 = vunpack.c.h.b16 %v131
    %v1231 = vunpack.c.l.b16 %v132
    %v1232 = vunpack.c.h.b16 %v132
    %v1233 = vunpack.c.l.b16 %v133
    %v1234 = vunpack.c.h.b16 %v133
    %v1235 = vunpack.c.l.b16 %v134
    %v1236 = vunpack.c.h.b16 %v134
    %v1237 = vunpack.c.l.b16 %v135
    %v1238 = vunpack.c.h.b16 %v135
    %v1239 = vunpack.c.l.b16 %v136
    %v1240 = vunpack.c.h.b16 %v136
    %v1241 = vunpack.c.l.b16 %v137
    %v1242 = vunpack.c.h.b16 %v137
    %v1243 = vunpack.c.l.b16 %v138
    %v1244 = vunpack.c.h.b16 %v138
    %v1245 = vunpack.c.l.b16 %v139
    %v1246 = vunpack.c.h.b16 %v139
    %v1247 = vunpack.c.l.b16 %v140
    %v1248 = vunpack.c.h.b16 %v140
    %v1249 = vunpack.c.l.b16 %v141
    %v1250 = vunpack.c.h.b16 %v141
    %v1251 = vunpack.c.l.b16 %v142
    %v1252 = vunpack.c.h.b16 %v142
    %v1253 = vunpack.c.l.b16 %v143
    %v1254 = vunpack.c.h.b16 %v143
    %v1255 = vunpack.c.l.b16 %v144
    %v1256 = vunpack.c.h.b16 %v144
    %v1257 = vunpack.c.l.b16 %v145
    %v1258 = vunpack.c.h.b16 %v145
    %v1259 = vunpack.c.l.b16 %v146
    %v1260 = vunpack.c.h.b16 %v146
    %v1261 = vunpack.c.l.b16 %v147
    %v1262 = vunpack.c.h.b16 %v147
    %v1263 = vunpack.c.l.b16 %v148
    %v1264 = vunpack.c.h.b16 %v148
    %v1265 = vunpack.c.l.b16 %v149
    %v1266 = vunpack.c.h.b16 %v149
    %v1267 = vunpack.c.l.b16 %v150
    %v1268 = vunpack.c.h.b16 %v150
    %v1269 = vunpack.c.l.b16 %v151
    %v1270 = vunpack.c.h.b16 %v151
    %v1271 = vunpack.c.l.b16 %v152
    %v1272 = vunpack.c.h.b16 %v152
    %v1273 = vunpack.c.l.b16 %v153
    %v1274 = vunpack.c.h.b16 %v153
    %v1275 = vunpack.c.l.b16 %v154
    %v1276 = vunpack.c.h.b16 %v154
    %v1277 = vunpack.c.l.b16 %v155
    %v1278 = vunpack.c.h.b16 %v155
    %v1279 = vunpack.c.l.b16 %v156
    %v1280 = vunpack.c.h.b16 %v156
    %v1281 = vunpack.c.l.b16 %v157
    %v1282 = vunpack.c.h.b16 %v157
    %v1283 = vunpack.c.l.b16 %v158
    %v1284 = vunpack.c.h.b16 %v158
    %v1285 = vunpack.c.l.b16 %v159
    %v1286 = vunpack.c.h.b16 %v159
    %v1287 = vunpack.c.l.b16 %v160
    %v1288 = vunpack.c.h.b16 %v160
    %v1289 = vunpack.c.l.b16 %v161
    %v1290 = vunpack.c.h.b16 %v161
    %v1291 = vunpack.c.l.b16 %v162
    %v1292 = vunpack.c.h.b16 %v162
    %v1293 = vunpack.c.l.b16 %v163
    %v1294 = vunpack.c.h.b16 %v163
    %v1295 = vunpack.c.l.b16 %v164
    %v1296 = vunpack.c.h.b16 %v164
    %v1297 = vunpack.c.l.b16 %v165
    %v1298 = vunpack.c.h.b16 %v165
    %v1299 = vunpack.c.l.b16 %v166
    %v1300 = vunpack.c.h.b16 %v166
    %v1301 = vunpack.c.l.b16 %v167
    %v1302 = vunpack.c.h.b16 %v167
    %v1303 = vunpack.c.l.b16 %v168
    %v1304 = vunpack.c.h.b16 %v168
    %v1305 = vunpack.c.l.b16 %v169
    %v1306 = vunpack.c.h.b16 %v169
    %v1307 = vunpack.c.l.b16 %v170
    %v1308 = vunpack.c.h.b16 %v170
    %v1309 = vunpack.c.l.b16 %v171
    %v1310 = vunpack.c.h.b16 %v171
    %v1311 = vunpack.c.l.b16 %v172
    %v1312 = vunpack.c.h.b16 %v172
    %v1313 = vunpack.c.l.b16 %v173
    %v1314 = vunpack.c.h.b16 %v173
    %v1315 = vunpack.c.l.b16 %v174
    %v1316 = vunpack.c.h.b16 %v174
    %v1317 = vunpack.c.l.b16 %v175
    %v1318 = vunpack.c.h.b16 %v175
    %v1319 = vunpack.c.l.b16 %v176
    %v1320 = vunpack.c.h.b16 %v176
    %v1321 = vunpack.c.l.b16 %v177
    %v1322 = vunpack.c.h.b16 %v177
    %v1323 = vunpack.c.l.b16 %v178
    %v1324 = vunpack.c.h.b16 %v178
    %v1325 = vunpack.c.l.b16 %v179
    %v1326 = vunpack.c.h.b16 %v179
    %v1327 = vunpack.c.l.b16 %v180
    %v1328 = vunpack.c.h.b16 %v180
    %v1329 = vunpack.c.l.b16 %v181
    %v1330 = vunpack.c.h.b16 %v181
    %v1331 = vunpack.c.l.b16 %v182
    %v1332 = vunpack.c.h.b16 %v182
    %v1333 = vunpack.c.l.b16 %v183
    %v1334 = vunpack.c.h.b16 %v183
    %v1335 = vunpack.c.l.b16 %v184
    %v1336 = vunpack.c.h.b16 %v184
    %v1337 = vunpack.c.l.b16 %v185
    %v1338 = vunpack.c.h.b16 %v185
    %v1339 = vunpack.c.l.b16 %v186
    %v1340 = vunpack.c.h.b16 %v186
    %v1341 = vunpack.c.l.b16 %v187
    %v1342 = vunpack.c.h.b16 %v187
    %v1343 = vunpack.c.l.b16 %v188
    %v1344 = vunpack.c.h.b16 %v188
    %v1345 = vunpack.c.l.b16 %v189
    %v1346 = vunpack.c.h.b16 %v189
    %v1347 = vunpack.c.l.b16 %v190
    %v1348 = vunpack.c.h.b16 %v190
    %v1349 = vunpack.c.l.b16 %v191
    %v1350 = vunpack.c.h.b16 %v191
    %v1351 = vunpack.c.l.b16 %v192
    %v1352 = vunpack.c.h.b16 %v192
    %v1353 = vunpack.c.l.b16 %v193
    %v1354 = vunpack.c.h.b16 %v193
    %v1355 = vunpack.c.l.b16 %v194
    %v1356 = vunpack.c.h.b16 %v194
    %v1357 = vunpack.c.l.b16 %v195
    %v1358 = vunpack.c.h.b16 %v195
    %v1359 = vunpack.c.l.b16 %v196
    %v1360 = vunpack.c.h.b16 %v196
    %v1361 = vunpack.c.l.b16 %v197
    %v1362 = vunpack.c.h.b16 %v197
    %v1363 = vunpack.c.l.b16 %v198
    %v1364 = vunpack.c.h.b16 %v198
    %v1365 = vunpack.c.l.b16 %v199
    %v1366 = vunpack.c.h.b16 %v199
    %v1367 = vunpack.c.l.b16 %v200
    %v1368 = vunpack.c.h.b16 %v200
    %v1369 = vunpack.c.l.b16 %v201
    %v1370 = vunpack.c.h.b16 %v201
    %v1371 = vunpack.c.l.b16 %v202
    %v1372 = vunpack.c.h.b16 %v202
    %v1373 = vunpack.c.l.b16 %v203
    %v1374 = vunpack.c.h.b16 %v203
    %v1375 = vunpack.c.l.b16 %v204
    %v1376 = vunpack.c.h.b16 %v204
    %v1377 = vunpack.c.l.b16 %v205
    %v1378 = vunpack.c.h.b16 %v205
    %v1379 = vunpack.c.l.b16 %v206
    %v1380 = vunpack.c.h.b16 %v206
    %v1381 = vunpack.c.l.b16 %v207
    %v1382 = vunpack.c.h.b16 %v207
    %v1383 = vunpack.c.l.b16 %v208
    %v1384 = vunpack.c.h.b16 %v208
    %v1385 = vunpack.c.l.b16 %v209
    %v1386 = vunpack.c.h.b16 %v209
    %v1387 = vunpack.c.l.b16 %v210
    %v1388 = vunpack.c.h.b16 %v210
    %v1389 = vunpack.c.l.b16 %v211
    %v1390 = vunpack.c.h.b16 %v211
    %v1391 = vunpack.c.l.b16 %v212
    %v1392 = vunpack.c.h.b16 %v212
    %v1393 = vunpack.c.l.b16 %v213
    %v1394 = vunpack.c.h.b16 %v213
    %v1395 = vunpack.c.l.b16 %v214
    %v1396 = vunpack.c.h.b16 %v214
    %v1397 = vunpack.c.l.b16 %v215
    %v1398 = vunpack.c.h.b16 %v215
    %v1399 = vunpack.c.l.b16 %v216
    %v1400 = vunpack.c.h.b16 %v216
    %v1401 = vunpack.c.l.b16 %v217
    %v1402 = vunpack.c.h.b16 %v217
    %v1403 = vunpack.c.l.b16 %v218
    %v1404 = vunpack.c.h.b16 %v218
    %v1405 = vunpack.c.l.b16 %v219
    %v1406 = vunpack.c.h.b16 %v219
    %v1407 = vunpack.c.l.b16 %v220
    %v1408 = vunpack.c.h.b16 %v220
    %v1409 = vunpack.c.l.b16 %v221
    %v1410 = vunpack.c.h.b16 %v221
    %v1411 = vunpack.c.l.b16 %v222
    %v1412 = vunpack.c.h.b16 %v222
    %v1413 = vunpack.c.l.b16 %v223
    %v1414 = vunpack.c.h.b16 %v223
    %v1415 = vunpack.c.l.b16 %v224
    %v1416 = vunpack.c.h.b16 %v224
    %v1417 = vunpack.c.l.b16 %v225
    %v1418 = vunpack.c.h.b16 %v225
    %v1419 = vunpack.c.l.b16 %v226
    %v1420 = vunpack.c.h.b16 %v226
    %v1421 = vunpack.c.l.b16 %v227
    %v1422 = vunpack.c.h.b16 %v227
    %v1423 = vunpack.c.l.b16 %v228
    %v1424 = vunpack.c.h.b16 %v228
    %v1425 = vunpack.c.l.b16 %v229
    %v1426 = vunpack.c.h.b16 %v229
    %v1427 = vunpack.c.l.b16 %v230
    %v1428 = vunpack.c.h.b16 %v230
    %v1429 = vunpack.c.l.b16 %v231
    %v1430 = vunpack.c.h.b16 %v231
    %v1431 = vunpack.c.l.b16 %v232
    %v1432 = vunpack.c.h.b16 %v232
    %v1433 = vunpack.c.l.b16 %v233
    %v1434 = vunpack.c.h.b16 %v233
    %v1435 = vunpack.c.l.b16 %v234
    %v1436 = vunpack.c.h.b16 %v234
    %v1437 = vunpack.c.l.b16 %v235
    %v1438 = vunpack.c.h.b16 %v235
    %v1439 = vunpack.c.l.b16 %v236
    %v1440 = vunpack.c.h.b16 %v236
    %v1441 = vunpack.c.l.b16 %v237
    %v1442 = vunpack.c.h.b16 %v237
    %v1443 = vunpack.c.l.b16 %v238
    %v1444 = vunpack.c.h.b16 %v238
    %v1445 = vunpack.c.l.b16 %v239
    %v1446 = vunpack.c.h.b16 %v239
    %v1447 = vunpack.c.l.b16 %v240
    %v1448 = vunpack.c.h.b16 %v240
    %v1449 = vunpack.c.l.b16 %v241
    %v1450 = vunpack.c.h.b16 %v241
    %v1451 = vunpack.c.l.b16 %v242
    %v1452 = vunpack.c.h.b16 %v242
    %v1453 = vunpack.c.l.b16 %v243
    %v1454 = vunpack.c.h.b16 %v243
    %v1455 = vunpack.c.l.b16 %v244
    %v1456 = vunpack.c.h.b16 %v244
    %v1457 = vunpack.c.l.b16 %v245
    %v1458 = vunpack.c.h.b16 %v245
    %v1459 = vunpack.c.l.b16 %v246
    %v1460 = vunpack.c.h.b16 %v246
    %v1461 = vunpack.c.l.b16 %v247
    %v1462 = vunpack.c.h.b16 %v247
    %v1463 = vunpack.c.l.b16 %v248
    %v1464 = vunpack.c.h.b16 %v248
    %v1465 = vunpack.c.l.b16 %v249
    %v1466 = vunpack.c.h.b16 %v249
    %v1467 = vunpack.c.l.b16 %v250
    %v1468 = vunpack.c.h.b16 %v250
    %v1469 = vunpack.c.l.b16 %v251
    %v1470 = vunpack.c.h.b16 %v251
    %v1471 = vunpack.c.l.b16 %v252
    %v1472 = vunpack.c.h.b16 %v252
    %v1473 = vunpack.c.l.b16 %v253
    %v1474 = vunpack.c.h.b16 %v253
    %v1475 = vunpack.c.l.b16 %v254
    %v1476 = vunpack.c.h.b16 %v254
    %v1477 = vunpack.c.l.b16 %v255
    %v1478 = vunpack.c.h.b16 %v255
    %v1479 = vunpack.c.l.b16 %v256
    %v1480 = vunpack.c.h.b16 %v256
    %v1481 = vunpack.c.l.b16 %v257
    %v1482 = vunpack.c.h.b16 %v257
    %v1483 = vunpack.c.l.b16 %v258
    %v1484 = vunpack.c.h.b16 %v258
    %v1485 = vunpack.c.l.b16 %v259
    %v1486 = vunpack.c.h.b16 %v259
    %v1487 = vunpack.c.l.b16 %v260
    %v1488 = vunpack.c.h.b16 %v260
    %v1489 = vunpack.c.l.b16 %v261
    %v1490 = vunpack.c.h.b16 %v261
    %v1491 = vunpack.c.l.b16 %v262
    %v1492 = vunpack.c.h.b16 %v262
    %v1493 = vunpack.c.l.b16 %v263
    %v1494 = vunpack.c.h.b16 %v263
    %v1495 = vunpack.c.l.b16 %v264
    %v1496 = vunpack.c.h.b16 %v264
    %v1497 = vunpack.c.l.b16 %v265
    %v1498 = vunpack.c.h.b16 %v265
    %v1499 = vunpack.c.l.b16 %v266
    %v1500 = vunpack.c.h.b16 %v266
    %v1501 = vunpack.c.l.b16 %v267
    %v1502 = vunpack.c.h.b16 %v267
    %v1503 = vunpack.c.l.b16 %v268
    %v1504 = vunpack.c.h.b16 %v268
    %v1505 = vunpack.c.l.b16 %v269
    %v1506 = vunpack.c.h.b16 %v269
    %v1507 = vunpack.c.l.b16 %v270
    %v1508 = vunpack.c.h.b16 %v270
    %v1509 = vunpack.c.l.b16 %v271
    %v1510 = vunpack.c.h.b16 %v271
    %v1511 = vunpack.c.l.b16 %v272
    %v1512 = vunpack.c.h.b16 %v272
    %v1513 = vunpack.c.l.b16 %v273
    %v1514 = vunpack.c.h.b16 %v273
    %v1515 = vunpack.c.l.b16 %v274
    %v1516 = vunpack.c.h.b16 %v274
    %v1517 = vunpack.c.l.b16 %v275
    %v1518 = vunpack.c.h.b16 %v275
    %v1519 = vunpack.c.l.b16 %v276
    %v1520 = vunpack.c.h.b16 %v276
    %v1521 = vunpack.c.l.b16 %v277
    %v1522 = vunpack.c.h.b16 %v277
    %v1523 = vunpack.c.l.b16 %v278
    %v1524 = vunpack.c.h.b16 %v278
    %v1525 = vunpack.c.l.b16 %v279
    %v1526 = vunpack.c.h.b16 %v279
    %v1527 = vunpack.c.l.b16 %v280
    %v1528 = vunpack.c.h.b16 %v280
    %v1529 = vunpack.c.l.b16 %v281
    %v1530 = vunpack.c.h.b16 %v281
    %v1531 = vunpack.c.l.b16 %v282
    %v1532 = vunpack.c.h.b16 %v282
    %v1533 = vunpack.c.l.b16 %v283
    %v1534 = vunpack.c.h.b16 %v283
    %v1535 = vunpack.c.l.b16 %v284
    %v1536 = vunpack.c.h.b16 %v284
    %v1537 = vunpack.c.l.b16 %v285
    %v1538 = vunpack.c.h.b16 %v285
    %v1539 = vunpack.c.l.b16 %v286
    %v1540 = vunpack.c.h.b16 %v286
    %v1541 = vunpack.c.l.b16 %v287
    %v1542 = vunpack.c.h.b16 %v287
    %v1543 = vunpack.c.l.b16 %v288
    %v1544 = vunpack.c.h.b16 %v288
    %v1545 = vunpack.c.l.b16 %v289
    %v1546 = vunpack.c.h.b16 %v289
    %v1547 = vunpack.c.l.b16 %v290
    %v1548 = vunpack.c.h.b16 %v290
    %v1549 = vunpack.c.l.b16 %v291
    %v1550 = vunpack.c.h.b16 %v291
    %v1551 = vunpack.c.l.b16 %v292
    %v1552 = vunpack.c.h.b16 %v292
    %v1553 = vunpack.c.l.b16 %v293
    %v1554 = vunpack.c.h.b16 %v293
    %v1555 = vunpack.c.l.b16 %v294
    %v1556 = vunpack.c.h.b16 %v294
    %v1557 = vunpack.c.l.b16 %v295
    %v1558 = vunpack.c.h.b16 %v295
    %v1559 = vunpack.c.l.b16 %v296
    %v1560 = vunpack.c.h.b16 %v296
    %v1561 = vunpack.c.l.b16 %v297
    %v1562 = vunpack.c.h.b16 %v297
    %v1563 = vunpack.c.l.b16 %v298
    %v1564 = vunpack.c.h.b16 %v298
    %v1565 = vunpack.c.l.b16 %v299
    %v1566 = vunpack.c.h.b16 %v299
    %v1567 = vunpack.c.l.b16 %v300
    %v1568 = vunpack.c.h.b16 %v300
    %v1569 = vunpack.c.l.b16 %v301
    %v1570 = vunpack.c.h.b16 %v301
    %v1571 = vunpack.c.l.b16 %v302
    %v1572 = vunpack.c.h.b16 %v302
    %v1573 = vunpack.c.l.b16 %v303
    %v1574 = vunpack.c.h.b16 %v303
    %v1575 = vunpack.c.l.b16 %v304
    %v1576 = vunpack.c.h.b16 %v304
    %v1577 = vunpack.c.l.b16 %v305
    %v1578 = vunpack.c.h.b16 %v305
    %v1579 = vunpack.c.l.b16 %v306
    %v1580 = vunpack.c.h.b16 %v306
    %v1581 = vunpack.c.l.b16 %v307
    %v1582 = vunpack.c.h.b16 %v307
    %v1583 = vunpack.c.l.b16 %v308
    %v1584 = vunpack.c.h.b16 %v308
    %v1585 = vunpack.c.l.b16 %v309
    %v1586 = vunpack.c.h.b16 %v309
    %v1587 = vunpack.c.l.b16 %v310
    %v1588 = vunpack.c.h.b16 %v310
    %v1589 = vunpack.c.l.b16 %v311
    %v1590 = vunpack.c.h.b16 %v311
    %v1591 = vunpack.c.l.b16 %v312
    %v1592 = vunpack.c.h.b16 %v312
    %v1593 = vunpack.c.l.b16 %v313
    %v1594 = vunpack.c.h.b16 %v313
    %v1595 = vunpack.c.l.b16 %v314
    %v1596 = vunpack.c.h.b16 %v314
    %v1597 = vunpack.c.l.b16 %v315
    %v1598 = vunpack.c.h.b16 %v315
    %v1599 = vunpack.c.l.b16 %v316
    %v1600 = vunpack.c.h.b16 %v316
    %v1601 = vunpack.c.l.b16 %v317
    %v1602 = vunpack.c.h.b16 %v317
    %v1603 = vunpack.c.l.b16 %v318
    %v1604 = vunpack.c.h.b16 %v318
    %v1605 = vunpack.c.l.b16 %v319
    %v1606 = vunpack.c.h.b16 %v319
    %v1607 = vunpack.c.l.b16 %v320
    %v1608 = vunpack.c.h.b16 %v320
    %v1609 = vunpack.c.l.b16 %v321
    %v1610 = vunpack.c.h.b16 %v321
    %v1611 = vunpack.c.l.b16 %v322
    %v1612 = vunpack.c.h.b16 %v322
    %v1613 = vunpack.c.l.b16 %v323
    %v1614 = vunpack.c.h.b16 %v323
    %v1615 = vunpack.c.l.b16 %v324
    %v1616 = vunpack.c.h.b16 %v324
    %v1617 = vunpack.c.l.b16 %v325
    %v1618 = vunpack.c.h.b16 %v325
    %v1619 = vunpack.c.l.b16 %v326
    %v1620 = vunpack.c.h.b16 %v326
    %v1621 = vunpack.c.l.b16 %v327
    %v1622 = vunpack.c.h.b16 %v327
    %v1623 = vunpack.c.l.b16 %v328
    %v1624 = vunpack.c.h.b16 %v328
    %v1625 = vunpack.c.l.b16 %v329
    %v1626 = vunpack.c.h.b16 %v329
    %v1627 = vunpack.c.l.b16 %v330
    %v1628 = vunpack.c.h.b16 %v330
    %v1629 = vunpack.c.l.b16 %v331
    %v1630 = vunpack.c.h.b16 %v331
    %v1631 = vunpack.c.l.b16 %v332
    %v1632 = vunpack.c.h.b16 %v332
    %v1633 = vunpack.c.l.b16 %v333
    %v1634 = vunpack.c.h.b16 %v333
    %v1635 = vunpack.c.l.b16 %v334
    %v1636 = vunpack.c.h.b16 %v334
    %v1637 = vunpack.c.l.b16 %v335
    %v1638 = vunpack.c.h.b16 %v335
    %v1639 = vunpack.c.l.b16 %v336
    %v1640 = vunpack.c.h.b16 %v336
    %v1641 = vunpack.c.l.b16 %v337
    %v1642 = vunpack.c.h.b16 %v337
    %v1643 = vunpack.c.l.b16 %v338
    %v1644 = vunpack.c.h.b16 %v338
    %v1645 = vunpack.c.l.b16 %v339
    %v1646 = vunpack.c.h.b16 %v339
    %v1647 = vunpack.c.l.b16 %v340
    %v1648 = vunpack.c.h.b16 %v340
    %v1649 = vunpack.c.l.b16 %v341
    %v1650 = vunpack.c.h.b16 %v341
    %v1651 = vunpack.c.l.b16 %v342
    %v1652 = vunpack.c.h.b16 %v342
    %v1653 = vunpack.c.l.b16 %v343
    %v1654 = vunpack.c.h.b16 %v343
    %v1655 = vunpack.c.l.b16 %v344
    %v1656 = vunpack.c.h.b16 %v344
    %v1657 = vunpack.c.l.b16 %v345
    %v1658 = vunpack.c.h.b16 %v345
    %v1659 = vunpack.c.l.b16 %v346
    %v1660 = vunpack.c.h.b16 %v346
    %v1661 = vunpack.c.l.b16 %v347
    %v1662 = vunpack.c.h.b16 %v347
    %v1663 = vunpack.c.l.b16 %v348
    %v1664 = vunpack.c.h.b16 %v348
    %v1665 = vunpack.c.l.b16 %v349
    %v1666 = vunpack.c.h.b16 %v349
    %v1667 = vunpack.c.l.b16 %v350
    %v1668 = vunpack.c.h.b16 %v350
    %v1669 = vunpack.c.l.b16 %v351
    %v1670 = vunpack.c.h.b16 %v351
    %v1671 = vunpack.c.l.b16 %v352
    %v1672 = vunpack.c.h.b16 %v352
    %v1673 = vunpack.c.l.b16 %v353
    %v1674 = vunpack.c.h.b16 %v353
    %v1675 = vunpack.c.l.b16 %v354
    %v1676 = vunpack.c.h.b16 %v354
    %v1677 = vunpack.c.l.b16 %v355
    %v1678 = vunpack.c.h.b16 %v355
    %v1679 = vunpack.c.l.b16 %v356
    %v1680 = vunpack.c.h.b16 %v356
    %v1681 = vunpack.c.l.b16 %v357
    %v1682 = vunpack.c.h.b16 %v357
    %v1683 = vunpack.c.l.b16 %v358
    %v1684 = vunpack.c.h.b16 %v358
    %v1685 = vunpack.c.l.b16 %v359
    %v1686 = vunpack.c.h.b16 %v359
    %v1687 = vunpack.c.l.b16 %v360
    %v1688 = vunpack.c.h.b16 %v360
    %v1689 = vunpack.c.l.b16 %v361
    %v1690 = vunpack.c.h.b16 %v361
    %v1691 = vunpack.c.l.b16 %v362
    %v1692 = vunpack.c.h.b16 %v362
    %v1693 = vunpack.c.l.b16 %v363
    %v1694 = vunpack.c.h.b16 %v363
    %v1695 = vunpack.c.l.b16 %v364
    %v1696 = vunpack.c.h.b16 %v364
    %v1697 = vunpack.c.l.b16 %v365
    %v1698 = vunpack.c.h.b16 %v365
    %v1699 = vunpack.c.l.b16 %v366
    %v1700 = vunpack.c.h.b16 %v366
    %v1701 = vunpack.c.l.b16 %v367
    %v1702 = vunpack.c.h.b16 %v367
    %v1703 = vunpack.c.l.b16 %v368
    %v1704 = vunpack.c.h.b16 %v368
    %v1705 = vunpack.c.l.b16 %v369
    %v1706 = vunpack.c.h.b16 %v369
    %v1707 = vunpack.c.l.b16 %v370
    %v1708 = vunpack.c.h.b16 %v370
    %v1709 = vunpack.c.l.b16 %v371
    %v1710 = vunpack.c.h.b16 %v371
    %v1711 = vunpack.c.l.b16 %v372
    %v1712 = vunpack.c.h.b16 %v372
    %v1713 = vunpack.c.l.b16 %v373
    %v1714 = vunpack.c.h.b16 %v373
    %v1715 = vunpack.c.l.b16 %v374
    %v1716 = vunpack.c.h.b16 %v374
    %v1717 = vunpack.c.l.b16 %v375
    %v1718 = vunpack.c.h.b16 %v375
    %v1719 = vunpack.c.l.b16 %v376
    %v1720 = vunpack.c.h.b16 %v376
    %v1721 = vunpack.c.l.b16 %v377
    %v1722 = vunpack.c.h.b16 %v377
    %v1723 = vunpack.c.l.b16 %v378
    %v1724 = vunpack.c.h.b16 %v378
    %v1725 = vunpack.c.l.b16 %v379
    %v1726 = vunpack.c.h.b16 %v379
    %v1727 = vunpack.c.l.b16 %v380
    %v1728 = vunpack.c.h.b16 %v380
    %v1729 = vunpack.c.l.b16 %v381
    %v1730 = vunpack.c.h.b16 %v381
    %v1731 = vunpack.c.l.b16 %v382
    %v1732 = vunpack.c.h.b16 %v382
    %v1733 = vunpack.c.l.b16 %v383
    %v1734 = vunpack.c.h.b16 %v383
    %v1735 = vunpack.c.l.b16 %v384
    %v1736 = vunpack.c.h.b16 %v384
    %v1737 = vunpack.c.l.b16 %v385
    %v1738 = vunpack.c.h.b16 %v385
    %v1739 = vunpack.c.l.b16 %v386
    %v1740 = vunpack.c.h.b16 %v386
    %v1741 = vunpack.c.l.b16 %v387
    %v1742 = vunpack.c.h.b16 %v387
    %v1743 = vunpack.c.l.b16 %v388
    %v1744 = vunpack.c.h.b16 %v388
    %v1745 = vunpack.c.l.b16 %v389
    %v1746 = vunpack.c.h.b16 %v389
    %v1747 = vunpack.c.l.b16 %v390
    %v1748 = vunpack.c.h.b16 %v390
    %v1749 = vunpack.c.l.b16 %v391
    %v1750 = vunpack.c.h.b16 %v391
    %v1751 = vunpack.c.l.b16 %v392
    %v1752 = vunpack.c.h.b16 %v392
    %v1753 = vunpack.c.l.b16 %v393
    %v1754 = vunpack.c.h.b16 %v393
    %v1755 = vunpack.c.l.b16 %v394
    %v1756 = vunpack.c.h.b16 %v394
    %v1757 = vunpack.c.l.b16 %v395
    %v1758 = vunpack.c.h.b16 %v395
    %v1759 = vunpack.c.l.b16 %v396
    %v1760 = vunpack.c.h.b16 %v396
    %v1761 = vunpack.c.l.b16 %v397
    %v1762 = vunpack.c.h.b16 %v397
    %v1763 = vunpack.c.l.b16 %v398
    %v1764 = vunpack.c.h.b16 %v398
    %v1765 = vunpack.c.l.b16 %v399
    %v1766 = vunpack.c.h.b16 %v399
    %v1767 = vunpack.c.l.b16 %v400
    %v1768 = vunpack.c.h.b16 %v400
    %v1769 = vunpack.c.l.b16 %v401
    %v1770 = vunpack.c.h.b16 %v401
    %v1771 = vunpack.c.l.b16 %v402
    %v1772 = vunpack.c.h.b16 %v402
    %v1773 = vunpack.c.l.b16 %v403
    %v1774 = vunpack.c.h.b16 %v403
    %v1775 = vunpack.c.l.b16 %v404
    %v1776 = vunpack.c.h.b16 %v404
    %v1777 = vunpack.c.l.b16 %v405
    %v1778 = vunpack.c.h.b16 %v405
    %v1779 = vunpack.c.l.b16 %v406
    %v1780 = vunpack.c.h.b16 %v406
    %v1781 = vunpack.c.l.b16 %v407
    %v1782 = vunpack.c.h.b16 %v407
    %v1783 = vunpack.c.l.b16 %v408
    %v1784 = vunpack.c.h.b16 %v408
    %v1785 = vunpack.c.l.b16 %v409
    %v1786 = vunpack.c.h.b16 %v409
    %v1787 = vunpack.c.l.b16 %v410
    %v1788 = vunpack.c.h.b16 %v410
    %v1789 = vunpack.c.l.b16 %v411
    %v1790 = vunpack.c.h.b16 %v411
    %v1791 = vunpack.c.l.b16 %v412
    %v1792 = vunpack.c.h.b16 %v412
    %v1793 = vunpack.c.l.b16 %v413
    %v1794 = vunpack.c.h.b16 %v413
    %v1795 = vunpack.c.l.b16 %v414
    %v1796 = vunpack.c.h.b16 %v414
    %v1797 = vunpack.c.l.b16 %v415
    %v1798 = vunpack.c.h.b16 %v415
    %v1799 = vunpack.c.l.b16 %v416
    %v1800 = vunpack.c.h.b16 %v416
    %v1801 = vunpack.c.l.b16 %v417
    %v1802 = vunpack.c.h.b16 %v417
    %v1803 = vunpack.c.l.b16 %v418
    %v1804 = vunpack.c.h.b16 %v418
    %v1805 = vunpack.c.l.b16 %v419
    %v1806 = vunpack.c.h.b16 %v419
    %v1807 = vunpack.c.l.b16 %v420
    %v1808 = vunpack.c.h.b16 %v420
    %v1809 = vunpack.c.l.b16 %v421
    %v1810 = vunpack.c.h.b16 %v421
    %v1811 = vunpack.c.l.b16 %v422
    %v1812 = vunpack.c.h.b16 %v422
    %v1813 = vunpack.c.l.b16 %v423
    %v1814 = vunpack.c.h.b16 %v423
    %v1815 = vunpack.c.l.b16 %v424
    %v1816 = vunpack.c.h.b16 %v424
    %v1817 = vunpack.c.l.b16 %v425
    %v1818 = vunpack.c.h.b16 %v425
    %v1819 = vunpack.c.l.b16 %v426
    %v1820 = vunpack.c.h.b16 %v426
    %v1821 = vunpack.c.l.b16 %v427
    %v1822 = vunpack.c.h.b16 %v427
    %v1823 = vunpack.c.l.b16 %v428
    %v1824 = vunpack.c.h.b16 %v428
    %v1825 = vunpack.c.l.b16 %v429
    %v1826 = vunpack.c.h.b16 %v429
    %v1827 = vunpack.c.l.b16 %v430
    %v1828 = vunpack.c.h.b16 %v430
    %v1829 = vunpack.c.l.b16 %v431
    %v1830 = vunpack.c.h.b16 %v431
    %v1831 = vunpack.c.l.b16 %v432
    %v1832 = vunpack.c.h.b16 %v432
    %v1833 = vunpack.c.l.b16 %v433
    %v1834 = vunpack.c.h.b16 %v433
    %v1835 = vunpack.c.l.b16 %v434
    %v1836 = vunpack.c.h.b16 %v434
    %v1837 = vunpack.c.l.b16 %v435
    %v1838 = vunpack.c.h.b16 %v435
    %v1839 = vunpack.c.l.b16 %v436
    %v1840 = vunpack.c.h.b16 %v436
    %v1841 = vunpack.c.l.b16 %v437
    %v1842 = vunpack.c.h.b16 %v437
    %v1843 = vunpack.c.l.b16 %v438
    %v1844 = vunpack.c.h.b16 %v438
    %v1845 = vunpack.c.l.b16 %v439
    %v1846 = vunpack.c.h.b16 %v439
    %v1847 = vunpack.c.l.b16 %v440
    %v1848 = vunpack.c.h.b16 %v440
    %v1849 = vunpack.c.l.b16 %v441
    %v1850 = vunpack.c.h.b16 %v441
    %v1851 = vunpack.c.l.b16 %v442
    %v1852 = vunpack.c.h.b16 %v442
    %v1853 = vunpack.c.l.b16 %v443
    %v1854 = vunpack.c.h.b16 %v443
    %v1855 = vunpack.c.l.b16 %v444
    %v1856 = vunpack.c.h.b16 %v444
    %v1857 = vunpack.c.l.b16 %v445
    %v1858 = vunpack.c.h.b16 %v445
    %v1859 = vunpack.c.l.b16 %v446
    %v1860 = vunpack.c.h.b16 %v446
    %v1861 = vunpack.c.l.b16 %v447
    %v1862 = vunpack.c.h.b16 %v447
    %v1863 = vunpack.c.l.b16 %v448
    %v1864 = vunpack.c.h.b16 %v448
    %v1865 = vunpack.c.l.b16 %v449
    %v1866 = vunpack.c.h.b16 %v449
    %v1867 = vunpack.c.l.b16 %v450
    %v1868 = vunpack.c.h.b16 %v450
    %v1869 = vunpack.c.l.b16 %v451
    %v1870 = vunpack.c.h.b16 %v451
    %v1871 = vunpack.c.l.b16 %v452
    %v1872 = vunpack.c.h.b16 %v452
    %v1873 = vunpack.c.l.b16 %v453
    %v1874 = vunpack.c.h.b16 %v453
    %v1875 = vunpack.c.l.b16 %v454
    %v1876 = vunpack.c.h.b16 %v454
    %v1877 = vunpack.c.l.b16 %v455
    %v1878 = vunpack.c.h.b16 %v455
    %v1879 = vunpack.c.l.b16 %v456
    %v1880 = vunpack.c.h.b16 %v456
    %v1881 = vunpack.c.l.b16 %v457
    %v1882 = vunpack.c.h.b16 %v457
    %v1883 = vunpack.c.l.b16 %v458
    %v1884 = vunpack.c.h.b16 %v458
    %v1885 = vunpack.c.l.b16 %v459
    %v1886 = vunpack.c.h.b16 %v459
    %v1887 = vunpack.c.l.b16 %v460
    %v1888 = vunpack.c.h.b16 %v460
    %v1889 = vunpack.c.l.b16 %v461
    %v1890 = vunpack.c.h.b16 %v461
    %v1891 = vpack.c.b16 %v1031, %v1027
    %v1892 = vpack.c.b16 %v1032, %v1028
    %v1893 = vpack.c.b16 %v1033, %v1029
    %v1894 = vpack.c.b16 %v1034, %v1030
    %v1895 = vpack.c.b16 %v1039, %v1035
    %v1896 = vpack.c.b16 %v1040, %v1036
    %v1897 = vpack.c.b16 %v1041, %v1037
    %v1898 = vpack.c.b16 %v1042, %v1038
    %v1899 = vpack.c.b16 %v1047, %v1043
    %v1900 = vpack.c.b16 %v1048, %v1044
    %v1901 = vpack.c.b16 %v1049, %v1045
    %v1902 = vpack.c.b16 %v1050, %v1046
    %v1903 = vpack.c.b16 %v1055, %v1051
    %v1904 = vpack.c.b16 %v1056, %v1052
    %v1905 = vpack.c.b16 %v1057, %v1053
    %v1906 = vpack.c.b16 %v1058, %v1054
    %v1907 = vpack.c.b16 %v1063, %v1059
    %v1908 = vpack.c.b16 %v1064, %v1060
    %v1909 = vpack.c.b16 %v1065, %v1061
    %v1910 = vpack.c.b16 %v1066, %v1062
    %v1911 = vpack.c.b16 %v1071, %v1067
    %v1912 = vpack.c.b16 %v1072, %v1068
    %v1913 = vpack.c.b16 %v1073, %v1069
    %v1914 = vpack.c.b16 %v1074, %v1070
    %v1915 = vpack.c.b16 %v1079, %v1075
    %v1916 = vpack.c.b16 %v1080, %v1076
    %v1917 = vpack.c.b16 %v1081, %v1077
    %v1918 = vpack.c.b16 %v1082, %v1078
    %v1919 = vpack.c.b16 %v1087, %v1083
    %v1920 = vpack.c.b16 %v1088, %v1084
    %v1921 = vpack.c.b16 %v1089, %v1085
    %v1922 = vpack.c.b16 %v1090, %v1086
    %v1923 = vpack.c.b16 %v1095, %v1091
    %v1924 = vpack.c.b16 %v1096, %v1092
    %v1925 = vpack.c.b16 %v1097, %v1093
    %v1926 = vpack.c.b16 %v1098, %v1094
    %v1927 = vpack.c.b16 %v1103, %v1099
    %v1928 = vpack.c.b16 %v1104, %v1100
    %v1929 = vpack.c.b16 %v1105, %v1101
    %v1930 = vpack.c.b16 %v1106, %v1102
    %v1931 = vpack.c.b16 %v1111, %v1107
    %v1932 = vpack.c.b16 %v1112, %v1108
    %v1933 = vpack.c.b16 %v1113, %v1109
    %v1934 = vpack.c.b16 %v1114, %v1110
    %v1935 = vpack.c.b16 %v1119, %v1115
    %v1936 = vpack.c.b16 %v1120, %v1116
    %v1937 = vpack.c.b16 %v1121, %v1117
    %v1938 = vpack.c.b16 %v1122, %v1118
    %v1939 = vpack.c.b16 %v1127, %v1123
    %v1940 = vpack.c.b16 %v1128, %v1124
    %v1941 = vpack.c.b16 %v1129, %v1125
    %v1942 = vpack.c.b16 %v1130, %v1126
    %v1943 = vpack.c.b16 %v1135, %v1131
    %v1944 = vpack.c.b16 %v1136, %v1132
    %v1945 = vpack.c.b16 %v1137, %v1133
    %v1946 = vpack.c.b16 %v1138, %v1134
    %v1947 = vpack.c.b16 %v1143, %v1139
    %v1948 = vpack.c.b16 %v1144, %v1140
    %v1949 = vpack.c.b16 %v1145, %v1141
    %v1950 = vpack.c.b16 %v1146, %v1142
    %v1951 = vpack.c.b16 %v1151, %v1147
    %v1952 = vpack.c.b16 %v1152, %v1148
    %v1953 = vpack.c.b16 %v1153, %v1149
    %v1954 = vpack.c.b16 %v1154, %v1150
    %v1955 = vpack.c.b16 %v1159, %v1155
    %v1956 = vpack.c.b16 %v1160, %v1156
    %v1957 = vpack.c.b16 %v1161, %v1157
    %v1958 = vpack.c.b16 %v1162, %v1158
    %v1959 = vpack.c.b16 %v1167, %v1163
    %v1960 = vpack.c.b16 %v1168, %v1164
    %v1961 = vpack.c.b16 %v1169, %v1165
    %v1962 = vpack.c.b16 %v1170, %v1166
    %v1963 = vpack.c.b16 %v1175, %v1171
    %v1964 = vpack.c.b16 %v1176, %v1172
    %v1965 = vpack.c.b16 %v1177, %v1173
    %v1966 = vpack.c.b16 %v1178, %v1174
    %v1967 = vpack.c.b16 %v1183, %v1179
    %v1968 = vpack.c.b16 %v1184, %v1180
    %v1969 = vpack.c.b16 %v1185, %v1181
    %v1970 = vpack.c.b16 %v1186, %v1182
    %v1971 = vpack.c.b16 %v1191, %v1187
    %v1972 = vpack.c.b16 %v1192, %v1188
    %v1973 = vpack.c.b16 %v1193, %v1189
    %v1974 = vpack.c.b16 %v1194, %v1190
    %v1975 = vpack.c.b16 %v1199, %v1195
    %v1976 = vpack.c.b16 %v1200, %v1196
    %v1977 = vpack.c.b16 %v1201, %v1197
    %v1978 = vpack.c.b16 %v1202, %v1198
    %v1979 = vpack.c.b16 %v1207, %v1203
    %v1980 = vpack.c.b16 %v1208, %v1204
    %v1981 = vpack.c.b16 %v1209, %v1205
    %v1982 = vpack.c.b16 %v1210, %v1206
    %v1983 = vpack.c.b16 %v1215, %v1211
    %v1984 = vpack.c.b16 %v1216, %v1212
    %v1985 = vpack.c.b16 %v1217, %v1213
    %v1986 = vpack.c.b16 %v1218, %v1214
    %v1987 = vpack.c.b16 %v1223, %v1219
    %v1988 = vpack.c.b16 %v1224, %v1220
    %v1989 = vpack.c.b16 %v1225, %v1221
    %v1990 = vpack.c.b16 %v1226, %v1222
    %v1991 = vpack.c.b16 %v1231, %v1227
    %v1992 = vpack.c.b16 %v1232, %v1228
    %v1993 = vpack.c.b16 %v1233, %v1229
    %v1994 = vpack.c.b16 %v1234, %v1230
    %v1995 = vpack.c.b16 %v1239, %v1235
    %v1996 = vpack.c.b16 %v1240, %v1236
    %v1997 = vpack.c.b16 %v1241, %v1237
    %v1998 = vpack.c.b16 %v1242, %v1238
    %v1999 = vpack.c.b16 %v1247, %v1243
    %v2000 = vpack.c.b16 %v1248, %v1244
    %v2001 = vpack.c.b16 %v1249, %v1245
    %v2002 = vpack.c.b16 %v1250, %v1246
    %v2003 = vpack.c.b16 %v1255, %v1251
    %v2004 = vpack.c.b16 %v1256, %v1252
    %v2005 = vpack.c.b16 %v1257, %v1253
    %v2006 = vpack.c.b16 %v1258, %v1254
    %v2007 = vpack.c.b16 %v1263, %v1259
    %v2008 = vpack.c.b16 %v1264, %v1260
    %v2009 = vpack.c.b16 %v1265, %v1261
    %v2010 = vpack.c.b16 %v1266, %v1262
    %v2011 = vpack.c.b16 %v1271, %v1267
    %v2012 = vpack.c.b16 %v1272, %v1268
    %v2013 = vpack.c.b16 %v1273, %v1269
    %v2014 = vpack.c.b16 %v1274, %v1270
    %v2015 = vpack.c.b16 %v1279, %v1275
    %v2016 = vpack.c.b16 %v1280, %v1276
    %v2017 = vpack.c.b16 %v1281, %v1277
    %v2018 = vpack.c.b16 %v1282, %v1278
    %v2019 = vpack.c.b16 %v1287, %v1283
    %v2020 = vpack.c.b16 %v1288, %v1284
    %v2021 = vpack.c.b16 %v1289, %v1285
    %v2022 = vpack.c.b16 %v1290, %v1286
    %v2023 = vpack.c.b16 %v1295, %v1291
    %v2024 = vpack.c.b16 %v1296, %v1292
    %v2025 = vpack.c.b16 %v1297, %v1293
    %v2026 = vpack.c.b16 %v1298, %v1294
    %v2027 = vpack.c.b16 %v1303, %v1299
    %v2028 = vpack.c.b16 %v1304, %v1300
    %v2029 = vpack.c.b16 %v1305, %v1301
    %v2030 = vpack.c.b16 %v1306, %v1302
    %v2031 = vpack.c.b16 %v1311, %v1307
    %v2032 = vpack.c.b16 %v1312, %v1308
    %v2033 = vpack.c.b16 %v1313, %v1309
    %v2034 = vpack.c.b16 %v1314, %v1310
    %v2035 = vpack.c.b16 %v1319, %v1315
    %v2036 = vpack.c.b16 %v1320, %v1316
    %v2037 = vpack.c.b16 %v1321, %v1317
    %v2038 = vpack.c.b16 %v1322, %v1318
    %v2039 = vpack.c.b16 %v1327, %v1323
    %v2040 = vpack.c.b16 %v1328, %v1324
    %v2041 = vpack.c.b16 %v1329, %v1325
    %v2042 = vpack.c.b16 %v1330, %v1326
    %v2043 = vpack.c.b16 %v1335, %v1331
    %v2044 = vpack.c.b16 %v1336, %v1332
    %v2045 = vpack.c.b16 %v1337, %v1333
    %v2046 = vpack.c.b16 %v1338, %v1334
    %v2047 = vpack.c.b16 %v1343, %v1339
    %v2048 = vpack.c.b16 %v1344, %v1340
    %v2049 = vpack.c.b16 %v1345, %v1341
    %v2050 = vpack.c.b16 %v1346, %v1342
    %v2051 = vpack.c.b16 %v1351, %v1347
    %v2052 = vpack.c.b16 %v1352, %v1348
    %v2053 = vpack.c.b16 %v1353, %v1349
    %v2054 = vpack.c.b16 %v1354, %v1350
    %v2055 = vpack.c.b16 %v1359, %v1355
    %v2056 = vpack.c.b16 %v1360, %v1356
    %v2057 = vpack.c.b16 %v1361, %v1357
    %v2058 = vpack.c.b16 %v1362, %v1358
    %v2059 = vpack.c.b16 %v1367, %v1363
    %v2060 = vpack.c.b16 %v1368, %v1364
    %v2061 = vpack.c.b16 %v1369, %v1365
    %v2062 = vpack.c.b16 %v1370, %v1366
    %v2063 = vpack.c.b16 %v1375, %v1371
    %v2064 = vpack.c.b16 %v1376, %v1372
    %v2065 = vpack.c.b16 %v1377, %v1373
    %v2066 = vpack.c.b16 %v1378, %v1374
    %v2067 = vpack.c.b16 %v1383, %v1379
    %v2068 = vpack.c.b16 %v1384, %v1380
    %v2069 = vpack.c.b16 %v1385, %v1381
    %v2070 = vpack.c.b16 %v1386, %v1382
    %v2071 = vpack.c.b16 %v1391, %v1387
    %v2072 = vpack.c.b16 %v1392, %v1388
    %v2073 = vpack.c.b16 %v1393, %v1389
    %v2074 = vpack.c.b16 %v1394, %v1390
    %v2075 = vpack.c.b16 %v1399, %v1395
    %v2076 = vpack.c.b16 %v1400, %v1396
    %v2077 = vpack.c.b16 %v1401, %v1397
    %v2078 = vpack.c.b16 %v1402, %v1398
    %v2079 = vpack.c.b16 %v1407, %v1403
    %v2080 = vpack.c.b16 %v1408, %v1404
    %v2081 = vpack.c.b16 %v1409, %v1405
    %v2082 = vpack.c.b16 %v1410, %v1406
    %v2083 = vpack.c.b16 %v1415, %v1411
    %v2084 = vpack.c.b16 %v1416, %v1412
    %v2085 = vpack.c.b16 %v1417, %v1413
    %v2086 = vpack.c.b16 %v1418, %v1414
    %v2087 = vpack.c.b16 %v1423, %v1419
    %v2088 = vpack.c.b16 %v1424, %v1420
    %v2089 = vpack.c.b16 %v1425, %v1421
    %v2090 = vpack.c.b16 %v1426, %v1422
    %v2091 = vpack.c.b16 %v1431, %v1427
    %v2092 = vpack.c.b16 %v1432, %v1428
    %v2093 = vpack.c.b16 %v1433, %v1429
    %v2094 = vpack.c.b16 %v1434, %v1430
    %v2095 = vpack.c.b16 %v1439, %v1435
    %v2096 = vpack.c.b16 %v1440, %v1436
    %v2097 = vpack.c.b16 %v1441, %v1437
    %v2098 = vpack.c.b16 %v1442, %v1438
    %v2099 = vpack.c.b16 %v1447, %v1443
    %v2100 = vpack.c.b16 %v1448, %v1444
    %v2101 = vpack.c.b16 %v1449, %v1445
    %v2102 = vpack.c.b16 %v1450, %v1446
    %v2103 = vpack.c.b16 %v1455, %v1451
    %v2104 = vpack.c.b16 %v1456, %v1452
    %v2105 = vpack.c.b16 %v1457, %v1453
    %v2106 = vpack.c.b16 %v1458, %v1454
    %v2107 = vpack.c.b16 %v1463, %v1459
    %v2108 = vpack.c.b16 %v1464, %v1460
    %v2109 = vpack.c.b16 %v1465, %v1461
    %v2110 = vpack.c.b16 %v1466, %v1462
    %v2111 = vpack.c.b16 %v1471, %v1467
    %v2112 = vpack.c.b16 %v1472, %v1468
    %v2113 = vpack.c.b16 %v1473, %v1469
    %v2114 = vpack.c.b16 %v1474, %v1470
    %v2115 = vpack.c.b16 %v1479, %v1475
    %v2116 = vpack.c.b16 %v1480, %v1476
    %v2117 = vpack.c.b16 %v1481, %v1477
    %v2118 = vpack.c.b16 %v1482, %v1478
    %v2119 = vpack.c.b16 %v1487, %v1483
    %v2120 = vpack.c.b16 %v1488, %v1484
    %v2121 = vpack.c.b16 %v1489, %v1485
    %v2122 = vpack.c.b16 %v1490, %v1486
    %v2123 = vpack.c.b16 %v1495, %v1491
    %v2124 = vpack.c.b16 %v1496, %v1492
    %v2125 = vpack.c.b16 %v1497, %v1493
    %v2126 = vpack.c.b16 %v1498, %v1494
    %v2127 = vpack.c.b16 %v1503, %v1499
    %v2128 = vpack.c.b16 %v1504, %v1500
    %v2129 = vpack.c.b16 %v1505, %v1501
    %v2130 = vpack.c.b16 %v1506, %v1502
    %v2131 = vpack.c.b16 %v1511, %v1507
    %v2132 = vpack.c.b16 %v1512, %v1508
    %v2133 = vpack.c.b16 %v1513, %v1509
    %v2134 = vpack.c.b16 %v1514, %v1510
    %v2135 = vpack.c.b16 %v1519, %v1515
    %v2136 = vpack.c.b16 %v1520, %v1516
    %v2137 = vpack.c.b16 %v1521, %v1517
    %v2138 = vpack.c.b16 %v1522, %v1518
    %v2139 = vpack.c.b16 %v1527, %v1523
    %v2140 = vpack.c.b16 %v1528, %v1524
    %v2141 = vpack.c.b16 %v1529, %v1525
    %v2142 = vpack.c.b16 %v1530, %v1526
    %v2143 = vpack.c.b16 %v1535, %v1531
    %v2144 = vpack.c.b16 %v1536, %v1532
    %v2145 = vpack.c.b16 %v1537, %v1533
    %v2146 = vpack.c.b16 %v1538, %v1534
    %v2147 = vpack.c.b16 %v1543, %v1539
    %v2148 = vpack.c.b16 %v1544, %v1540
    %v2149 = vpack.c.b16 %v1545, %v1541
    %v2150 = vpack.c.b16 %v1546, %v1542
    %v2151 = vpack.c.b16 %v1551, %v1547
    %v2152 = vpack.c.b16 %v1552, %v1548
    %v2153 = vpack.c.b16 %v1553, %v1549
    %v2154 = vpack.c.b16 %v1554, %v1550
    %v2155 = vpack.c.b16 %v1559, %v1555
    %v2156 = vpack.c.b16 %v1560, %v1556
    %v2157 = vpack.c.b16 %v1561, %v1557
    %v2158 = vpack.c.b16 %v1562, %v1558
    %v2159 = vpack.c.b16 %v1567, %v1563
    %v2160 = vpack.c.b16 %v1568, %v1564
    %v2161 = vpack.c.b16 %v1569, %v1565
    %v2162 = vpack.c.b16 %v1570, %v1566
    %v2163 = vpack.c.b16 %v1575, %v1571
    %v2164 = vpack.c.b16 %v1576, %v1572
    %v2165 = vpack.c.b16 %v1577, %v1573
    %v2166 = vpack.c.b16 %v1578, %v1574
    %v2167 = vpack.c.b16 %v1583, %v1579
    %v2168 = vpack.c.b16 %v1584, %v1580
    %v2169 = vpack.c.b16 %v1585, %v1581
    %v2170 = vpack.c.b16 %v1586, %v1582
    %v2171 = vpack.c.b16 %v1591, %v1587
    %v2172 = vpack.c.b16 %v1592, %v1588
    %v2173 = vpack.c.b16 %v1593, %v1589
    %v2174 = vpack.c.b16 %v1594, %v1590
    %v2175 = vpack.c.b16 %v1599, %v1595
    %v2176 = vpack.c.b16 %v1600, %v1596
    %v2177 = vpack.c.b16 %v1601, %v1597
    %v2178 = vpack.c.b16 %v1602, %v1598
    %v2179 = vpack.c.b16 %v1607, %v1603
    %v2180 = vpack.c.b16 %v1608, %v1604
    %v2181 = vpack.c.b16 %v1609, %v1605
    %v2182 = vpack.c.b16 %v1610, %v1606
    %v2183 = vpack.c.b16 %v1615, %v1611
    %v2184 = vpack.c.b16 %v1616, %v1612
    %v2185 = vpack.c.b16 %v1617, %v1613
    %v2186 = vpack.c.b16 %v1618, %v1614
    %v2187 = vpack.c.b16 %v1623, %v1619
    %v2188 = vpack.c.b16 %v1624, %v1620
    %v2189 = vpack.c.b16 %v1625, %v1621
    %v2190 = vpack.c.b16 %v1626, %v1622
    %v2191 = vpack.c.b16 %v1631, %v1627
    %v2192 = vpack.c.b16 %v1632, %v1628
    %v2193 = vpack.c.b16 %v1633, %v1629
    %v2194 = vpack.c.b16 %v1634, %v1630
    %v2195 = vpack.c.b16 %v1639, %v1635
    %v2196 = vpack.c.b16 %v1640, %v1636
    %v2197 = vpack.c.b16 %v1641, %v1637
    %v2198 = vpack.c.b16 %v1642, %v1638
    %v2199 = vpack.c.b16 %v1647, %v1643
    %v2200 = vpack.c.b16 %v1648, %v1644
    %v2201 = vpack.c.b16 %v1649, %v1645
    %v2202 = vpack.c.b16 %v1650, %v1646
    %v2203 = vpack.c.b16 %v1655, %v1651
    %v2204 = vpack.c.b16 %v1656, %v1652
    %v2205 = vpack.c.b16 %v1657, %v1653
    %v2206 = vpack.c.b16 %v1658, %v1654
    %v2207 = vpack.c.b16 %v1663, %v1659
    %v2208 = vpack.c.b16 %v1664, %v1660
    %v2209 = vpack.c.b16 %v1665, %v1661
    %v2210 = vpack.c.b16 %v1666, %v1662
    %v2211 = vpack.c.b16 %v1671, %v1667
    %v2212 = vpack.c.b16 %v1672, %v1668
    %v2213 = vpack.c.b16 %v1673, %v1669
    %v2214 = vpack.c.b16 %v1674, %v1670
    %v2215 = vpack.c.b16 %v1679, %v1675
    %v2216 = vpack.c.b16 %v1680, %v1676
    %v2217 = vpack.c.b16 %v1681, %v1677
    %v2218 = vpack.c.b16 %v1682, %v1678
    %v2219 = vpack.c.b16 %v1687, %v1683
    %v2220 = vpack.c.b16 %v1688, %v1684
    %v2221 = vpack.c.b16 %v1689, %v1685
    %v2222 = vpack.c.b16 %v1690, %v1686
    %v2223 = vpack.c.b16 %v1695, %v1691
    %v2224 = vpack.c.b16 %v1696, %v1692
    %v2225 = vpack.c.b16 %v1697, %v1693
    %v2226 = vpack.c.b16 %v1698, %v1694
    %v2227 = vpack.c.b16 %v1703, %v1699
    %v2228 = vpack.c.b16 %v1704, %v1700
    %v2229 = vpack.c.b16 %v1705, %v1701
    %v2230 = vpack.c.b16 %v1706, %v1702
    %v2231 = vpack.c.b16 %v1711, %v1707
    %v2232 = vpack.c.b16 %v1712, %v1708
    %v2233 = vpack.c.b16 %v1713, %v1709
    %v2234 = vpack.c.b16 %v1714, %v1710
    %v2235 = vpack.c.b16 %v1719, %v1715
    %v2236 = vpack.c.b16 %v1720, %v1716
    %v2237 = vpack.c.b16 %v1721, %v1717
    %v2238 = vpack.c.b16 %v1722, %v1718
    %v2239 = vpack.c.b16 %v1727, %v1723
    %v2240 = vpack.c.b16 %v1728, %v1724
    %v2241 = vpack.c.b16 %v1729, %v1725
    %v2242 = vpack.c.b16 %v1730, %v1726
    %v2243 = vpack.c.b16 %v1735, %v1731
    %v2244 = vpack.c.b16 %v1736, %v1732
    %v2245 = vpack.c.b16 %v1737, %v1733
    %v2246 = vpack.c.b16 %v1738, %v1734
    %v2247 = vpack.c.b16 %v1743, %v1739
    %v2248 = vpack.c.b16 %v1744, %v1740
    %v2249 = vpack.c.b16 %v1745, %v1741
    %v2250 = vpack.c.b16 %v1746, %v1742
    %v2251 = vpack.c.b16 %v1751, %v1747
    %v2252 = vpack.c.b16 %v1752, %v1748
    %v2253 = vpack.c.b16 %v1753, %v1749
    %v2254 = vpack.c.b16 %v1754, %v1750
    %v2255 = vpack.c.b16 %v1759, %v1755
    %v2256 = vpack.c.b16 %v1760, %v1756
    %v2257 = vpack.c.b16 %v1761, %v1757
    %v2258 = vpack.c.b16 %v1762, %v1758
    %v2259 = vpack.c.b16 %v1767, %v1763
    %v2260 = vpack.c.b16 %v1768, %v1764
    %v2261 = vpack.c.b16 %v1769, %v1765
    %v2262 = vpack.c.b16 %v1770, %v1766
    %v2263 = vpack.c.b16 %v1775, %v1771
    %v2264 = vpack.c.b16 %v1776, %v1772
    %v2265 = vpack.c.b16 %v1777, %v1773
    %v2266 = vpack.c.b16 %v1778, %v1774
    %v2267 = vpack.c.b16 %v1783, %v1779
    %v2268 = vpack.c.b16 %v1784, %v1780
    %v2269 = vpack.c.b16 %v1785, %v1781
    %v2270 = vpack.c.b16 %v1786, %v1782
    %v2271 = vpack.c.b16 %v1791, %v1787
    %v2272 = vpack.c.b16 %v1792, %v1788
    %v2273 = vpack.c.b16 %v1793, %v1789
    %v2274 = vpack.c.b16 %v1794, %v1790
    %v2275 = vpack.c.b16 %v1799, %v1795
    %v2276 = vpack.c.b16 %v1800, %v1796
    %v2277 = vpack.c.b16 %v1801, %v1797
    %v2278 = vpack.c.b16 %v1802, %v1798
    %v2279 = vpack.c.b16 %v1807, %v1803
    %v2280 = vpack.c.b16 %v1808, %v1804
    %v2281 = vpack.c.b16 %v1809, %v1805
    %v2282 = vpack.c.b16 %v1810, %v1806
    %v2283 = vpack.c.b16 %v1815, %v1811
    %v2284 = vpack.c.b16 %v1816, %v1812
    %v2285 = vpack.c.b16 %v1817, %v1813
    %v2286 = vpack.c.b16 %v1818, %v1814
    %v2287 = vpack.c.b16 %v1823, %v1819
    %v2288 = vpack.c.b16 %v1824, %v1820
    %v2289 = vpack.c.b16 %v1825, %v1821
    %v2290 = vpack.c.b16 %v1826, %v1822
    %v2291 = vpack.c.b16 %v1831, %v1827
    %v2292 = vpack.c.b16 %v1832, %v1828
    %v2293 = vpack.c.b16 %v1833, %v1829
    %v2294 = vpack.c.b16 %v1834, %v1830
    %v2295 = vpack.c.b16 %v1839, %v1835
    %v2296 = vpack.c.b16 %v1840, %v1836
    %v2297 = vpack.c.b16 %v1841, %v1837
    %v2298 = vpack.c.b16 %v1842, %v1838
    %v2299 = vpack.c.b16 %v1847, %v1843
    %v2300 = vpack.c.b16 %v1848, %v1844
    %v2301 = vpack.c.b16 %v1849, %v1845
    %v2302 = vpack.c.b16 %v1850, %v1846
    %v2303 = vpack.c.b16 %v1855, %v1851
    %v2304 = vpack.c.b16 %v1856, %v1852
    %v2305 = vpack.c.b16 %v1857, %v1853
    %v2306 = vpack.c.b16 %v1858, %v1854
    %v2307 = vpack.c.b16 %v1863, %v1859
    %v2308 = vpack.c.b16 %v1864, %v1860
    %v2309 = vpack.c.b16 %v1865, %v1861
    %v2310 = vpack.c.b16 %v1866, %v1862
    %v2311 = vpack.c.b16 %v1871, %v1867
    %v2312 = vpack.c.b16 %v1872, %v1868
    %v2313 = vpack.c.b16 %v1873, %v1869
    %v2314 = vpack.c.b16 %v1874, %v1870
    %v2315 = vpack.c.b16 %v1879, %v1875
    %v2316 = vpack.c.b16 %v1880, %v1876
    %v2317 = vpack.c.b16 %v1881, %v1877
    %v2318 = vpack.c.b16 %v1882, %v1878
    %v2319 = vpack.c.b16 %v1887, %v1883
    %v2320 = vpack.c.b16 %v1888, %v1884
    %v2321 = vpack.c.b16 %v1889, %v1885
    %v2322 = vpack.c.b16 %v1890, %v1886
    %vm2755 = vcmask 523264
    %v2757 = vsel %vm2755, %v579, 0
    %2759 = vmatprep.subr.bf16.mxu0 %v1920
    %2760 = vmatpush1.bf16.msra.mxu0 %v1919
    %2761 = vmatprep.subr.bf16.mxu0 %v1916
    %2762 = vmatpush1.bf16.msra.mxu0 %v1915
    %2763 = vmatprep.subr.bf16.mxu0 %v1912
    %2764 = vmatpush1.bf16.msra.mxu0 %v1911
    %2765 = vmatprep.subr.bf16.mxu0 %v1908
    %2766 = vmatpush1.bf16.msra.mxu0 %v1907
    %2767 = vmatprep.subr.bf16.mxu0 %v1904
    %2768 = vmatpush1.bf16.msra.mxu0 %v1903
    %2769 = vmatprep.subr.bf16.mxu0 %v1900
    %2770 = vmatpush1.bf16.msra.mxu0 %v1899
    %2771 = vmatprep.subr.bf16.mxu0 %v1896
    %2772 = vmatpush1.bf16.msra.mxu0 %v1895
    %2773 = vmatprep.subr.bf16.mxu0 %v1892
    %2774 = vmatpush1.bf16.msra.mxu0 %v1891
    %2775 = vmatprep.subr.bf16.mxu0 %v1952
    %2776 = vmatpush2.bf16.msra.mxu0 %v1951
    %2777 = vmatprep.subr.bf16.mxu0 %v1948
    %2778 = vmatpush2.bf16.msra.mxu0 %v1947
    %2779 = vmatprep.subr.bf16.mxu0 %v1944
    %2780 = vmatpush2.bf16.msra.mxu0 %v1943
    %2781 = vmatprep.subr.bf16.mxu0 %v1940
    %2782 = vmatpush2.bf16.msra.mxu0 %v1939
    %2783 = vmatprep.subr.bf16.mxu0 %v1936
    %2784 = vmatpush2.bf16.msra.mxu0 %v1935
    %2785 = vmatprep.subr.bf16.mxu0 %v1932
    %2786 = vmatpush2.bf16.msra.mxu0 %v1931
    %2787 = vmatprep.subr.bf16.mxu0 %v1928
    %2788 = vmatpush2.bf16.msra.mxu0 %v1927
    %2789 = vmatprep.subr.bf16.mxu0 %v1924
    %2790 = vmatpush2.bf16.msra.mxu0 %v1923
    %2791 = vmatprep.mubr.bf16.mxu0 %v523
    %2792 = vmatmul.mubr.bf16.gmra.mxu0 %v509
    %v2793 = vpop.f32.mrf.mxu0
    %v2794 = vadd.f32 %v467, %v2793
    %v2795 = vpop.f32.mrf.mxu0
    %v2796 = vadd.f32 %v471, %v2795
    %v2797 = vpop.f32.mrf.mxu0
    %v2798 = vpop.f32.mrf.mxu0
    %2799 = vdwg.mxu0
    %2800 = vmatprep.subr.bf16.mxu0 %v1984
    %2801 = vmatpush1.bf16.msra.mxu0 %v1983
    %2802 = vmatprep.subr.bf16.mxu0 %v1980
    %2803 = vmatpush1.bf16.msra.mxu0 %v1979
    %2804 = vmatprep.subr.bf16.mxu0 %v1976
    %2805 = vmatpush1.bf16.msra.mxu0 %v1975
    %2806 = vmatprep.subr.bf16.mxu0 %v1972
    %2807 = vmatpush1.bf16.msra.mxu0 %v1971
    %2808 = vmatprep.subr.bf16.mxu0 %v1968
    %2809 = vmatpush1.bf16.msra.mxu0 %v1967
    %2810 = vmatprep.subr.bf16.mxu0 %v1964
    %2811 = vmatpush1.bf16.msra.mxu0 %v1963
    %2812 = vmatprep.subr.bf16.mxu0 %v1960
    %2813 = vmatpush1.bf16.msra.mxu0 %v1959
    %2814 = vmatprep.subr.bf16.mxu0 %v1956
    %2815 = vmatpush1.bf16.msra.mxu0 %v1955
    %2816 = vmatprep.subr.bf16.mxu0 %v2016
    %2817 = vmatpush2.bf16.msra.mxu0 %v2015
    %2818 = vmatprep.subr.bf16.mxu0 %v2012
    %2819 = vmatpush2.bf16.msra.mxu0 %v2011
    %2820 = vmatprep.subr.bf16.mxu0 %v2008
    %2821 = vmatpush2.bf16.msra.mxu0 %v2007
    %2822 = vmatprep.subr.bf16.mxu0 %v2004
    %2823 = vmatpush2.bf16.msra.mxu0 %v2003
    %2824 = vmatprep.subr.bf16.mxu0 %v2000
    %2825 = vmatpush2.bf16.msra.mxu0 %v1999
    %2826 = vmatprep.subr.bf16.mxu0 %v1996
    %2827 = vmatpush2.bf16.msra.mxu0 %v1995
    %2828 = vmatprep.subr.bf16.mxu0 %v1992
    %2829 = vmatpush2.bf16.msra.mxu0 %v1991
    %2830 = vmatprep.subr.bf16.mxu0 %v1988
    %2831 = vmatpush2.bf16.msra.mxu0 %v1987
    %2832 = vmatprep.mubr.bf16.mxu0 %v533
    %2833 = vmatmul.mubr.bf16.gmra.mxu0 %v531
    %v2834 = vpop.f32.mrf.mxu0
    %v2835 = vadd.f32 %v2794, %v2834
    %v2836 = vpop.f32.mrf.mxu0
    %v2837 = vadd.f32 %v2796, %v2836
    %v2838 = vpop.f32.mrf.mxu0
    %v2839 = vpop.f32.mrf.mxu0
    %2840 = vdwg.mxu0
    %2841 = vmatprep.subr.bf16.mxu0 %v2048
    %2842 = vmatpush1.bf16.msra.mxu0 %v2047
    %2843 = vmatprep.subr.bf16.mxu0 %v2044
    %2844 = vmatpush1.bf16.msra.mxu0 %v2043
    %2845 = vmatprep.subr.bf16.mxu0 %v2040
    %2846 = vmatpush1.bf16.msra.mxu0 %v2039
    %2847 = vmatprep.subr.bf16.mxu0 %v2036
    %2848 = vmatpush1.bf16.msra.mxu0 %v2035
    %2849 = vmatprep.subr.bf16.mxu0 %v2032
    %2850 = vmatpush1.bf16.msra.mxu0 %v2031
    %2851 = vmatprep.subr.bf16.mxu0 %v2028
    %2852 = vmatpush1.bf16.msra.mxu0 %v2027
    %2853 = vmatprep.subr.bf16.mxu0 %v2024
    %2854 = vmatpush1.bf16.msra.mxu0 %v2023
    %2855 = vmatprep.subr.bf16.mxu0 %v2020
    %2856 = vmatpush1.bf16.msra.mxu0 %v2019
    %2857 = vmatprep.subr.bf16.mxu0 %v2080
    %2858 = vmatpush2.bf16.msra.mxu0 %v2079
    %2859 = vmatprep.subr.bf16.mxu0 %v2076
    %2860 = vmatpush2.bf16.msra.mxu0 %v2075
    %2861 = vmatprep.subr.bf16.mxu0 %v2072
    %2862 = vmatpush2.bf16.msra.mxu0 %v2071
    %2863 = vmatprep.subr.bf16.mxu0 %v2068
    %2864 = vmatpush2.bf16.msra.mxu0 %v2067
    %2865 = vmatprep.subr.bf16.mxu0 %v2064
    %2866 = vmatpush2.bf16.msra.mxu0 %v2063
    %2867 = vmatprep.subr.bf16.mxu0 %v2060
    %2868 = vmatpush2.bf16.msra.mxu0 %v2059
    %2869 = vmatprep.subr.bf16.mxu0 %v2056
    %2870 = vmatpush2.bf16.msra.mxu0 %v2055
    %2871 = vmatprep.subr.bf16.mxu0 %v2052
    %2872 = vmatpush2.bf16.msra.mxu0 %v2051
    %2873 = vmatprep.mubr.bf16.mxu0 %v530
    %2874 = vmatmul.mubr.bf16.gmra.mxu0 %v516
    %v2875 = vpop.f32.mrf.mxu0
    %v2876 = vadd.f32 %v2835, %v2875
    %v2877 = vpop.f32.mrf.mxu0
    %v2878 = vadd.f32 %v2837, %v2877
    %v2879 = vpop.f32.mrf.mxu0
    %v2880 = vpop.f32.mrf.mxu0
    %2881 = vdwg.mxu0
    %2882 = vmatprep.subr.bf16.mxu0 %v2112
    %2883 = vmatpush1.bf16.msra.mxu0 %v2111
    %2884 = vmatprep.subr.bf16.mxu0 %v2108
    %2885 = vmatpush1.bf16.msra.mxu0 %v2107
    %2886 = vmatprep.subr.bf16.mxu0 %v2104
    %2887 = vmatpush1.bf16.msra.mxu0 %v2103
    %2888 = vmatprep.subr.bf16.mxu0 %v2100
    %2889 = vmatpush1.bf16.msra.mxu0 %v2099
    %2890 = vmatprep.subr.bf16.mxu0 %v2096
    %2891 = vmatpush1.bf16.msra.mxu0 %v2095
    %2892 = vmatprep.subr.bf16.mxu0 %v2092
    %2893 = vmatpush1.bf16.msra.mxu0 %v2091
    %2894 = vmatprep.subr.bf16.mxu0 %v2088
    %2895 = vmatpush1.bf16.msra.mxu0 %v2087
    %2896 = vmatprep.subr.bf16.mxu0 %v2084
    %2897 = vmatpush1.bf16.msra.mxu0 %v2083
    %2898 = vmatprep.subr.bf16.mxu0 %v2144
    %2899 = vmatpush2.bf16.msra.mxu0 %v2143
    %2900 = vmatprep.subr.bf16.mxu0 %v2140
    %2901 = vmatpush2.bf16.msra.mxu0 %v2139
    %2902 = vmatprep.subr.bf16.mxu0 %v2136
    %2903 = vmatpush2.bf16.msra.mxu0 %v2135
    %2904 = vmatprep.subr.bf16.mxu0 %v2132
    %2905 = vmatpush2.bf16.msra.mxu0 %v2131
    %2906 = vmatprep.subr.bf16.mxu0 %v2128
    %2907 = vmatpush2.bf16.msra.mxu0 %v2127
    %2908 = vmatprep.subr.bf16.mxu0 %v2124
    %2909 = vmatpush2.bf16.msra.mxu0 %v2123
    %2910 = vmatprep.subr.bf16.mxu0 %v2120
    %2911 = vmatpush2.bf16.msra.mxu0 %v2119
    %2912 = vmatprep.subr.bf16.mxu0 %v2116
    %2913 = vmatpush2.bf16.msra.mxu0 %v2115
    %2914 = vmatprep.mubr.bf16.mxu0 %v534
    %2915 = vmatmul.mubr.bf16.gmra.mxu0 %v532
    %v2916 = vpop.f32.mrf.mxu0
    %v2917 = vadd.f32 %v2876, %v2916
    %v2918 = vpop.f32.mrf.mxu0
    %v2919 = vadd.f32 %v2878, %v2918
    %v2920 = vpop.f32.mrf.mxu0
    %v2921 = vpop.f32.mrf.mxu0
    %2922 = vdwg.mxu0
    %2923 = vmatprep.subr.bf16.mxu0 %v2176
    %2924 = vmatpush1.bf16.msra.mxu0 %v2175
    %2925 = vmatprep.subr.bf16.mxu0 %v2172
    %2926 = vmatpush1.bf16.msra.mxu0 %v2171
    %2927 = vmatprep.subr.bf16.mxu0 %v2168
    %2928 = vmatpush1.bf16.msra.mxu0 %v2167
    %2929 = vmatprep.subr.bf16.mxu0 %v2164
    %2930 = vmatpush1.bf16.msra.mxu0 %v2163
    %2931 = vmatprep.subr.bf16.mxu0 %v2160
    %2932 = vmatpush1.bf16.msra.mxu0 %v2159
    %2933 = vmatprep.subr.bf16.mxu0 %v2156
    %2934 = vmatpush1.bf16.msra.mxu0 %v2155
    %2935 = vmatprep.subr.bf16.mxu0 %v2152
    %2936 = vmatpush1.bf16.msra.mxu0 %v2151
    %2937 = vmatprep.subr.bf16.mxu0 %v2148
    %2938 = vmatpush1.bf16.msra.mxu0 %v2147
    %2939 = vmatprep.subr.bf16.mxu0 %v2208
    %2940 = vmatpush2.bf16.msra.mxu0 %v2207
    %2941 = vmatprep.subr.bf16.mxu0 %v2204
    %2942 = vmatpush2.bf16.msra.mxu0 %v2203
    %2943 = vmatprep.subr.bf16.mxu0 %v2200
    %2944 = vmatpush2.bf16.msra.mxu0 %v2199
    %2945 = vmatprep.subr.bf16.mxu0 %v2196
    %2946 = vmatpush2.bf16.msra.mxu0 %v2195
    %2947 = vmatprep.subr.bf16.mxu0 %v2192
    %2948 = vmatpush2.bf16.msra.mxu0 %v2191
    %2949 = vmatprep.subr.bf16.mxu0 %v2188
    %2950 = vmatpush2.bf16.msra.mxu0 %v2187
    %2951 = vmatprep.subr.bf16.mxu0 %v2184
    %2952 = vmatpush2.bf16.msra.mxu0 %v2183
    %2953 = vmatprep.subr.bf16.mxu0 %v2180
    %2954 = vmatpush2.bf16.msra.mxu0 %v2179
    %2955 = vmatprep.mubr.bf16.mxu0 %v572
    %2956 = vmatmul.mubr.bf16.gmra.mxu0 %v558
    %v2957 = vpop.f32.mrf.mxu0
    %v2958 = vadd.f32 %v2917, %v2957
    %v2959 = vpop.f32.mrf.mxu0
    %v2960 = vadd.f32 %v2919, %v2959
    %v2961 = vpop.f32.mrf.mxu0
    %v2962 = vpop.f32.mrf.mxu0
    %2963 = vdwg.mxu0
    %2964 = vmatprep.subr.bf16.mxu0 %v2240
    %2965 = vmatpush1.bf16.msra.mxu0 %v2239
    %2966 = vmatprep.subr.bf16.mxu0 %v2236
    %2967 = vmatpush1.bf16.msra.mxu0 %v2235
    %2968 = vmatprep.subr.bf16.mxu0 %v2232
    %2969 = vmatpush1.bf16.msra.mxu0 %v2231
    %2970 = vmatprep.subr.bf16.mxu0 %v2228
    %2971 = vmatpush1.bf16.msra.mxu0 %v2227
    %2972 = vmatprep.subr.bf16.mxu0 %v2224
    %2973 = vmatpush1.bf16.msra.mxu0 %v2223
    %2974 = vmatprep.subr.bf16.mxu0 %v2220
    %2975 = vmatpush1.bf16.msra.mxu0 %v2219
    %2976 = vmatprep.subr.bf16.mxu0 %v2216
    %2977 = vmatpush1.bf16.msra.mxu0 %v2215
    %2978 = vmatprep.subr.bf16.mxu0 %v2212
    %2979 = vmatpush1.bf16.msra.mxu0 %v2211
    %2980 = vmatprep.subr.bf16.mxu0 %v2272
    %2981 = vmatpush2.bf16.msra.mxu0 %v2271
    %2982 = vmatprep.subr.bf16.mxu0 %v2268
    %2983 = vmatpush2.bf16.msra.mxu0 %v2267
    %2984 = vmatprep.subr.bf16.mxu0 %v2264
    %2985 = vmatpush2.bf16.msra.mxu0 %v2263
    %2986 = vmatprep.subr.bf16.mxu0 %v2260
    %2987 = vmatpush2.bf16.msra.mxu0 %v2259
    %2988 = vmatprep.subr.bf16.mxu0 %v2256
    %2989 = vmatpush2.bf16.msra.mxu0 %v2255
    %2990 = vmatprep.subr.bf16.mxu0 %v2252
    %2991 = vmatpush2.bf16.msra.mxu0 %v2251
    %2992 = vmatprep.subr.bf16.mxu0 %v2248
    %2993 = vmatpush2.bf16.msra.mxu0 %v2247
    %2994 = vmatprep.subr.bf16.mxu0 %v2244
    %2995 = vmatpush2.bf16.msra.mxu0 %v2243
    %2996 = vmatprep.mubr.bf16.mxu0 %v581
    %2997 = vmatmul.mubr.bf16.gmra.mxu0 %v580
    %v2998 = vpop.f32.mrf.mxu0
    %v2999 = vadd.f32 %v2958, %v2998
    %v3000 = vpop.f32.mrf.mxu0
    %v3001 = vadd.f32 %v2960, %v3000
    %v3002 = vpop.f32.mrf.mxu0
    %v3003 = vpop.f32.mrf.mxu0
    %3004 = vdwg.mxu0
    %3005 = vmatprep.subr.bf16.mxu0 %v2304
    %3006 = vmatpush1.bf16.msra.mxu0 %v2303
    %3007 = vmatprep.subr.bf16.mxu0 %v2300
    %3008 = vmatpush1.bf16.msra.mxu0 %v2299
    %3009 = vmatprep.subr.bf16.mxu0 %v2296
    %3010 = vmatpush1.bf16.msra.mxu0 %v2295
    %3011 = vmatprep.subr.bf16.mxu0 %v2292
    %3012 = vmatpush1.bf16.msra.mxu0 %v2291
    %3013 = vmatprep.subr.bf16.mxu0 %v2288
    %3014 = vmatpush1.bf16.msra.mxu0 %v2287
    %3015 = vmatprep.subr.bf16.mxu0 %v2284
    %3016 = vmatpush1.bf16.msra.mxu0 %v2283
    %3017 = vmatprep.subr.bf16.mxu0 %v2280
    %3018 = vmatpush1.bf16.msra.mxu0 %v2279
    %3019 = vmatprep.subr.bf16.mxu0 %v2276
    %3020 = vmatpush1.bf16.msra.mxu0 %v2275
    %3021 = vmatprep.subr.bf16.mxu0 0
    %3022 = vmatpush2.bf16.msra.mxu0 0
    %3023 = vmatprep.subr.bf16.mxu0 0
    %3024 = vmatpush2.bf16.msra.mxu0 0
    %3025 = vmatprep.subr.bf16.mxu0 0
    %3026 = vmatpush2.bf16.msra.mxu0 0
    %3027 = vmatprep.subr.bf16.mxu0 0
    %3028 = vmatpush2.bf16.msra.mxu0 0
    %3029 = vmatprep.subr.bf16.mxu0 %v2320
    %3030 = vmatpush2.bf16.msra.mxu0 %v2319
    %3031 = vmatprep.subr.bf16.mxu0 %v2316
    %3032 = vmatpush2.bf16.msra.mxu0 %v2315
    %3033 = vmatprep.subr.bf16.mxu0 %v2312
    %3034 = vmatpush2.bf16.msra.mxu0 %v2311
    %3035 = vmatprep.subr.bf16.mxu0 %v2308
    %3036 = vmatpush2.bf16.msra.mxu0 %v2307
    %3037 = vmatprep.mubr.bf16.mxu0 %v2757
    %3038 = vmatmul.mubr.bf16.gmra.mxu0 %v565
    %v3039 = vpop.f32.mrf.mxu0
    %v3040 = vadd.f32 %v2999, %v3039
    %v3041 = vpop.f32.mrf.mxu0
    %v3042 = vadd.f32 %v3001, %v3041
    %v3043 = vpop.f32.mrf.mxu0
    %v3044 = vpop.f32.mrf.mxu0
    %3045 = vdwg.mxu0
    %3046 = vmatprep.subr.bf16.mxu0 %v1922
    %3047 = vmatpush1.bf16.msra.mxu0 %v1921
    %3048 = vmatprep.subr.bf16.mxu0 %v1918
    %3049 = vmatpush1.bf16.msra.mxu0 %v1917
    %3050 = vmatprep.subr.bf16.mxu0 %v1914
    %3051 = vmatpush1.bf16.msra.mxu0 %v1913
    %3052 = vmatprep.subr.bf16.mxu0 %v1910
    %3053 = vmatpush1.bf16.msra.mxu0 %v1909
    %3054 = vmatprep.subr.bf16.mxu0 %v1906
    %3055 = vmatpush1.bf16.msra.mxu0 %v1905
    %3056 = vmatprep.subr.bf16.mxu0 %v1902
    %3057 = vmatpush1.bf16.msra.mxu0 %v1901
    %3058 = vmatprep.subr.bf16.mxu0 %v1898
    %3059 = vmatpush1.bf16.msra.mxu0 %v1897
    %3060 = vmatprep.subr.bf16.mxu0 %v1894
    %3061 = vmatpush1.bf16.msra.mxu0 %v1893
    %3062 = vmatprep.subr.bf16.mxu0 %v1954
    %3063 = vmatpush2.bf16.msra.mxu0 %v1953
    %3064 = vmatprep.subr.bf16.mxu0 %v1950
    %3065 = vmatpush2.bf16.msra.mxu0 %v1949
    %3066 = vmatprep.subr.bf16.mxu0 %v1946
    %3067 = vmatpush2.bf16.msra.mxu0 %v1945
    %3068 = vmatprep.subr.bf16.mxu0 %v1942
    %3069 = vmatpush2.bf16.msra.mxu0 %v1941
    %3070 = vmatprep.subr.bf16.mxu0 %v1938
    %3071 = vmatpush2.bf16.msra.mxu0 %v1937
    %3072 = vmatprep.subr.bf16.mxu0 %v1934
    %3073 = vmatpush2.bf16.msra.mxu0 %v1933
    %3074 = vmatprep.subr.bf16.mxu0 %v1930
    %3075 = vmatpush2.bf16.msra.mxu0 %v1929
    %3076 = vmatprep.subr.bf16.mxu0 %v1926
    %3077 = vmatpush2.bf16.msra.mxu0 %v1925
    %3078 = vmatprep.mubr.bf16.mxu0 %v523
    %3079 = vmatmul.mubr.bf16.gmra.mxu0 %v509
    %v3080 = vpop.f32.mrf.mxu0
    %v3081 = vadd.f32 %v475, %v3080
    %v3082 = vpop.f32.mrf.mxu0
    %v3083 = vadd.f32 %v479, %v3082
    %v3084 = vpop.f32.mrf.mxu0
    %v3085 = vpop.f32.mrf.mxu0
    %3086 = vdwg.mxu0
    %3087 = vmatprep.subr.bf16.mxu0 %v1986
    %3088 = vmatpush1.bf16.msra.mxu0 %v1985
    %3089 = vmatprep.subr.bf16.mxu0 %v1982
    %3090 = vmatpush1.bf16.msra.mxu0 %v1981
    %3091 = vmatprep.subr.bf16.mxu0 %v1978
    %3092 = vmatpush1.bf16.msra.mxu0 %v1977
    %3093 = vmatprep.subr.bf16.mxu0 %v1974
    %3094 = vmatpush1.bf16.msra.mxu0 %v1973
    %3095 = vmatprep.subr.bf16.mxu0 %v1970
    %3096 = vmatpush1.bf16.msra.mxu0 %v1969
    %3097 = vmatprep.subr.bf16.mxu0 %v1966
    %3098 = vmatpush1.bf16.msra.mxu0 %v1965
    %3099 = vmatprep.subr.bf16.mxu0 %v1962
    %3100 = vmatpush1.bf16.msra.mxu0 %v1961
    %3101 = vmatprep.subr.bf16.mxu0 %v1958
    %3102 = vmatpush1.bf16.msra.mxu0 %v1957
    %3103 = vmatprep.subr.bf16.mxu0 %v2018
    %3104 = vmatpush2.bf16.msra.mxu0 %v2017
    %3105 = vmatprep.subr.bf16.mxu0 %v2014
    %3106 = vmatpush2.bf16.msra.mxu0 %v2013
    %3107 = vmatprep.subr.bf16.mxu0 %v2010
    %3108 = vmatpush2.bf16.msra.mxu0 %v2009
    %3109 = vmatprep.subr.bf16.mxu0 %v2006
    %3110 = vmatpush2.bf16.msra.mxu0 %v2005
    %3111 = vmatprep.subr.bf16.mxu0 %v2002
    %3112 = vmatpush2.bf16.msra.mxu0 %v2001
    %3113 = vmatprep.subr.bf16.mxu0 %v1998
    %3114 = vmatpush2.bf16.msra.mxu0 %v1997
    %3115 = vmatprep.subr.bf16.mxu0 %v1994
    %3116 = vmatpush2.bf16.msra.mxu0 %v1993
    %3117 = vmatprep.subr.bf16.mxu0 %v1990
    %3118 = vmatpush2.bf16.msra.mxu0 %v1989
    %3119 = vmatprep.mubr.bf16.mxu0 %v533
    %3120 = vmatmul.mubr.bf16.gmra.mxu0 %v531
    %v3121 = vpop.f32.mrf.mxu0
    %v3122 = vadd.f32 %v3081, %v3121
    %v3123 = vpop.f32.mrf.mxu0
    %v3124 = vadd.f32 %v3083, %v3123
    %v3125 = vpop.f32.mrf.mxu0
    %v3126 = vpop.f32.mrf.mxu0
    %3127 = vdwg.mxu0
    %3128 = vmatprep.subr.bf16.mxu0 %v2050
    %3129 = vmatpush1.bf16.msra.mxu0 %v2049
    %3130 = vmatprep.subr.bf16.mxu0 %v2046
    %3131 = vmatpush1.bf16.msra.mxu0 %v2045
    %3132 = vmatprep.subr.bf16.mxu0 %v2042
    %3133 = vmatpush1.bf16.msra.mxu0 %v2041
    %3134 = vmatprep.subr.bf16.mxu0 %v2038
    %3135 = vmatpush1.bf16.msra.mxu0 %v2037
    %3136 = vmatprep.subr.bf16.mxu0 %v2034
    %3137 = vmatpush1.bf16.msra.mxu0 %v2033
    %3138 = vmatprep.subr.bf16.mxu0 %v2030
    %3139 = vmatpush1.bf16.msra.mxu0 %v2029
    %3140 = vmatprep.subr.bf16.mxu0 %v2026
    %3141 = vmatpush1.bf16.msra.mxu0 %v2025
    %3142 = vmatprep.subr.bf16.mxu0 %v2022
    %3143 = vmatpush1.bf16.msra.mxu0 %v2021
    %3144 = vmatprep.subr.bf16.mxu0 %v2082
    %3145 = vmatpush2.bf16.msra.mxu0 %v2081
    %3146 = vmatprep.subr.bf16.mxu0 %v2078
    %3147 = vmatpush2.bf16.msra.mxu0 %v2077
    %3148 = vmatprep.subr.bf16.mxu0 %v2074
    %3149 = vmatpush2.bf16.msra.mxu0 %v2073
    %3150 = vmatprep.subr.bf16.mxu0 %v2070
    %3151 = vmatpush2.bf16.msra.mxu0 %v2069
    %3152 = vmatprep.subr.bf16.mxu0 %v2066
    %3153 = vmatpush2.bf16.msra.mxu0 %v2065
    %3154 = vmatprep.subr.bf16.mxu0 %v2062
    %3155 = vmatpush2.bf16.msra.mxu0 %v2061
    %3156 = vmatprep.subr.bf16.mxu0 %v2058
    %3157 = vmatpush2.bf16.msra.mxu0 %v2057
    %3158 = vmatprep.subr.bf16.mxu0 %v2054
    %3159 = vmatpush2.bf16.msra.mxu0 %v2053
    %3160 = vmatprep.mubr.bf16.mxu0 %v530
    %3161 = vmatmul.mubr.bf16.gmra.mxu0 %v516
    %v3162 = vpop.f32.mrf.mxu0
    %v3163 = vadd.f32 %v3122, %v3162
    %v3164 = vpop.f32.mrf.mxu0
    %v3165 = vadd.f32 %v3124, %v3164
    %v3166 = vpop.f32.mrf.mxu0
    %v3167 = vpop.f32.mrf.mxu0
    %3168 = vdwg.mxu0
    %3169 = vmatprep.subr.bf16.mxu0 %v2114
    %3170 = vmatpush1.bf16.msra.mxu0 %v2113
    %3171 = vmatprep.subr.bf16.mxu0 %v2110
    %3172 = vmatpush1.bf16.msra.mxu0 %v2109
    %3173 = vmatprep.subr.bf16.mxu0 %v2106
    %3174 = vmatpush1.bf16.msra.mxu0 %v2105
    %3175 = vmatprep.subr.bf16.mxu0 %v2102
    %3176 = vmatpush1.bf16.msra.mxu0 %v2101
    %3177 = vmatprep.subr.bf16.mxu0 %v2098
    %3178 = vmatpush1.bf16.msra.mxu0 %v2097
    %3179 = vmatprep.subr.bf16.mxu0 %v2094
    %3180 = vmatpush1.bf16.msra.mxu0 %v2093
    %3181 = vmatprep.subr.bf16.mxu0 %v2090
    %3182 = vmatpush1.bf16.msra.mxu0 %v2089
    %3183 = vmatprep.subr.bf16.mxu0 %v2086
    %3184 = vmatpush1.bf16.msra.mxu0 %v2085
    %3185 = vmatprep.subr.bf16.mxu0 %v2146
    %3186 = vmatpush2.bf16.msra.mxu0 %v2145
    %3187 = vmatprep.subr.bf16.mxu0 %v2142
    %3188 = vmatpush2.bf16.msra.mxu0 %v2141
    %3189 = vmatprep.subr.bf16.mxu0 %v2138
    %3190 = vmatpush2.bf16.msra.mxu0 %v2137
    %3191 = vmatprep.subr.bf16.mxu0 %v2134
    %3192 = vmatpush2.bf16.msra.mxu0 %v2133
    %3193 = vmatprep.subr.bf16.mxu0 %v2130
    %3194 = vmatpush2.bf16.msra.mxu0 %v2129
    %3195 = vmatprep.subr.bf16.mxu0 %v2126
    %3196 = vmatpush2.bf16.msra.mxu0 %v2125
    %3197 = vmatprep.subr.bf16.mxu0 %v2122
    %3198 = vmatpush2.bf16.msra.mxu0 %v2121
    %3199 = vmatprep.subr.bf16.mxu0 %v2118
    %3200 = vmatpush2.bf16.msra.mxu0 %v2117
    %3201 = vmatprep.mubr.bf16.mxu0 %v534
    %3202 = vmatmul.mubr.bf16.gmra.mxu0 %v532
    %v3203 = vpop.f32.mrf.mxu0
    %v3204 = vadd.f32 %v3163, %v3203
    %v3205 = vpop.f32.mrf.mxu0
    %v3206 = vadd.f32 %v3165, %v3205
    %v3207 = vpop.f32.mrf.mxu0
    %v3208 = vpop.f32.mrf.mxu0
    %3209 = vdwg.mxu0
    %3210 = vmatprep.subr.bf16.mxu0 %v2178
    %3211 = vmatpush1.bf16.msra.mxu0 %v2177
    %3212 = vmatprep.subr.bf16.mxu0 %v2174
    %3213 = vmatpush1.bf16.msra.mxu0 %v2173
    %3214 = vmatprep.subr.bf16.mxu0 %v2170
    %3215 = vmatpush1.bf16.msra.mxu0 %v2169
    %3216 = vmatprep.subr.bf16.mxu0 %v2166
    %3217 = vmatpush1.bf16.msra.mxu0 %v2165
    %3218 = vmatprep.subr.bf16.mxu0 %v2162
    %3219 = vmatpush1.bf16.msra.mxu0 %v2161
    %3220 = vmatprep.subr.bf16.mxu0 %v2158
    %3221 = vmatpush1.bf16.msra.mxu0 %v2157
    %3222 = vmatprep.subr.bf16.mxu0 %v2154
    %3223 = vmatpush1.bf16.msra.mxu0 %v2153
    %3224 = vmatprep.subr.bf16.mxu0 %v2150
    %3225 = vmatpush1.bf16.msra.mxu0 %v2149
    %3226 = vmatprep.subr.bf16.mxu0 %v2210
    %3227 = vmatpush2.bf16.msra.mxu0 %v2209
    %3228 = vmatprep.subr.bf16.mxu0 %v2206
    %3229 = vmatpush2.bf16.msra.mxu0 %v2205
    %3230 = vmatprep.subr.bf16.mxu0 %v2202
    %3231 = vmatpush2.bf16.msra.mxu0 %v2201
    %3232 = vmatprep.subr.bf16.mxu0 %v2198
    %3233 = vmatpush2.bf16.msra.mxu0 %v2197
    %3234 = vmatprep.subr.bf16.mxu0 %v2194
    %3235 = vmatpush2.bf16.msra.mxu0 %v2193
    %3236 = vmatprep.subr.bf16.mxu0 %v2190
    %3237 = vmatpush2.bf16.msra.mxu0 %v2189
    %3238 = vmatprep.subr.bf16.mxu0 %v2186
    %3239 = vmatpush2.bf16.msra.mxu0 %v2185
    %3240 = vmatprep.subr.bf16.mxu0 %v2182
    %3241 = vmatpush2.bf16.msra.mxu0 %v2181
    %3242 = vmatprep.mubr.bf16.mxu0 %v572
    %3243 = vmatmul.mubr.bf16.gmra.mxu0 %v558
    %v3244 = vpop.f32.mrf.mxu0
    %v3245 = vadd.f32 %v3204, %v3244
    %v3246 = vpop.f32.mrf.mxu0
    %v3247 = vadd.f32 %v3206, %v3246
    %v3248 = vpop.f32.mrf.mxu0
    %v3249 = vpop.f32.mrf.mxu0
    %3250 = vdwg.mxu0
    %3251 = vmatprep.subr.bf16.mxu0 %v2242
    %3252 = vmatpush1.bf16.msra.mxu0 %v2241
    %3253 = vmatprep.subr.bf16.mxu0 %v2238
    %3254 = vmatpush1.bf16.msra.mxu0 %v2237
    %3255 = vmatprep.subr.bf16.mxu0 %v2234
    %3256 = vmatpush1.bf16.msra.mxu0 %v2233
    %3257 = vmatprep.subr.bf16.mxu0 %v2230
    %3258 = vmatpush1.bf16.msra.mxu0 %v2229
    %3259 = vmatprep.subr.bf16.mxu0 %v2226
    %3260 = vmatpush1.bf16.msra.mxu0 %v2225
    %3261 = vmatprep.subr.bf16.mxu0 %v2222
    %3262 = vmatpush1.bf16.msra.mxu0 %v2221
    %3263 = vmatprep.subr.bf16.mxu0 %v2218
    %3264 = vmatpush1.bf16.msra.mxu0 %v2217
    %3265 = vmatprep.subr.bf16.mxu0 %v2214
    %3266 = vmatpush1.bf16.msra.mxu0 %v2213
    %3267 = vmatprep.subr.bf16.mxu0 %v2274
    %3268 = vmatpush2.bf16.msra.mxu0 %v2273
    %3269 = vmatprep.subr.bf16.mxu0 %v2270
    %3270 = vmatpush2.bf16.msra.mxu0 %v2269
    %3271 = vmatprep.subr.bf16.mxu0 %v2266
    %3272 = vmatpush2.bf16.msra.mxu0 %v2265
    %3273 = vmatprep.subr.bf16.mxu0 %v2262
    %3274 = vmatpush2.bf16.msra.mxu0 %v2261
    %3275 = vmatprep.subr.bf16.mxu0 %v2258
    %3276 = vmatpush2.bf16.msra.mxu0 %v2257
    %3277 = vmatprep.subr.bf16.mxu0 %v2254
    %3278 = vmatpush2.bf16.msra.mxu0 %v2253
    %3279 = vmatprep.subr.bf16.mxu0 %v2250
    %3280 = vmatpush2.bf16.msra.mxu0 %v2249
    %3281 = vmatprep.subr.bf16.mxu0 %v2246
    %3282 = vmatpush2.bf16.msra.mxu0 %v2245
    %3283 = vmatprep.mubr.bf16.mxu0 %v581
    %3284 = vmatmul.mubr.bf16.gmra.mxu0 %v580
    %v3285 = vpop.f32.mrf.mxu0
    %v3286 = vadd.f32 %v3245, %v3285
    %v3287 = vpop.f32.mrf.mxu0
    %v3288 = vadd.f32 %v3247, %v3287
    %v3289 = vpop.f32.mrf.mxu0
    %v3290 = vpop.f32.mrf.mxu0
    %3291 = vdwg.mxu0
    %3292 = vmatprep.subr.bf16.mxu0 %v2306
    %3293 = vmatpush1.bf16.msra.mxu0 %v2305
    %3294 = vmatprep.subr.bf16.mxu0 %v2302
    %3295 = vmatpush1.bf16.msra.mxu0 %v2301
    %3296 = vmatprep.subr.bf16.mxu0 %v2298
    %3297 = vmatpush1.bf16.msra.mxu0 %v2297
    %3298 = vmatprep.subr.bf16.mxu0 %v2294
    %3299 = vmatpush1.bf16.msra.mxu0 %v2293
    %3300 = vmatprep.subr.bf16.mxu0 %v2290
    %3301 = vmatpush1.bf16.msra.mxu0 %v2289
    %3302 = vmatprep.subr.bf16.mxu0 %v2286
    %3303 = vmatpush1.bf16.msra.mxu0 %v2285
    %3304 = vmatprep.subr.bf16.mxu0 %v2282
    %3305 = vmatpush1.bf16.msra.mxu0 %v2281
    %3306 = vmatprep.subr.bf16.mxu0 %v2278
    %3307 = vmatpush1.bf16.msra.mxu0 %v2277
    %3308 = vmatprep.subr.bf16.mxu0 0
    %3309 = vmatpush2.bf16.msra.mxu0 0
    %3310 = vmatprep.subr.bf16.mxu0 0
    %3311 = vmatpush2.bf16.msra.mxu0 0
    %3312 = vmatprep.subr.bf16.mxu0 0
    %3313 = vmatpush2.bf16.msra.mxu0 0
    %3314 = vmatprep.subr.bf16.mxu0 0
    %3315 = vmatpush2.bf16.msra.mxu0 0
    %3316 = vmatprep.subr.bf16.mxu0 %v2322
    %3317 = vmatpush2.bf16.msra.mxu0 %v2321
    %3318 = vmatprep.subr.bf16.mxu0 %v2318
    %3319 = vmatpush2.bf16.msra.mxu0 %v2317
    %3320 = vmatprep.subr.bf16.mxu0 %v2314
    %3321 = vmatpush2.bf16.msra.mxu0 %v2313
    %3322 = vmatprep.subr.bf16.mxu0 %v2310
    %3323 = vmatpush2.bf16.msra.mxu0 %v2309
    %3324 = vmatprep.mubr.bf16.mxu0 %v2757
    %3325 = vmatmul.mubr.bf16.gmra.mxu0 %v565
    %v3326 = vpop.f32.mrf.mxu0
    %v3327 = vadd.f32 %v3286, %v3326
    %v3328 = vpop.f32.mrf.mxu0
    %v3329 = vadd.f32 %v3288, %v3328
    %v3330 = vpop.f32.mrf.mxu0
    %v3331 = vpop.f32.mrf.mxu0
    %3332 = vdwg.mxu0
    %v3333 = vmax.f32 %v3040, 0.0
    %v3334 = vmax.f32 %v3042, 0.0
    %v3335 = vmax.f32 %v3327, 0.0
    %v3336 = vmax.f32 %v3329, 0.0
    %v3337 = vpack.c.bf16 %v3333, %v3333
    %v3338 = vpack.c.bf16 %v3334, %v3334
    %v3339 = vpack.c.bf16 %v3335, %v3335
    %v3340 = vpack.c.bf16 %v3336, %v3336
    %v3341 = vld [vmem:[%s3] sm:$0xf]
    %v3342 = vld [vmem:[%s3 + $0x4] sm:$0xf]
    %v3343 = vld [vmem:[%s3 + $0x8] sm:$0xf]
    %v3344 = vld [vmem:[%s3 + $0xc] sm:$0xf]
    %v3345 = vld [vmem:[%s3 + $0x10] sm:$0xf]
    %v3346 = vld [vmem:[%s3 + $0x14] sm:$0xf]
    %v3347 = vld [vmem:[%s3 + $0x18] sm:$0xf]
    %v3348 = vld [vmem:[%s3 + $0x1c] sm:$0xf]
    %v3349 = vld [vmem:[%s3 + $0x20] sm:$0xf]
    %v3350 = vld [vmem:[%s3 + $0x24] sm:$0xf]
    %v3351 = vld [vmem:[%s3 + $0x28] sm:$0xf]
    %v3352 = vld [vmem:[%s3 + $0x2c] sm:$0xf]
    %v3353 = vld [vmem:[%s3 + $0x30] sm:$0xf]
    %v3354 = vld [vmem:[%s3 + $0x34] sm:$0xf]
    %v3355 = vld [vmem:[%s3 + $0x38] sm:$0xf]
    %v3356 = vld [vmem:[%s3 + $0x3c] sm:$0xf]
    %v3357 = vld [vmem:[%s3 + $0x40] sm:$0xf]
    %v3358 = vld [vmem:[%s3 + $0x44] sm:$0xf]
    %v3359 = vld [vmem:[%s3 + $0x48] sm:$0xf]
    %v3360 = vld [vmem:[%s3 + $0x4c] sm:$0xf]
    %v3361 = vld [vmem:[%s3 + $0x50] sm:$0xf]
    %v3362 = vld [vmem:[%s3 + $0x54] sm:$0xf]
    %v3363 = vld [vmem:[%s3 + $0x58] sm:$0xf]
    %v3364 = vld [vmem:[%s3 + $0x5c] sm:$0xf]
    %v3365 = vld [vmem:[%s3 + $0x60] sm:$0xf]
    %v3366 = vld [vmem:[%s3 + $0x64] sm:$0xf]
    %v3367 = vld [vmem:[%s3 + $0x68] sm:$0xf]
    %v3368 = vld [vmem:[%s3 + $0x6c] sm:$0xf]
    %v3369 = vld [vmem:[%s3 + $0x70] sm:$0xf]
    %v3370 = vld [vmem:[%s3 + $0x74] sm:$0xf]
    %v3371 = vld [vmem:[%s3 + $0x78] sm:$0xf]
    %v3372 = vld [vmem:[%s3 + $0x7c] sm:$0xf]
    %v3373 = vld [vmem:[%s3 + $0x80] sm:$0xf]
    %v3374 = vld [vmem:[%s3 + $0x84] sm:$0xf]
    %v3375 = vld [vmem:[%s3 + $0x88] sm:$0xf]
    %v3376 = vld [vmem:[%s3 + $0x8c] sm:$0xf]
    %v3377 = vld [vmem:[%s3 + $0x90] sm:$0xf]
    %v3378 = vld [vmem:[%s3 + $0x94] sm:$0xf]
    %v3379 = vld [vmem:[%s3 + $0x98] sm:$0xf]
    %v3380 = vld [vmem:[%s3 + $0x9c] sm:$0xf]
    %v3381 = vld [vmem:[%s3 + $0xa0] sm:$0xf]
    %v3382 = vld [vmem:[%s3 + $0xa4] sm:$0xf]
    %v3383 = vld [vmem:[%s3 + $0xa8] sm:$0xf]
    %v3384 = vld [vmem:[%s3 + $0xac] sm:$0xf]
    %v3385 = vld [vmem:[%s3 + $0xb0] sm:$0xf]
    %v3386 = vld [vmem:[%s3 + $0xb4] sm:$0xf]
    %v3387 = vld [vmem:[%s3 + $0xb8] sm:$0xf]
    %v3388 = vld [vmem:[%s3 + $0xbc] sm:$0xf]
    %v3389 = vld [vmem:[%s3 + $0xc0] sm:$0xf]
    %v3390 = vld [vmem:[%s3 + $0xc4] sm:$0xf]
    %v3391 = vld [vmem:[%s3 + $0xc8] sm:$0xf]
    %v3392 = vld [vmem:[%s3 + $0xcc] sm:$0xf]
    %v3393 = vld [vmem:[%s3 + $0xd0] sm:$0xf]
    %v3394 = vld [vmem:[%s3 + $0xd4] sm:$0xf]
    %v3395 = vld [vmem:[%s3 + $0xd8] sm:$0xf]
    %v3396 = vld [vmem:[%s3 + $0xdc] sm:$0xf]
    %v3397 = vld [vmem:[%s3 + $0xe0] sm:$0xf]
    %v3398 = vld [vmem:[%s3 + $0xe4] sm:$0xf]
    %v3399 = vld [vmem:[%s3 + $0xe8] sm:$0xf]
    %v3400 = vld [vmem:[%s3 + $0xec] sm:$0xf]
    %v3401 = vld [vmem:[%s3 + $0xf0] sm:$0xf]
    %v3402 = vld [vmem:[%s3 + $0xf4] sm:$0xf]
    %v3403 = vld [vmem:[%s3 + $0xf8] sm:$0xf]
    %v3404 = vld [vmem:[%s3 + $0xfc] sm:$0xf]
    %v3405 = vld [vmem:[%s4] sm:$0x1]
    %v3407 = vlaneseq
    %v3408 = vshrl.u32 %v3407, 7
    %v3409 = vsub.s32 0, %v3408
    %v3410 = vrot.slane %v3405, %v3409
    %v3476 = vunpack.c.l.b16 %v3341
    %v3477 = vunpack.c.l.b16 %v3342
    %v3478 = vunpack.c.l.b16 %v3343
    %v3479 = vunpack.c.l.b16 %v3344
    %v3480 = vunpack.c.l.b16 %v3345
    %v3481 = vunpack.c.l.b16 %v3346
    %v3482 = vunpack.c.l.b16 %v3347
    %v3483 = vunpack.c.l.b16 %v3348
    %v3484 = vunpack.c.l.b16 %v3349
    %v3485 = vunpack.c.l.b16 %v3350
    %v3486 = vunpack.c.l.b16 %v3351
    %v3487 = vunpack.c.l.b16 %v3352
    %v3488 = vunpack.c.l.b16 %v3353
    %v3489 = vunpack.c.l.b16 %v3354
    %v3490 = vunpack.c.l.b16 %v3355
    %v3491 = vunpack.c.l.b16 %v3356
    %v3492 = vunpack.c.l.b16 %v3357
    %v3493 = vunpack.c.l.b16 %v3358
    %v3494 = vunpack.c.l.b16 %v3359
    %v3495 = vunpack.c.l.b16 %v3360
    %v3496 = vunpack.c.l.b16 %v3361
    %v3497 = vunpack.c.l.b16 %v3362
    %v3498 = vunpack.c.l.b16 %v3363
    %v3499 = vunpack.c.l.b16 %v3364
    %v3500 = vunpack.c.l.b16 %v3365
    %v3501 = vunpack.c.l.b16 %v3366
    %v3502 = vunpack.c.l.b16 %v3367
    %v3503 = vunpack.c.l.b16 %v3368
    %v3504 = vunpack.c.l.b16 %v3369
    %v3505 = vunpack.c.l.b16 %v3370
    %v3506 = vunpack.c.l.b16 %v3371
    %v3507 = vunpack.c.l.b16 %v3372
    %v3508 = vunpack.c.l.b16 %v3373
    %v3509 = vunpack.c.l.b16 %v3374
    %v3510 = vunpack.c.l.b16 %v3375
    %v3511 = vunpack.c.l.b16 %v3376
    %v3512 = vunpack.c.l.b16 %v3377
    %v3513 = vunpack.c.l.b16 %v3378
    %v3514 = vunpack.c.l.b16 %v3379
    %v3515 = vunpack.c.l.b16 %v3380
    %v3516 = vunpack.c.l.b16 %v3381
    %v3517 = vunpack.c.l.b16 %v3382
    %v3518 = vunpack.c.l.b16 %v3383
    %v3519 = vunpack.c.l.b16 %v3384
    %v3520 = vunpack.c.l.b16 %v3385
    %v3521 = vunpack.c.l.b16 %v3386
    %v3522 = vunpack.c.l.b16 %v3387
    %v3523 = vunpack.c.l.b16 %v3388
    %v3524 = vunpack.c.l.b16 %v3389
    %v3525 = vunpack.c.l.b16 %v3390
    %v3526 = vunpack.c.l.b16 %v3391
    %v3527 = vunpack.c.l.b16 %v3392
    %v3528 = vunpack.c.l.b16 %v3393
    %v3529 = vunpack.c.l.b16 %v3394
    %v3530 = vunpack.c.l.b16 %v3395
    %v3531 = vunpack.c.l.b16 %v3396
    %v3532 = vunpack.c.l.b16 %v3397
    %v3533 = vunpack.c.l.b16 %v3398
    %v3534 = vunpack.c.l.b16 %v3399
    %v3535 = vunpack.c.l.b16 %v3400
    %v3536 = vunpack.c.l.b16 %v3401
    %v3537 = vunpack.c.l.b16 %v3402
    %v3538 = vunpack.c.l.b16 %v3403
    %v3539 = vunpack.c.l.b16 %v3404
    %v3540 = vpack.c.b16 %v3477, %v3476
    %v3541 = vpack.c.b16 %v3479, %v3478
    %v3542 = vpack.c.b16 %v3481, %v3480
    %v3543 = vpack.c.b16 %v3483, %v3482
    %v3544 = vpack.c.b16 %v3485, %v3484
    %v3545 = vpack.c.b16 %v3487, %v3486
    %v3546 = vpack.c.b16 %v3489, %v3488
    %v3547 = vpack.c.b16 %v3491, %v3490
    %v3548 = vpack.c.b16 %v3493, %v3492
    %v3549 = vpack.c.b16 %v3495, %v3494
    %v3550 = vpack.c.b16 %v3497, %v3496
    %v3551 = vpack.c.b16 %v3499, %v3498
    %v3552 = vpack.c.b16 %v3501, %v3500
    %v3553 = vpack.c.b16 %v3503, %v3502
    %v3554 = vpack.c.b16 %v3505, %v3504
    %v3555 = vpack.c.b16 %v3507, %v3506
    %v3556 = vpack.c.b16 %v3509, %v3508
    %v3557 = vpack.c.b16 %v3511, %v3510
    %v3558 = vpack.c.b16 %v3513, %v3512
    %v3559 = vpack.c.b16 %v3515, %v3514
    %v3560 = vpack.c.b16 %v3517, %v3516
    %v3561 = vpack.c.b16 %v3519, %v3518
    %v3562 = vpack.c.b16 %v3521, %v3520
    %v3563 = vpack.c.b16 %v3523, %v3522
    %v3564 = vpack.c.b16 %v3525, %v3524
    %v3565 = vpack.c.b16 %v3527, %v3526
    %v3566 = vpack.c.b16 %v3529, %v3528
    %v3567 = vpack.c.b16 %v3531, %v3530
    %v3568 = vpack.c.b16 %v3533, %v3532
    %v3569 = vpack.c.b16 %v3535, %v3534
    %v3570 = vpack.c.b16 %v3537, %v3536
    %v3571 = vpack.c.b16 %v3539, %v3538
    %3604 = vmatprep.subr.bf16.mxu0 0
    %3605 = vmatpush1.bf16.msra.mxu0 %v3547
    %3606 = vmatprep.subr.bf16.mxu0 0
    %3607 = vmatpush1.bf16.msra.mxu0 %v3546
    %3608 = vmatprep.subr.bf16.mxu0 0
    %3609 = vmatpush1.bf16.msra.mxu0 %v3545
    %3610 = vmatprep.subr.bf16.mxu0 0
    %3611 = vmatpush1.bf16.msra.mxu0 %v3544
    %3612 = vmatprep.subr.bf16.mxu0 0
    %3613 = vmatpush1.bf16.msra.mxu0 %v3543
    %3614 = vmatprep.subr.bf16.mxu0 0
    %3615 = vmatpush1.bf16.msra.mxu0 %v3542
    %3616 = vmatprep.subr.bf16.mxu0 0
    %3617 = vmatpush1.bf16.msra.mxu0 %v3541
    %3618 = vmatprep.subr.bf16.mxu0 0
    %3619 = vmatpush1.bf16.msra.mxu0 %v3540
    %3620 = vmatprep.subr.bf16.mxu0 0
    %3621 = vmatpush2.bf16.msra.mxu0 %v3555
    %3622 = vmatprep.subr.bf16.mxu0 0
    %3623 = vmatpush2.bf16.msra.mxu0 %v3554
    %3624 = vmatprep.subr.bf16.mxu0 0
    %3625 = vmatpush2.bf16.msra.mxu0 %v3553
    %3626 = vmatprep.subr.bf16.mxu0 0
    %3627 = vmatpush2.bf16.msra.mxu0 %v3552
    %3628 = vmatprep.subr.bf16.mxu0 0
    %3629 = vmatpush2.bf16.msra.mxu0 %v3551
    %3630 = vmatprep.subr.bf16.mxu0 0
    %3631 = vmatpush2.bf16.msra.mxu0 %v3550
    %3632 = vmatprep.subr.bf16.mxu0 0
    %3633 = vmatpush2.bf16.msra.mxu0 %v3549
    %3634 = vmatprep.subr.bf16.mxu0 0
    %3635 = vmatpush2.bf16.msra.mxu0 %v3548
    %3636 = vmatprep.mubr.bf16.mxu0 %v3338
    %3637 = vmatmul.mubr.bf16.gmra.mxu0 %v3337
    %v3638 = vpop.f32.mrf.mxu0
    %v3639 = vadd.f32 %v3410, %v3638
    %v3640 = vpop.f32.mrf.mxu0
    %v3641 = vpop.f32.mrf.mxu0
    %v3642 = vpop.f32.mrf.mxu0
    %3643 = vdwg.mxu0
    %3644 = vmatprep.subr.bf16.mxu0 0
    %3645 = vmatpush1.bf16.msra.mxu0 %v3563
    %3646 = vmatprep.subr.bf16.mxu0 0
    %3647 = vmatpush1.bf16.msra.mxu0 %v3562
    %3648 = vmatprep.subr.bf16.mxu0 0
    %3649 = vmatpush1.bf16.msra.mxu0 %v3561
    %3650 = vmatprep.subr.bf16.mxu0 0
    %3651 = vmatpush1.bf16.msra.mxu0 %v3560
    %3652 = vmatprep.subr.bf16.mxu0 0
    %3653 = vmatpush1.bf16.msra.mxu0 %v3559
    %3654 = vmatprep.subr.bf16.mxu0 0
    %3655 = vmatpush1.bf16.msra.mxu0 %v3558
    %3656 = vmatprep.subr.bf16.mxu0 0
    %3657 = vmatpush1.bf16.msra.mxu0 %v3557
    %3658 = vmatprep.subr.bf16.mxu0 0
    %3659 = vmatpush1.bf16.msra.mxu0 %v3556
    %3660 = vmatprep.subr.bf16.mxu0 0
    %3661 = vmatpush2.bf16.msra.mxu0 %v3571
    %3662 = vmatprep.subr.bf16.mxu0 0
    %3663 = vmatpush2.bf16.msra.mxu0 %v3570
    %3664 = vmatprep.subr.bf16.mxu0 0
    %3665 = vmatpush2.bf16.msra.mxu0 %v3569
    %3666 = vmatprep.subr.bf16.mxu0 0
    %3667 = vmatpush2.bf16.msra.mxu0 %v3568
    %3668 = vmatprep.subr.bf16.mxu0 0
    %3669 = vmatpush2.bf16.msra.mxu0 %v3567
    %3670 = vmatprep.subr.bf16.mxu0 0
    %3671 = vmatpush2.bf16.msra.mxu0 %v3566
    %3672 = vmatprep.subr.bf16.mxu0 0
    %3673 = vmatpush2.bf16.msra.mxu0 %v3565
    %3674 = vmatprep.subr.bf16.mxu0 0
    %3675 = vmatpush2.bf16.msra.mxu0 %v3564
    %3676 = vmatprep.mubr.bf16.mxu0 %v3340
    %3677 = vmatmul.mubr.bf16.gmra.mxu0 %v3339
    %v3678 = vpop.f32.mrf.mxu0
    %v3679 = vadd.f32 %v3639, %v3678
    %v3680 = vpop.f32.mrf.mxu0
    %v3681 = vpop.f32.mrf.mxu0
    %v3682 = vpop.f32.mrf.mxu0
    %3683 = vdwg.mxu0
    %v3684 = vmax.f32 %v3679, 0.0
    %v3685 = vpack.c.bf16 %v3684, %v3684
    %v3686 = vld [vmem:[%s5] sm:$0xf]
    %v3687 = vld [vmem:[%s5 + $0x4] sm:$0xf]
    %v3688 = vld [vmem:[%s5 + $0x8] sm:$0xf]
    %v3689 = vld [vmem:[%s5 + $0xc] sm:$0xf]
    %v3690 = vld [vmem:[%s5 + $0x10] sm:$0xf]
    %v3691 = vld [vmem:[%s5 + $0x14] sm:$0xf]
    %v3692 = vld [vmem:[%s5 + $0x18] sm:$0xf]
    %v3693 = vld [vmem:[%s5 + $0x1c] sm:$0xf]
    %v3694 = vld [vmem:[%s5 + $0x20] sm:$0xf]
    %v3695 = vld [vmem:[%s5 + $0x24] sm:$0xf]
    %v3696 = vld [vmem:[%s5 + $0x28] sm:$0xf]
    %v3697 = vld [vmem:[%s5 + $0x2c] sm:$0xf]
    %v3698 = vld [vmem:[%s5 + $0x30] sm:$0xf]
    %v3699 = vld [vmem:[%s5 + $0x34] sm:$0xf]
    %v3700 = vld [vmem:[%s5 + $0x38] sm:$0xf]
    %v3701 = vld [vmem:[%s5 + $0x3c] sm:$0xf]
    %v3702 = vld [vmem:[%s6] sm:$0x1]
    %v3704 = vlaneseq
    %v3705 = vshrl.u32 %v3704, 7
    %v3706 = vsub.s32 0, %v3705
    %v3707 = vrot.slane %v3702, %v3706
    %v3725 = vunpack.c.l.b16 %v3686
    %v3726 = vunpack.c.l.b16 %v3687
    %v3727 = vunpack.c.l.b16 %v3688
    %v3728 = vunpack.c.l.b16 %v3689
    %v3729 = vunpack.c.l.b16 %v3690
    %v3730 = vunpack.c.l.b16 %v3691
    %v3731 = vunpack.c.l.b16 %v3692
    %v3732 = vunpack.c.l.b16 %v3693
    %v3733 = vunpack.c.l.b16 %v3694
    %v3734 = vunpack.c.l.b16 %v3695
    %v3735 = vunpack.c.l.b16 %v3696
    %v3736 = vunpack.c.l.b16 %v3697
    %v3737 = vunpack.c.l.b16 %v3698
    %v3738 = vunpack.c.l.b16 %v3699
    %v3739 = vunpack.c.l.b16 %v3700
    %v3740 = vunpack.c.l.b16 %v3701
    %v3741 = vpack.c.b16 %v3726, %v3725
    %v3742 = vpack.c.b16 %v3728, %v3727
    %v3743 = vpack.c.b16 %v3730, %v3729
    %v3744 = vpack.c.b16 %v3732, %v3731
    %v3745 = vpack.c.b16 %v3734, %v3733
    %v3746 = vpack.c.b16 %v3736, %v3735
    %v3747 = vpack.c.b16 %v3738, %v3737
    %v3748 = vpack.c.b16 %v3740, %v3739
    %3757 = vmatprep.subr.bf16.mxu0 0
    %3758 = vmatpush1.bf16.msra.mxu0 %v3748
    %3759 = vmatprep.subr.bf16.mxu0 0
    %3760 = vmatpush1.bf16.msra.mxu0 %v3747
    %3761 = vmatprep.subr.bf16.mxu0 0
    %3762 = vmatpush1.bf16.msra.mxu0 %v3746
    %3763 = vmatprep.subr.bf16.mxu0 0
    %3764 = vmatpush1.bf16.msra.mxu0 %v3745
    %3765 = vmatprep.subr.bf16.mxu0 0
    %3766 = vmatpush1.bf16.msra.mxu0 %v3744
    %3767 = vmatprep.subr.bf16.mxu0 0
    %3768 = vmatpush1.bf16.msra.mxu0 %v3743
    %3769 = vmatprep.subr.bf16.mxu0 0
    %3770 = vmatpush1.bf16.msra.mxu0 %v3742
    %3771 = vmatprep.subr.bf16.mxu0 0
    %3772 = vmatpush1.bf16.msra.mxu0 %v3741
    %3773 = vmatprep.subr.bf16.mxu0 0
    %3774 = vmatpush2.bf16.msra.mxu0 0
    %3775 = vmatprep.subr.bf16.mxu0 0
    %3776 = vmatpush2.bf16.msra.mxu0 0
    %3777 = vmatprep.subr.bf16.mxu0 0
    %3778 = vmatpush2.bf16.msra.mxu0 0
    %3779 = vmatprep.subr.bf16.mxu0 0
    %3780 = vmatpush2.bf16.msra.mxu0 0
    %3781 = vmatprep.subr.bf16.mxu0 0
    %3782 = vmatpush2.bf16.msra.mxu0 0
    %3783 = vmatprep.subr.bf16.mxu0 0
    %3784 = vmatpush2.bf16.msra.mxu0 0
    %3785 = vmatprep.subr.bf16.mxu0 0
    %3786 = vmatpush2.bf16.msra.mxu0 0
    %3787 = vmatprep.subr.bf16.mxu0 0
    %3788 = vmatpush2.bf16.msra.mxu0 0
    %3789 = vmatprep.mubr.bf16.mxu0 0
    %3790 = vmatmul.mubr.bf16.gmra.mxu0 %v3685
    %v3791 = vpop.f32.mrf.mxu0
    %v3792 = vadd.f32 %v3707, %v3791
    %v3793 = vpop.f32.mrf.mxu0
    %v3794 = vpop.f32.mrf.mxu0
    %v3795 = vpop.f32.mrf.mxu0
    %3796 = vdwg.mxu0
    %vm3797 = vcmask 25600
    %3798 = vst.msk [vmem:[#allocation2] sm:$0x3] %vm3797, %v3792
    // Predicated region
    $region30: #{simpleconv3_forward.7} parent=1 // pred_check
      _
    $region31: #{simpleconv3_forward.7} parent=1 // pred_check_branch
      %3800 = sbr.rel (0) target = $region33
    $region32: #{simpleconv3_forward.7} parent=1 // pred_region
      %s3802 = ssub.s32 32, 32
      %3803 = vsyncadd [#allocation3], %s3802
      %s3805 = sshll.u32 [#allocation2], 4
      %s3806 = int_to_ptr.vmem [resolvable:$true] %s3805
      %3808 = dma.vmem_to_hbm [thread:$0]  %s3806, 32, %s7, [#allocation3]
    $region33: #{simpleconv3_forward.7} parent=1 // pred_fallthru
      _
    // Predicated region
    $region34: #{simpleconv3_forward.7} parent=1 // pred_check
      _
    $region35: #{simpleconv3_forward.7} parent=1 // pred_check_branch
      %3810 = sbr.rel (0) target = $region37
    $region36: #{simpleconv3_forward.7} parent=1 // pred_region
      %3811 = dma.done [#allocation3], 32
    $region37: #{simpleconv3_forward.7} parent=1 // pred_fallthru
      _
    %3812 = vsyncpa [#allocation3], 1

</llo_original>
